<compile_context>
chip_gen: v7x
topology: tpu7x:2x2x1
jax: 0.10.0
libtpu: 0.0.40
codegen_flags: <defaults>
</compile_context>

<pallas_src>
import jax
import jax.numpy as jnp
from jax.experimental import pallas as pl
from jax.experimental.pallas import tpu as pltpu

# ---------------- model hyper-parameters (small, synthetic) ----------------
B = 2            # batch (per tower)
S = 8            # sequence length
H = 128          # hidden size
NUM_LAYERS = 2
NUM_HEADS = 2
HEAD_DIM = H // NUM_HEADS
FFN = 4 * H
VOCAB = 64
MAX_POS = 16
TYPE_VOCAB = 2
LORA_RANK = 8
LORA_ALPHA = 16.0
LN_EPS = 1e-12


# ---------------------------- Pallas kernel ---------------------------------
def _layer_norm(x, g, b):
    mu = jnp.mean(x, axis=-1, keepdims=True)
    var = jnp.mean((x - mu) ** 2, axis=-1, keepdims=True)
    return (x - mu) * jax.lax.rsqrt(var + LN_EPS) * g + b


def encoder_stack_kernel(
    # inputs (resident across the layer grid)
    x0_ref, mask_ref,
    # per-layer weights, streamed by BlockSpec along the leading L axis
    wqkv_ref, bqkv_ref, wo_ref, bo_ref, ln1g_ref, ln1b_ref,
    wi_ref, bi_ref, wout_ref, bout_ref, ln2g_ref, ln2b_ref,
    # output
    out_ref,
    # VMEM scratch: activations carried across layers
    h_ref,
):
    layer = pl.program_id(0)

    @pl.when(layer == 0)
    def _():
        h_ref[...] = x0_ref[...]

    nb, s, hdim = h_ref.shape
    bt = nb * s

    x3 = h_ref[...]                          # (NB, S, H) f32
    x2 = x3.reshape(bt, hdim)                # (BT, H)   f32
    x2b = x2.astype(jnp.bfloat16)

    mask = mask_ref[...]                     # (NB, S) f32
    add_mask = (1.0 - mask) * (-1e9)         # additive attention mask

    # --- fused, LoRA-merged QKV projection: one (BT, H) x (H, 3H) matmul ---
    qkv = jnp.dot(x2b, wqkv_ref[0],
                  preferred_element_type=jnp.float32) + bqkv_ref[0]  # (BT, 3H)
    q = qkv[:, 0 * hdim:1 * hdim].reshape(nb, s, hdim)
    k = qkv[:, 1 * hdim:2 * hdim].reshape(nb, s, hdim)
    v = qkv[:, 2 * hdim:3 * hdim].reshape(nb, s, hdim)

    inv_sqrt_d = 1.0 / (float(HEAD_DIM) ** 0.5)
    wo = wo_ref[0]                           # (H, H) bf16, (in, out) layout

    # attention (small S, kept in f32); summing per-head row-slices of Wo is
    # algebraically identical to concat(heads) @ Wo.
    attn = jnp.zeros((bt, hdim), jnp.float32)
    for hd in range(NUM_HEADS):
        sl = slice(hd * HEAD_DIM, (hd + 1) * HEAD_DIM)
        qh, kh, vh = q[:, :, sl], k[:, :, sl], v[:, :, sl]
        sc = jnp.einsum('bqd,bkd->bqk', qh, kh,
                        preferred_element_type=jnp.float32) * inv_sqrt_d
        sc = sc + add_mask[:, None, :]
        sc = sc - jnp.max(sc, axis=-1, keepdims=True)
        p = jnp.exp(sc)
        p = p * pl.reciprocal(jnp.sum(p, axis=-1, keepdims=True), approx=True)
        ctx = jnp.einsum('bqk,bkd->bqd', p, vh,
                         preferred_element_type=jnp.float32)   # (NB, S, Dh)
        attn = attn + jnp.dot(
            ctx.reshape(bt, HEAD_DIM).astype(jnp.bfloat16), wo[sl, :],
            preferred_element_type=jnp.float32)
    attn = attn + bo_ref[0]

    h1 = _layer_norm(x2 + attn, ln1g_ref[0], ln1b_ref[0])      # (BT, H) f32

    # --- feed-forward ---
    ff = jnp.dot(h1.astype(jnp.bfloat16), wi_ref[0],
                 preferred_element_type=jnp.float32) + bi_ref[0]   # (BT, FFN)
    ff = jax.nn.gelu(ff, approximate=True)
    ff = jnp.dot(ff.astype(jnp.bfloat16), wout_ref[0],
                 preferred_element_type=jnp.float32) + bout_ref[0]  # (BT, H)

    h2 = _layer_norm(h1 + ff, ln2g_ref[0], ln2b_ref[0])        # (BT, H)
    h_ref[...] = h2.reshape(nb, s, hdim)

    # --- fused epilogue on the last layer: masked mean pool + L2 normalize ---
    @pl.when(layer == pl.num_programs(0) - 1)
    def _():
        h3 = h2.reshape(nb, s, hdim)
        me = mask[:, :, None]                                  # (NB, S, 1)
        summed = jnp.sum(h3 * me, axis=1)                      # (NB, H)
        counts = jnp.maximum(jnp.sum(me, axis=1), 1e-9)        # clamp(min=1e-9)
        emb = summed * pl.reciprocal(counts, approx=True)
        nrm2 = jnp.sum(emb * emb, axis=-1, keepdims=True)
        out_ref[...] = emb * jax.lax.rsqrt(jnp.maximum(nrm2, 1e-24))


# ---------------------------- Pallas wrapper ---------------------------------
def encode_towers(stacked, x0, mask_f):
    """x0: (NB, S, H) f32 embeddings; mask_f: (NB, S) f32. Returns (NB, H)."""
    nb, s, h = x0.shape
    wmap = lambda l: (l, 0, 0)
    cmap3 = lambda l: (0, 0, 0)
    cmap2 = lambda l: (0, 0)

    grid_spec = pltpu.PrefetchScalarGridSpec(
        num_scalar_prefetch=0,
        grid=(NUM_LAYERS,),
        in_specs=[
            pl.BlockSpec((nb, s, h), cmap3),          # x0 (resident)
            pl.BlockSpec((nb, s), cmap2),             # mask (resident)
            pl.BlockSpec((1, h, 3 * h), wmap),        # wqkv
            pl.BlockSpec((1, 1, 3 * h), wmap),        # bqkv
            pl.BlockSpec((1, h, h), wmap),            # wo
            pl.BlockSpec((1, 1, h), wmap),            # bo
            pl.BlockSpec((1, 1, h), wmap),            # ln1 gamma
            pl.BlockSpec((1, 1, h), wmap),            # ln1 beta
            pl.BlockSpec((1, h, FFN), wmap),          # wi
            pl.BlockSpec((1, 1, FFN), wmap),          # bi
            pl.BlockSpec((1, FFN, h), wmap),          # wout
            pl.BlockSpec((1, 1, h), wmap),            # bout
            pl.BlockSpec((1, 1, h), wmap),            # ln2 gamma
            pl.BlockSpec((1, 1, h), wmap),            # ln2 beta
        ],
        out_specs=pl.BlockSpec((nb, h), cmap2),
        scratch_shapes=[pltpu.VMEM((nb, s, h), jnp.float32)],
    )
    return pl.pallas_call(
        encoder_stack_kernel,
        out_shape=jax.ShapeDtypeStruct((nb, h), jnp.float32),
        grid_spec=grid_spec,
        compiler_params=pltpu.CompilerParams(
            dimension_semantics=("arbitrary",),       # layer axis carries state
            vmem_limit_bytes=32 * 1024 * 1024,
        ),
    )(
        x0, mask_f,
        stacked['wqkv'], stacked['bqkv'], stacked['wo'], stacked['bo'],
        stacked['ln1g'], stacked['ln1b'],
        stacked['wi'], stacked['bi'], stacked['wout'], stacked['bout'],
        stacked['ln2g'], stacked['ln2b'],
    )


# ------------------------------ glue (plain JAX) ------------------------------
def embed(params, input_ids, token_type_ids):
    _, seq = input_ids.shape
    pos_ids = jnp.arange(seq)
    e = (params['word_emb'][input_ids]
         + params['pos_emb'][pos_ids][None, :, :]
         + params['type_emb'][token_type_ids])
    mu = jnp.mean(e, axis=-1, keepdims=True)
    var = jnp.mean((e - mu) ** 2, axis=-1, keepdims=True)
    return (e - mu) * jax.lax.rsqrt(var + LN_EPS) * params['emb_ln_g'] \
        + params['emb_ln_b']


def prepare_stacked_params(params):
    """Merge LoRA into base weights, fuse QKV, transpose to (in,out), stack
    over layers, cast weight matrices to bf16 (biases / LN stay f32)."""
    scale = LORA_ALPHA / LORA_RANK

    def merge(w, a, bl):               # (out,in) + (out,r) @ (r,in)
        return w + scale * (bl @ a)

    cols = {k: [] for k in ('wqkv', 'bqkv', 'wo', 'bo', 'ln1g', 'ln1b',
                            'wi', 'bi', 'wout', 'bout', 'ln2g', 'ln2b')}
    for lp in params['layers']:
        wq = merge(lp['wq'], lp['aq'], lp['bq_l'])
        wk = merge(lp['wk'], lp['ak'], lp['bk_l'])
        wv = merge(lp['wv'], lp['av'], lp['bv_l'])
        cols['wqkv'].append(jnp.concatenate([wq.T, wk.T, wv.T], axis=1))
        cols['bqkv'].append(jnp.concatenate([lp['bq'], lp['bk'], lp['bv']],
                                            axis=1))
        cols['wo'].append(lp['wo'].T)
        cols['bo'].append(lp['bo'])
        cols['ln1g'].append(lp['ln1_g']); cols['ln1b'].append(lp['ln1_b'])
        cols['wi'].append(lp['wi'].T)
        cols['bi'].append(lp['bi'])
        cols['wout'].append(lp['wout'].T)
        cols['bout'].append(lp['bout'])
        cols['ln2g'].append(lp['ln2_g']); cols['ln2b'].append(lp['ln2_b'])

    stacked = {k: jnp.stack(v, axis=0) for k, v in cols.items()}
    for k in ('wqkv', 'wo', 'wi', 'wout'):
        stacked[k] = stacked[k].astype(jnp.bfloat16)
    return stacked


def esci_forward(params, stacked, query_input_ids, query_attention_mask,
                 product_input_ids, product_attention_mask,
                 query_token_type_ids, product_token_type_ids, labels):
    q_ids = jnp.squeeze(query_input_ids, axis=1)
    q_am = jnp.squeeze(query_attention_mask, axis=1)
    q_tt = jnp.squeeze(query_token_type_ids, axis=1)
    p_ids = jnp.squeeze(product_input_ids, axis=1)
    p_am = jnp.squeeze(product_attention_mask, axis=1)
    p_tt = jnp.squeeze(product_token_type_ids, axis=1)
    nb = q_ids.shape[0]

    # both towers share weights -> encode them in a single fused pass
    ids = jnp.concatenate([q_ids, p_ids], axis=0)          # (2B, S)
    am = jnp.concatenate([q_am, p_am], axis=0)
    tt = jnp.concatenate([q_tt, p_tt], axis=0)

    x0 = embed(params, ids, tt)                            # (2B, S, H)
    mask_f = am.astype(jnp.float32)                        # (2B, S)
    emb = encode_towers(stacked, x0, mask_f)               # (2B, H)

    q_emb, p_emb = emb[:nb], emb[nb:]
    contig_labels = labels.reshape(-1)
    return q_emb, p_emb, contig_labels


# ------------------------- deterministic parameter init ----------------------
def init_params(key):
    def nrm(k, shape, std=0.02):
        return std * jax.random.normal(k, shape, jnp.float32)

    keys = iter(jax.random.split(key, 256))
    params = dict(
        word_emb=nrm(next(keys), (VOCAB, H)),
        pos_emb=nrm(next(keys), (MAX_POS, H)),
        type_emb=nrm(next(keys), (TYPE_VOCAB, H)),
        emb_ln_g=jnp.ones((H,), jnp.float32),
        emb_ln_b=jnp.zeros((H,), jnp.float32),
        layers=[],
    )
    for _ in range(NUM_LAYERS):
        lp = dict(
            wq=nrm(next(keys), (H, H)), bq=jnp.zeros((1, H), jnp.float32),
            # NOTE: standard LoRA inits B to zero; small nonzero init so the
            # (merged) LoRA branch actually contributes.
            aq=nrm(next(keys), (LORA_RANK, H)), bq_l=nrm(next(keys), (H, LORA_RANK)),
            wk=nrm(next(keys), (H, H)), bk=jnp.zeros((1, H), jnp.float32),
            ak=nrm(next(keys), (LORA_RANK, H)), bk_l=nrm(next(keys), (H, LORA_RANK)),
            wv=nrm(next(keys), (H, H)), bv=jnp.zeros((1, H), jnp.float32),
            av=nrm(next(keys), (LORA_RANK, H)), bv_l=nrm(next(keys), (H, LORA_RANK)),
            wo=nrm(next(keys), (H, H)), bo=jnp.zeros((1, H), jnp.float32),
            ln1_g=jnp.ones((1, H), jnp.float32), ln1_b=jnp.zeros((1, H), jnp.float32),
            wi=nrm(next(keys), (FFN, H)), bi=jnp.zeros((1, FFN), jnp.float32),
            wout=nrm(next(keys), (H, FFN)), bout=jnp.zeros((1, H), jnp.float32),
            ln2_g=jnp.ones((1, H), jnp.float32), ln2_b=jnp.zeros((1, H), jnp.float32),
        )
        params['layers'].append(lp)
    return params


# ------------------------------------ main ------------------------------------
if __name__ == "__main__":
    # TODO(synk): AutoTokenizer / pretrained HF checkpoint loading has no
    # Pallas equivalent; weights are synthetic and inputs are pre-tokenized ids.
    root = jax.random.PRNGKey(0)
    k_params, k_q, k_p, k_lab = jax.random.split(root, 4)

    params = init_params(k_params)
    stacked = prepare_stacked_params(params)   # LoRA-merged, QKV-fused, bf16

    query_input_ids = jax.random.randint(k_q, (B, 1, S), 0, VOCAB, dtype=jnp.int32)
    product_input_ids = jax.random.randint(k_p, (B, 1, S), 0, VOCAB, dtype=jnp.int32)
    query_attention_mask = jnp.ones((B, 1, S), jnp.int32).at[0, 0, 6:].set(0)
    product_attention_mask = jnp.ones((B, 1, S), jnp.int32).at[1, 0, 5:].set(0)
    query_token_type_ids = jnp.zeros((B, 1, S), jnp.int32)
    product_token_type_ids = jnp.zeros((B, 1, S), jnp.int32)
    labels = jax.random.randint(k_lab, (B, 1), 0, 2, dtype=jnp.int32)

    q_emb, p_emb, contig_labels = esci_forward(
        params, stacked,
        query_input_ids, query_attention_mask,
        product_input_ids, product_attention_mask,
        query_token_type_ids, product_token_type_ids,
        labels,
    )
    jax.block_until_ready((q_emb, p_emb, contig_labels))

    assert q_emb.shape == (B, H) and p_emb.shape == (B, H)
    assert contig_labels.shape == (B,)
    assert bool(jnp.all(jnp.isfinite(q_emb))) and bool(jnp.all(jnp.isfinite(p_emb)))
    # unit-norm check (normalize=True path)
    assert bool(jnp.allclose(jnp.linalg.norm(q_emb, axis=1), 1.0, atol=1e-4))
    assert bool(jnp.allclose(jnp.linalg.norm(p_emb, axis=1), 1.0, atol=1e-4))

    print("KERNEL_OK")
</pallas_src>

<mosaic_0001>
module attributes {stable_mosaic.version = 11 : i64} {
  func.func @encoder_stack_kernel(%arg0: i32, %arg1: memref<4x8x128xf32, #tpu.memory_space<vmem>>, %arg2: memref<4x8xf32, #tpu.memory_space<vmem>>, %arg3: memref<1x128x384xbf16, #tpu.memory_space<vmem>>, %arg4: memref<1x1x384xf32, #tpu.memory_space<vmem>>, %arg5: memref<1x128x128xbf16, #tpu.memory_space<vmem>>, %arg6: memref<1x1x128xf32, #tpu.memory_space<vmem>>, %arg7: memref<1x1x128xf32, #tpu.memory_space<vmem>>, %arg8: memref<1x1x128xf32, #tpu.memory_space<vmem>>, %arg9: memref<1x128x512xbf16, #tpu.memory_space<vmem>>, %arg10: memref<1x1x512xf32, #tpu.memory_space<vmem>>, %arg11: memref<1x512x128xbf16, #tpu.memory_space<vmem>>, %arg12: memref<1x1x128xf32, #tpu.memory_space<vmem>>, %arg13: memref<1x1x128xf32, #tpu.memory_space<vmem>>, %arg14: memref<1x1x128xf32, #tpu.memory_space<vmem>>, %arg15: memref<4x128xf32, #tpu.memory_space<vmem>>, %arg16: memref<4x8x128xf32, #tpu.memory_space<vmem>>) attributes {dimension_semantics = [#tpu.dimension_semantics<arbitrary>], iteration_bounds = array<i64: 2>, scalar_prefetch = 0 : i64, scratch_operands = 1 : i64, tpu.core_type = #tpu.core_type<tc>, window_params = [{pipeline_mode = #tpu.pipeline_mode<synchronous>, transform_indices = @transform_0, window_bounds = array<i64: 4, 8, 128>}, {pipeline_mode = #tpu.pipeline_mode<synchronous>, transform_indices = @transform_1, window_bounds = array<i64: 4, 8>}, {transform_indices = @transform_2, window_bounds = array<i64: 1, 128, 384>}, {transform_indices = @transform_3, window_bounds = array<i64: 1, 1, 384>}, {transform_indices = @transform_4, window_bounds = array<i64: 1, 128, 128>}, {transform_indices = @transform_5, window_bounds = array<i64: 1, 1, 128>}, {transform_indices = @transform_6, window_bounds = array<i64: 1, 1, 128>}, {transform_indices = @transform_7, window_bounds = array<i64: 1, 1, 128>}, {transform_indices = @transform_8, window_bounds = array<i64: 1, 128, 512>}, {transform_indices = @transform_9, window_bounds = array<i64: 1, 1, 512>}, {transform_indices = @transform_10, window_bounds = array<i64: 1, 512, 128>}, {transform_indices = @transform_11, window_bounds = array<i64: 1, 1, 128>}, {transform_indices = @transform_12, window_bounds = array<i64: 1, 1, 128>}, {transform_indices = @transform_13, window_bounds = array<i64: 1, 1, 128>}, {pipeline_mode = #tpu.pipeline_mode<synchronous>, transform_indices = @transform_14, window_bounds = array<i64: 4, 128>}]} {
    %c0_i32 = arith.constant 0 : i32
    %0 = arith.cmpi eq, %arg0, %c0_i32 : i32
    %1 = arith.extui %0 : i1 to i32
    %c0_i32_0 = arith.constant 0 : i32
    %2 = arith.cmpi ne, %1, %c0_i32_0 : i32
    scf.if %2 {
      %c0_76 = arith.constant 0 : index
      %c0_77 = arith.constant 0 : index
      %c0_78 = arith.constant 0 : index
      %169 = vector.load %arg1[%c0_76, %c0_77, %c0_78] : memref<4x8x128xf32, #tpu.memory_space<vmem>>, vector<4x8x128xf32>
      %c0_79 = arith.constant 0 : index
      %c0_80 = arith.constant 0 : index
      %c0_81 = arith.constant 0 : index
      %170 = vector.load %arg16[%c0_79, %c0_80, %c0_81] : memref<4x8x128xf32, #tpu.memory_space<vmem>>, vector<4x8x128xf32>
      tpu.vector_store %arg16[%c0_79, %c0_80, %c0_81], %169 {strides = array<i32>} : memref<4x8x128xf32, #tpu.memory_space<vmem>>, vector<4x8x128xf32>,
    } else {
    }
    %c0 = arith.constant 0 : index
    %c0_1 = arith.constant 0 : index
    %c0_2 = arith.constant 0 : index
    %3 = vector.load %arg16[%c0, %c0_1, %c0_2] : memref<4x8x128xf32, #tpu.memory_space<vmem>>, vector<4x8x128xf32>
    %4 = vector.shape_cast %3 : vector<4x8x128xf32> to vector<32x128xf32>
    %5 = arith.truncf %4 : vector<32x128xf32> to vector<32x128xbf16>
    %c0_3 = arith.constant 0 : index
    %c0_4 = arith.constant 0 : index
    %6 = vector.load %arg2[%c0_3, %c0_4] : memref<4x8xf32, #tpu.memory_space<vmem>>, vector<4x8xf32>
    %cst = arith.constant 1.000000e+00 : f32
    %7 = vector.broadcast %cst : f32 to vector<4x8xf32>
    %8 = arith.subf %7, %6 : vector<4x8xf32>
    %cst_5 = arith.constant -1.000000e+09 : f32
    %9 = vector.broadcast %cst_5 : f32 to vector<4x8xf32>
    %10 = arith.mulf %8, %9 : vector<4x8xf32>
    %c0_6 = arith.constant 0 : index
    %c0_7 = arith.constant 0 : index
    %c0_8 = arith.constant 0 : index
    %11 = vector.load %arg3[%c0_6, %c0_7, %c0_8] : memref<1x128x384xbf16, #tpu.memory_space<vmem>>, vector<1x128x384xbf16>
    %12 = vector.shape_cast %11 : vector<1x128x384xbf16> to vector<128x384xbf16>
    %cst_9 = arith.constant dense<0.000000e+00> : vector<32x384xf32>
    %13 = tpu.matmul %5, %12, %cst_9 {dimension_numbers = #tpu.dot_dimension_numbers<[1], [0], [0], [1], [0, 0, 1, 1], [], []>} : vector<32x128xbf16>, vector<128x384xbf16>, vector<32x384xf32> -> vector<32x384xf32>
    %c0_10 = arith.constant 0 : index
    %c0_11 = arith.constant 0 : index
    %c0_12 = arith.constant 0 : index
    %14 = vector.load %arg4[%c0_10, %c0_11, %c0_12] : memref<1x1x384xf32, #tpu.memory_space<vmem>>, vector<1x1x384xf32>
    %15 = vector.shape_cast %14 : vector<1x1x384xf32> to vector<1x384xf32>
    %16 = vector.broadcast %15 : vector<1x384xf32> to vector<32x384xf32>
    %17 = arith.addf %13, %16 : vector<32x384xf32>
    %18 = vector.extract_strided_slice %17 {offsets = [0, 0], sizes = [32, 128], strides = [1, 1]} : vector<32x384xf32> to vector<32x128xf32>
    %19 = vector.shape_cast %18 : vector<32x128xf32> to vector<4x8x128xf32>
    %20 = vector.extract_strided_slice %17 {offsets = [0, 128], sizes = [32, 128], strides = [1, 1]} : vector<32x384xf32> to vector<32x128xf32>
    %21 = vector.shape_cast %20 : vector<32x128xf32> to vector<4x8x128xf32>
    %22 = vector.extract_strided_slice %17 {offsets = [0, 256], sizes = [32, 128], strides = [1, 1]} : vector<32x384xf32> to vector<32x128xf32>
    %23 = vector.shape_cast %22 : vector<32x128xf32> to vector<4x8x128xf32>
    %c0_13 = arith.constant 0 : index
    %c0_14 = arith.constant 0 : index
    %c0_15 = arith.constant 0 : index
    %24 = vector.load %arg5[%c0_13, %c0_14, %c0_15] : memref<1x128x128xbf16, #tpu.memory_space<vmem>>, vector<1x128x128xbf16>
    %25 = vector.shape_cast %24 : vector<1x128x128xbf16> to vector<128x128xbf16>
    %cst_16 = arith.constant 0.000000e+00 : f32
    %26 = vector.broadcast %cst_16 : f32 to vector<32x128xf32>
    %27 = vector.extract_strided_slice %19 {offsets = [0, 0, 0], sizes = [4, 8, 64], strides = [1, 1, 1]} : vector<4x8x128xf32> to vector<4x8x64xf32>
    %28 = vector.extract_strided_slice %21 {offsets = [0, 0, 0], sizes = [4, 8, 64], strides = [1, 1, 1]} : vector<4x8x128xf32> to vector<4x8x64xf32>
    %29 = vector.extract_strided_slice %23 {offsets = [0, 0, 0], sizes = [4, 8, 64], strides = [1, 1, 1]} : vector<4x8x128xf32> to vector<4x8x64xf32>
    "tpu.trace_start"() <{level = 10 : i32, message = "bqd,bkd->bqk"}> : () -> ()
    %cst_17 = arith.constant dense<0.000000e+00> : vector<4x8x8xf32>
    %30 = tpu.matmul %27, %28, %cst_17 {dimension_numbers = #tpu.dot_dimension_numbers<[2], [2], [1], [1], [0, 0, 0, 1, 1, 1], [0], [0]>} : vector<4x8x64xf32>, vector<4x8x64xf32>, vector<4x8x8xf32> -> vector<4x8x8xf32>
    "tpu.trace_stop"() : () -> ()
    %cst_18 = arith.constant 1.250000e-01 : f32
    %31 = vector.broadcast %cst_18 : f32 to vector<4x8x8xf32>
    %32 = arith.mulf %30, %31 : vector<4x8x8xf32>
    %33 = vector.shape_cast %10 : vector<4x8xf32> to vector<4x1x8xf32>
    %34 = vector.broadcast %33 : vector<4x1x8xf32> to vector<4x8x8xf32>
    %35 = arith.addf %32, %34 : vector<4x8x8xf32>
    %cst_19 = arith.constant dense<0xFF800000> : vector<4x8xf32>
    %36 = vector.multi_reduction <maximumf>, %35, %cst_19 [2] : vector<4x8x8xf32> to vector<4x8xf32>
    %37 = vector.shape_cast %36 : vector<4x8xf32> to vector<4x8x1xf32>
    %38 = vector.broadcast %37 : vector<4x8x1xf32> to vector<4x8x8xf32>
    %39 = arith.subf %35, %38 : vector<4x8x8xf32>
    %40 = math.exp %39 : vector<4x8x8xf32>
    %cst_20 = arith.constant dense<0.000000e+00> : vector<4x8xf32>
    %41 = vector.multi_reduction <add>, %40, %cst_20 [2] : vector<4x8x8xf32> to vector<4x8xf32>
    %42 = vector.shape_cast %41 : vector<4x8xf32> to vector<4x8x1xf32>
    %43 = tpu.reciprocal %42 {approx = true} : vector<4x8x1xf32> -> vector<4x8x1xf32>
    %44 = vector.broadcast %43 : vector<4x8x1xf32> to vector<4x8x8xf32>
    %45 = arith.mulf %40, %44 : vector<4x8x8xf32>
    "tpu.trace_start"() <{level = 10 : i32, message = "bqk,bkd->bqd"}> : () -> ()
    %cst_21 = arith.constant dense<0.000000e+00> : vector<4x8x64xf32>
    %46 = tpu.matmul %45, %29, %cst_21 {dimension_numbers = #tpu.dot_dimension_numbers<[2], [1], [1], [2], [0, 0, 0, 1, 1, 2], [0], [0]>} : vector<4x8x8xf32>, vector<4x8x64xf32>, vector<4x8x64xf32> -> vector<4x8x64xf32>
    "tpu.trace_stop"() : () -> ()
    %47 = vector.shape_cast %46 : vector<4x8x64xf32> to vector<32x64xf32>
    %48 = arith.truncf %47 : vector<32x64xf32> to vector<32x64xbf16>
    %49 = vector.extract_strided_slice %25 {offsets = [0, 0], sizes = [64, 128], strides = [1, 1]} : vector<128x128xbf16> to vector<64x128xbf16>
    %cst_22 = arith.constant dense<0.000000e+00> : vector<32x128xf32>
    %50 = tpu.matmul %48, %49, %cst_22 {dimension_numbers = #tpu.dot_dimension_numbers<[1], [0], [0], [1], [0, 0, 1, 1], [], []>} : vector<32x64xbf16>, vector<64x128xbf16>, vector<32x128xf32> -> vector<32x128xf32>
    %51 = arith.addf %26, %50 : vector<32x128xf32>
    %52 = vector.extract_strided_slice %19 {offsets = [0, 0, 64], sizes = [4, 8, 64], strides = [1, 1, 1]} : vector<4x8x128xf32> to vector<4x8x64xf32>
    %53 = vector.extract_strided_slice %21 {offsets = [0, 0, 64], sizes = [4, 8, 64], strides = [1, 1, 1]} : vector<4x8x128xf32> to vector<4x8x64xf32>
    %54 = vector.extract_strided_slice %23 {offsets = [0, 0, 64], sizes = [4, 8, 64], strides = [1, 1, 1]} : vector<4x8x128xf32> to vector<4x8x64xf32>
    "tpu.trace_start"() <{level = 10 : i32, message = "bqd,bkd->bqk"}> : () -> ()
    %cst_23 = arith.constant dense<0.000000e+00> : vector<4x8x8xf32>
    %55 = tpu.matmul %52, %53, %cst_23 {dimension_numbers = #tpu.dot_dimension_numbers<[2], [2], [1], [1], [0, 0, 0, 1, 1, 1], [0], [0]>} : vector<4x8x64xf32>, vector<4x8x64xf32>, vector<4x8x8xf32> -> vector<4x8x8xf32>
    "tpu.trace_stop"() : () -> ()
    %cst_24 = arith.constant 1.250000e-01 : f32
    %56 = vector.broadcast %cst_24 : f32 to vector<4x8x8xf32>
    %57 = arith.mulf %55, %56 : vector<4x8x8xf32>
    %58 = vector.shape_cast %10 : vector<4x8xf32> to vector<4x1x8xf32>
    %59 = vector.broadcast %58 : vector<4x1x8xf32> to vector<4x8x8xf32>
    %60 = arith.addf %57, %59 : vector<4x8x8xf32>
    %cst_25 = arith.constant dense<0xFF800000> : vector<4x8xf32>
    %61 = vector.multi_reduction <maximumf>, %60, %cst_25 [2] : vector<4x8x8xf32> to vector<4x8xf32>
    %62 = vector.shape_cast %61 : vector<4x8xf32> to vector<4x8x1xf32>
    %63 = vector.broadcast %62 : vector<4x8x1xf32> to vector<4x8x8xf32>
    %64 = arith.subf %60, %63 : vector<4x8x8xf32>
    %65 = math.exp %64 : vector<4x8x8xf32>
    %cst_26 = arith.constant dense<0.000000e+00> : vector<4x8xf32>
    %66 = vector.multi_reduction <add>, %65, %cst_26 [2] : vector<4x8x8xf32> to vector<4x8xf32>
    %67 = vector.shape_cast %66 : vector<4x8xf32> to vector<4x8x1xf32>
    %68 = tpu.reciprocal %67 {approx = true} : vector<4x8x1xf32> -> vector<4x8x1xf32>
    %69 = vector.broadcast %68 : vector<4x8x1xf32> to vector<4x8x8xf32>
    %70 = arith.mulf %65, %69 : vector<4x8x8xf32>
    "tpu.trace_start"() <{level = 10 : i32, message = "bqk,bkd->bqd"}> : () -> ()
    %cst_27 = arith.constant dense<0.000000e+00> : vector<4x8x64xf32>
    %71 = tpu.matmul %70, %54, %cst_27 {dimension_numbers = #tpu.dot_dimension_numbers<[2], [1], [1], [2], [0, 0, 0, 1, 1, 2], [0], [0]>} : vector<4x8x8xf32>, vector<4x8x64xf32>, vector<4x8x64xf32> -> vector<4x8x64xf32>
    "tpu.trace_stop"() : () -> ()
    %72 = vector.shape_cast %71 : vector<4x8x64xf32> to vector<32x64xf32>
    %73 = arith.truncf %72 : vector<32x64xf32> to vector<32x64xbf16>
    %74 = vector.extract_strided_slice %25 {offsets = [64, 0], sizes = [64, 128], strides = [1, 1]} : vector<128x128xbf16> to vector<64x128xbf16>
    %cst_28 = arith.constant dense<0.000000e+00> : vector<32x128xf32>
    %75 = tpu.matmul %73, %74, %cst_28 {dimension_numbers = #tpu.dot_dimension_numbers<[1], [0], [0], [1], [0, 0, 1, 1], [], []>} : vector<32x64xbf16>, vector<64x128xbf16>, vector<32x128xf32> -> vector<32x128xf32>
    %76 = arith.addf %51, %75 : vector<32x128xf32>
    %c0_29 = arith.constant 0 : index
    %c0_30 = arith.constant 0 : index
    %c0_31 = arith.constant 0 : index
    %77 = vector.load %arg6[%c0_29, %c0_30, %c0_31] : memref<1x1x128xf32, #tpu.memory_space<vmem>>, vector<1x1x128xf32>
    %78 = vector.shape_cast %77 : vector<1x1x128xf32> to vector<1x128xf32>
    %79 = vector.broadcast %78 : vector<1x128xf32> to vector<32x128xf32>
    %80 = arith.addf %76, %79 : vector<32x128xf32>
    %81 = arith.addf %4, %80 : vector<32x128xf32>
    %c0_32 = arith.constant 0 : index
    %c0_33 = arith.constant 0 : index
    %c0_34 = arith.constant 0 : index
    %82 = vector.load %arg7[%c0_32, %c0_33, %c0_34] : memref<1x1x128xf32, #tpu.memory_space<vmem>>, vector<1x1x128xf32>
    %83 = vector.shape_cast %82 : vector<1x1x128xf32> to vector<1x128xf32>
    %c0_35 = arith.constant 0 : index
    %c0_36 = arith.constant 0 : index
    %c0_37 = arith.constant 0 : index
    %84 = vector.load %arg8[%c0_35, %c0_36, %c0_37] : memref<1x1x128xf32, #tpu.memory_space<vmem>>, vector<1x1x128xf32>
    %85 = vector.shape_cast %84 : vector<1x1x128xf32> to vector<1x128xf32>
    %cst_38 = arith.constant dense<0.000000e+00> : vector<32xf32>
    %86 = vector.multi_reduction <add>, %81, %cst_38 [1] : vector<32x128xf32> to vector<32xf32>
    %87 = vector.shape_cast %86 : vector<32xf32> to vector<32x1xf32>
    %cst_39 = arith.constant 1.280000e+02 : f32
    %88 = vector.broadcast %cst_39 : f32 to vector<32x1xf32>
    %89 = arith.divf %87, %88 : vector<32x1xf32>
    %90 = vector.broadcast %89 : vector<32x1xf32> to vector<32x128xf32>
    %91 = arith.subf %81, %90 : vector<32x128xf32>
    %92 = arith.mulf %91, %91 : vector<32x128xf32>
    %cst_40 = arith.constant dense<0.000000e+00> : vector<32xf32>
    %93 = vector.multi_reduction <add>, %92, %cst_40 [1] : vector<32x128xf32> to vector<32xf32>
    %94 = vector.shape_cast %93 : vector<32xf32> to vector<32x1xf32>
    %cst_41 = arith.constant 1.280000e+02 : f32
    %95 = vector.broadcast %cst_41 : f32 to vector<32x1xf32>
    %96 = arith.divf %94, %95 : vector<32x1xf32>
    %97 = vector.broadcast %89 : vector<32x1xf32> to vector<32x128xf32>
    %98 = arith.subf %81, %97 : vector<32x128xf32>
    %cst_42 = arith.constant 9.99999996E-13 : f32
    %99 = vector.broadcast %cst_42 : f32 to vector<32x1xf32>
    %100 = arith.addf %96, %99 : vector<32x1xf32>
    %101 = math.rsqrt %100 : vector<32x1xf32>
    %102 = vector.broadcast %101 : vector<32x1xf32> to vector<32x128xf32>
    %103 = arith.mulf %98, %102 : vector<32x128xf32>
    %104 = vector.broadcast %83 : vector<1x128xf32> to vector<32x128xf32>
    %105 = arith.mulf %103, %104 : vector<32x128xf32>
    %106 = vector.broadcast %85 : vector<1x128xf32> to vector<32x128xf32>
    %107 = arith.addf %105, %106 : vector<32x128xf32>
    %108 = arith.truncf %107 : vector<32x128xf32> to vector<32x128xbf16>
    %c0_43 = arith.constant 0 : index
    %c0_44 = arith.constant 0 : index
    %c0_45 = arith.constant 0 : index
    %109 = vector.load %arg9[%c0_43, %c0_44, %c0_45] : memref<1x128x512xbf16, #tpu.memory_space<vmem>>, vector<1x128x512xbf16>
    %110 = vector.shape_cast %109 : vector<1x128x512xbf16> to vector<128x512xbf16>
    %cst_46 = arith.constant dense<0.000000e+00> : vector<32x512xf32>
    %111 = tpu.matmul %108, %110, %cst_46 {dimension_numbers = #tpu.dot_dimension_numbers<[1], [0], [0], [1], [0, 0, 1, 1], [], []>} : vector<32x128xbf16>, vector<128x512xbf16>, vector<32x512xf32> -> vector<32x512xf32>
    %c0_47 = arith.constant 0 : index
    %c0_48 = arith.constant 0 : index
    %c0_49 = arith.constant 0 : index
    %112 = vector.load %arg10[%c0_47, %c0_48, %c0_49] : memref<1x1x512xf32, #tpu.memory_space<vmem>>, vector<1x1x512xf32>
    %113 = vector.shape_cast %112 : vector<1x1x512xf32> to vector<1x512xf32>
    %114 = vector.broadcast %113 : vector<1x512xf32> to vector<32x512xf32>
    %115 = arith.addf %111, %114 : vector<32x512xf32>
    %116 = arith.mulf %115, %115 : vector<32x512xf32>
    %117 = arith.mulf %115, %116 : vector<32x512xf32>
    %cst_50 = arith.constant 4.471500e-02 : f32
    %118 = vector.broadcast %cst_50 : f32 to vector<32x512xf32>
    %119 = arith.mulf %118, %117 : vector<32x512xf32>
    %120 = arith.addf %115, %119 : vector<32x512xf32>
    %cst_51 = arith.constant 0.797884583 : f32
    %121 = vector.broadcast %cst_51 : f32 to vector<32x512xf32>
    %122 = arith.mulf %121, %120 : vector<32x512xf32>
    %123 = math.tanh %122 : vector<32x512xf32>
    %cst_52 = arith.constant 1.000000e+00 : f32
    %124 = vector.broadcast %cst_52 : f32 to vector<32x512xf32>
    %125 = arith.addf %124, %123 : vector<32x512xf32>
    %cst_53 = arith.constant 5.000000e-01 : f32
    %126 = vector.broadcast %cst_53 : f32 to vector<32x512xf32>
    %127 = arith.mulf %126, %125 : vector<32x512xf32>
    %128 = arith.mulf %115, %127 : vector<32x512xf32>
    %129 = arith.truncf %128 : vector<32x512xf32> to vector<32x512xbf16>
    %c0_54 = arith.constant 0 : index
    %c0_55 = arith.constant 0 : index
    %c0_56 = arith.constant 0 : index
    %130 = vector.load %arg11[%c0_54, %c0_55, %c0_56] : memref<1x512x128xbf16, #tpu.memory_space<vmem>>, vector<1x512x128xbf16>
    %131 = vector.shape_cast %130 : vector<1x512x128xbf16> to vector<512x128xbf16>
    %cst_57 = arith.constant dense<0.000000e+00> : vector<32x128xf32>
    %132 = tpu.matmul %129, %131, %cst_57 {dimension_numbers = #tpu.dot_dimension_numbers<[1], [0], [0], [1], [0, 0, 1, 1], [], []>} : vector<32x512xbf16>, vector<512x128xbf16>, vector<32x128xf32> -> vector<32x128xf32>
    %c0_58 = arith.constant 0 : index
    %c0_59 = arith.constant 0 : index
    %c0_60 = arith.constant 0 : index
    %133 = vector.load %arg12[%c0_58, %c0_59, %c0_60] : memref<1x1x128xf32, #tpu.memory_space<vmem>>, vector<1x1x128xf32>
    %134 = vector.shape_cast %133 : vector<1x1x128xf32> to vector<1x128xf32>
    %135 = vector.broadcast %134 : vector<1x128xf32> to vector<32x128xf32>
    %136 = arith.addf %132, %135 : vector<32x128xf32>
    %137 = arith.addf %107, %136 : vector<32x128xf32>
    %c0_61 = arith.constant 0 : index
    %c0_62 = arith.constant 0 : index
    %c0_63 = arith.constant 0 : index
    %138 = vector.load %arg13[%c0_61, %c0_62, %c0_63] : memref<1x1x128xf32, #tpu.memory_space<vmem>>, vector<1x1x128xf32>
    %139 = vector.shape_cast %138 : vector<1x1x128xf32> to vector<1x128xf32>
    %c0_64 = arith.constant 0 : index
    %c0_65 = arith.constant 0 : index
    %c0_66 = arith.constant 0 : index
    %140 = vector.load %arg14[%c0_64, %c0_65, %c0_66] : memref<1x1x128xf32, #tpu.memory_space<vmem>>, vector<1x1x128xf32>
    %141 = vector.shape_cast %140 : vector<1x1x128xf32> to vector<1x128xf32>
    %cst_67 = arith.constant dense<0.000000e+00> : vector<32xf32>
    %142 = vector.multi_reduction <add>, %137, %cst_67 [1] : vector<32x128xf32> to vector<32xf32>
    %143 = vector.shape_cast %142 : vector<32xf32> to vector<32x1xf32>
    %cst_68 = arith.constant 1.280000e+02 : f32
    %144 = vector.broadcast %cst_68 : f32 to vector<32x1xf32>
    %145 = arith.divf %143, %144 : vector<32x1xf32>
    %146 = vector.broadcast %145 : vector<32x1xf32> to vector<32x128xf32>
    %147 = arith.subf %137, %146 : vector<32x128xf32>
    %148 = arith.mulf %147, %147 : vector<32x128xf32>
    %cst_69 = arith.constant dense<0.000000e+00> : vector<32xf32>
    %149 = vector.multi_reduction <add>, %148, %cst_69 [1] : vector<32x128xf32> to vector<32xf32>
    %150 = vector.shape_cast %149 : vector<32xf32> to vector<32x1xf32>
    %cst_70 = arith.constant 1.280000e+02 : f32
    %151 = vector.broadcast %cst_70 : f32 to vector<32x1xf32>
    %152 = arith.divf %150, %151 : vector<32x1xf32>
    %153 = vector.broadcast %145 : vector<32x1xf32> to vector<32x128xf32>
    %154 = arith.subf %137, %153 : vector<32x128xf32>
    %cst_71 = arith.constant 9.99999996E-13 : f32
    %155 = vector.broadcast %cst_71 : f32 to vector<32x1xf32>
    %156 = arith.addf %152, %155 : vector<32x1xf32>
    %157 = math.rsqrt %156 : vector<32x1xf32>
    %158 = vector.broadcast %157 : vector<32x1xf32> to vector<32x128xf32>
    %159 = arith.mulf %154, %158 : vector<32x128xf32>
    %160 = vector.broadcast %139 : vector<1x128xf32> to vector<32x128xf32>
    %161 = arith.mulf %159, %160 : vector<32x128xf32>
    %162 = vector.broadcast %141 : vector<1x128xf32> to vector<32x128xf32>
    %163 = arith.addf %161, %162 : vector<32x128xf32>
    %164 = vector.shape_cast %163 : vector<32x128xf32> to vector<4x8x128xf32>
    %c0_72 = arith.constant 0 : index
    %c0_73 = arith.constant 0 : index
    %c0_74 = arith.constant 0 : index
    %165 = vector.load %arg16[%c0_72, %c0_73, %c0_74] : memref<4x8x128xf32, #tpu.memory_space<vmem>>, vector<4x8x128xf32>
    tpu.vector_store %arg16[%c0_72, %c0_73, %c0_74], %164 {strides = array<i32>} : memref<4x8x128xf32, #tpu.memory_space<vmem>>, vector<4x8x128xf32>,
    %c1_i32 = arith.constant 1 : i32
    %166 = arith.cmpi eq, %arg0, %c1_i32 : i32
    %167 = arith.extui %166 : i1 to i32
    %c0_i32_75 = arith.constant 0 : i32
    %168 = arith.cmpi ne, %167, %c0_i32_75 : i32
    scf.if %168 {
      %169 = vector.shape_cast %163 : vector<32x128xf32> to vector<4x8x128xf32>
      %170 = vector.shape_cast %6 : vector<4x8xf32> to vector<4x8x1xf32>
      %171 = vector.broadcast %170 : vector<4x8x1xf32> to vector<4x8x128xf32>
      %172 = arith.mulf %169, %171 : vector<4x8x128xf32>
      %cst_76 = arith.constant dense<0.000000e+00> : vector<4x128xf32>
      %173 = vector.multi_reduction <add>, %172, %cst_76 [1] : vector<4x8x128xf32> to vector<4x128xf32>
      %cst_77 = arith.constant dense<0.000000e+00> : vector<4x1xf32>
      %174 = vector.multi_reduction <add>, %170, %cst_77 [1] : vector<4x8x1xf32> to vector<4x1xf32>
      %cst_78 = arith.constant 9.99999971E-10 : f32
      %175 = vector.broadcast %cst_78 : f32 to vector<4x1xf32>
      %176 = arith.maximumf %174, %175 : vector<4x1xf32>
      %177 = tpu.reciprocal %176 {approx = true} : vector<4x1xf32> -> vector<4x1xf32>
      %178 = vector.broadcast %177 : vector<4x1xf32> to vector<4x128xf32>
      %179 = arith.mulf %173, %178 : vector<4x128xf32>
      %180 = arith.mulf %179, %179 : vector<4x128xf32>
      %cst_79 = arith.constant dense<0.000000e+00> : vector<4xf32>
      %181 = vector.multi_reduction <add>, %180, %cst_79 [1] : vector<4x128xf32> to vector<4xf32>
      %182 = vector.shape_cast %181 : vector<4xf32> to vector<4x1xf32>
      %cst_80 = arith.constant 1.000000e-24 : f32
      %183 = vector.broadcast %cst_80 : f32 to vector<4x1xf32>
      %184 = arith.maximumf %182, %183 : vector<4x1xf32>
      %185 = math.rsqrt %184 : vector<4x1xf32>
      %186 = vector.broadcast %185 : vector<4x1xf32> to vector<4x128xf32>
      %187 = arith.mulf %179, %186 : vector<4x128xf32>
      %c0_81 = arith.constant 0 : index
      %c0_82 = arith.constant 0 : index
      %188 = vector.load %arg15[%c0_81, %c0_82] : memref<4x128xf32, #tpu.memory_space<vmem>>, vector<4x128xf32>
      tpu.vector_store %arg15[%c0_81, %c0_82], %187 {strides = array<i32>} : memref<4x128xf32, #tpu.memory_space<vmem>>, vector<4x128xf32>,
    } else {
    }
    return
  }
  func.func @transform_0(%arg0: i32) -> (i32, i32, i32) {
    %c0_i32 = arith.constant 0 : i32
    %c0_i32_0 = arith.constant 0 : i32
    %c0_i32_1 = arith.constant 0 : i32
    %c0_i32_2 = arith.constant 0 : i32
    return %c0_i32, %c0_i32_0, %c0_i32_1 : i32, i32, i32
  }
  func.func @transform_1(%arg0: i32) -> (i32, i32) {
    %c0_i32 = arith.constant 0 : i32
    %c0_i32_0 = arith.constant 0 : i32
    %c0_i32_1 = arith.constant 0 : i32
    return %c0_i32, %c0_i32_0 : i32, i32
  }
  func.func @transform_2(%arg0: i32) -> (i32, i32, i32) {
    %c0_i32 = arith.constant 0 : i32
    %c0_i32_0 = arith.constant 0 : i32
    %c0_i32_1 = arith.constant 0 : i32
    return %arg0, %c0_i32, %c0_i32_0 : i32, i32, i32
  }
  func.func @transform_3(%arg0: i32) -> (i32, i32, i32) {
    %c0_i32 = arith.constant 0 : i32
    %c0_i32_0 = arith.constant 0 : i32
    %c0_i32_1 = arith.constant 0 : i32
    return %arg0, %c0_i32, %c0_i32_0 : i32, i32, i32
  }
  func.func @transform_4(%arg0: i32) -> (i32, i32, i32) {
    %c0_i32 = arith.constant 0 : i32
    %c0_i32_0 = arith.constant 0 : i32
    %c0_i32_1 = arith.constant 0 : i32
    return %arg0, %c0_i32, %c0_i32_0 : i32, i32, i32
  }
  func.func @transform_5(%arg0: i32) -> (i32, i32, i32) {
    %c0_i32 = arith.constant 0 : i32
    %c0_i32_0 = arith.constant 0 : i32
    %c0_i32_1 = arith.constant 0 : i32
    return %arg0, %c0_i32, %c0_i32_0 : i32, i32, i32
  }
  func.func @transform_6(%arg0: i32) -> (i32, i32, i32) {
    %c0_i32 = arith.constant 0 : i32
    %c0_i32_0 = arith.constant 0 : i32
    %c0_i32_1 = arith.constant 0 : i32
    return %arg0, %c0_i32, %c0_i32_0 : i32, i32, i32
  }
  func.func @transform_7(%arg0: i32) -> (i32, i32, i32) {
    %c0_i32 = arith.constant 0 : i32
    %c0_i32_0 = arith.constant 0 : i32
    %c0_i32_1 = arith.constant 0 : i32
    return %arg0, %c0_i32, %c0_i32_0 : i32, i32, i32
  }
  func.func @transform_8(%arg0: i32) -> (i32, i32, i32) {
    %c0_i32 = arith.constant 0 : i32
    %c0_i32_0 = arith.constant 0 : i32
    %c0_i32_1 = arith.constant 0 : i32
    return %arg0, %c0_i32, %c0_i32_0 : i32, i32, i32
  }
  func.func @transform_9(%arg0: i32) -> (i32, i32, i32) {
    %c0_i32 = arith.constant 0 : i32
    %c0_i32_0 = arith.constant 0 : i32
    %c0_i32_1 = arith.constant 0 : i32
    return %arg0, %c0_i32, %c0_i32_0 : i32, i32, i32
  }
  func.func @transform_10(%arg0: i32) -> (i32, i32, i32) {
    %c0_i32 = arith.constant 0 : i32
    %c0_i32_0 = arith.constant 0 : i32
    %c0_i32_1 = arith.constant 0 : i32
    return %arg0, %c0_i32, %c0_i32_0 : i32, i32, i32
  }
  func.func @transform_11(%arg0: i32) -> (i32, i32, i32) {
    %c0_i32 = arith.constant 0 : i32
    %c0_i32_0 = arith.constant 0 : i32
    %c0_i32_1 = arith.constant 0 : i32
    return %arg0, %c0_i32, %c0_i32_0 : i32, i32, i32
  }
  func.func @transform_12(%arg0: i32) -> (i32, i32, i32) {
    %c0_i32 = arith.constant 0 : i32
    %c0_i32_0 = arith.constant 0 : i32
    %c0_i32_1 = arith.constant 0 : i32
    return %arg0, %c0_i32, %c0_i32_0 : i32, i32, i32
  }
  func.func @transform_13(%arg0: i32) -> (i32, i32, i32) {
    %c0_i32 = arith.constant 0 : i32
    %c0_i32_0 = arith.constant 0 : i32
    %c0_i32_1 = arith.constant 0 : i32
    return %arg0, %c0_i32, %c0_i32_0 : i32, i32, i32
  }
  func.func @transform_14(%arg0: i32) -> (i32, i32) {
    %c0_i32 = arith.constant 0 : i32
    %c0_i32_0 = arith.constant 0 : i32
    %c0_i32_1 = arith.constant 0 : i32
    return %c0_i32, %c0_i32_0 : i32, i32
  }
}

</mosaic_0001>

<llo_original>
// kernel: tpu_custom_call.1
$region0: #{tpu_custom_call.1}
  #allocation0 [shape = 'u32[]', space=smem, size = 0x4, offset = 0x4, fixed_abs, tag = 'smem constant byte address 0x4 - core index']
  #allocation1 [shape = 'u32[144,128]{1,0:T(1,128)}', space=vmem, size = 0x12000, scoped, tag = 'internal scratch']
  #allocation2 [shape = 'f32[4,8,128]{2,1,0:T(8,128)}', space=vmem, size = 0x4000, scoped, tag = 'scratch operand']
  %s0 = inlined_call_operand.hbm [shape: f32[4,8,128], index: 0, kind: input, shape index: {}]
  %s1 = inlined_call_operand.hbm [shape: f32[4,8], index: 1, kind: input, shape index: {}]
  %s2 = inlined_call_operand.hbm [shape: bf16[2,128,384], index: 2, kind: input, shape index: {}]
  %s3 = inlined_call_operand.vmem [shape: f32[2,1,384], index: 3, kind: input, shape index: {}]
  %s4 = inlined_call_operand.hbm [shape: bf16[2,128,128], index: 4, kind: input, shape index: {}]
  %s5 = inlined_call_operand.vmem [shape: f32[2,1,128], index: 5, kind: input, shape index: {}]
  %s6 = inlined_call_operand.vmem [shape: f32[2,1,128], index: 6, kind: input, shape index: {}]
  %s7 = inlined_call_operand.vmem [shape: f32[2,1,128], index: 7, kind: input, shape index: {}]
  %s8 = inlined_call_operand.hbm [shape: bf16[2,128,512], index: 8, kind: input, shape index: {}]
  %s9 = inlined_call_operand.vmem [shape: f32[2,1,512], index: 9, kind: input, shape index: {}]
  %s10 = inlined_call_operand.hbm [shape: bf16[2,512,128], index: 10, kind: input, shape index: {}]
  %s11 = inlined_call_operand.vmem [shape: f32[2,1,128], index: 11, kind: input, shape index: {}]
  %s12 = inlined_call_operand.vmem [shape: f32[2,1,128], index: 12, kind: input, shape index: {}]
  %s13 = inlined_call_operand.vmem [shape: f32[2,1,128], index: 13, kind: input, shape index: {}]
  %s14 = inlined_call_operand.hbm [shape: f32[4,128], index: 14, kind: output, shape index: {}]
  %s15 = sld [smem:[#allocation0]]
  $region121: #{tpu_custom_call.1} parent=0
    _
  %s17 = ssub.s32 1, %s15
  %s18 = scalar_select 0, %s17, %s15
  $region1: #{tpu_custom_call.1} parent=0
    #allocation3 [shape = 'u8[16384]{0}', space=vmem, size = 0x4000, scoped, tag = 'input window, operand 0, single buffered']
    #allocation4 [shape = 's32[2]{0}', space=sflag, size = 0x8, scoped, tag = 'scoped memory for tpu_custom_call.1']
    #allocation5 [shape = 's32[2]{0}', space=sflag, size = 0x8, scoped, tag = 'scoped memory for tpu_custom_call.1']
    #allocation6 [shape = 'u8[2048]{0}', space=vmem, size = 0x800, scoped, tag = 'input window, operand 1, single buffered']
    #allocation7 [shape = 's32[1]{0}', space=sflag, size = 0x4, scoped, tag = 'scoped memory for tpu_custom_call.1']
    #allocation8 [shape = 'u8[196608]{0}', space=vmem, size = 0x30000, scoped, tag = 'input window, operand 2']
    #allocation9 [shape = 'u8[65536]{0}', space=vmem, size = 0x10000, scoped, tag = 'input window, operand 4']
    #allocation10 [shape = 'u8[262144]{0}', space=vmem, size = 0x40000, scoped, tag = 'input window, operand 8']
    #allocation11 [shape = 'u8[262144]{0}', space=vmem, size = 0x40000, scoped, tag = 'input window, operand 10']
    #allocation12 [shape = 'u8[2048]{0}', space=vmem, size = 0x800, scoped, tag = 'output window, operand 0, single buffered']
    %19 = vsyncpa [#allocation4], 0
    %20 = vsyncpa [#allocation7], 0
    %21 = vsyncpa [#allocation5], 0
    loop: start=0, step=1, limit=4
    $region2: #{tpu_custom_call.1} parent=1 // loop_pre_header
      _
    $region3: #{tpu_custom_call.1} parent=1 // loop_header
      %s23 = sphi 0, %s27
      %p24 = scmp.ge.s32.totalorder %s23, 4
      %s31 = sphi 0, %s31
      %s33 = sphi 0, %s31
      %s34 = sphi 0, %s33
      %s48 = sphi 0, %s34
      %s52 = sphi 0, %s52
      %s54 = sphi 0, %s52
      %s55 = sphi 0, %s54
      %s69 = sphi 0, %s55
      %s75 = sphi 0, %s77
      %s78 = sphi 0, %s75
      %s79 = sphi 0, %s78
      %s95 = sphi 0, %s79
      %s101 = sphi 0, %s103
      %s104 = sphi 0, %s101
      %s105 = sphi 0, %s104
      %s121 = sphi 0, %s105
      %s127 = sphi 0, %s129
      %s130 = sphi 0, %s127
      %s131 = sphi 0, %s130
      %s147 = sphi 0, %s131
      %s153 = sphi 0, %s155
      %s156 = sphi 0, %s153
      %s157 = sphi 0, %s156
      %s173 = sphi 0, %s157
      %s179 = sphi 0, %s181
      %s182 = sphi 0, %s179
      %s183 = sphi 0, %s182
      %s199 = sphi 0, %s183
      %s205 = sphi 0, %s207
      %s208 = sphi 0, %s205
      %s209 = sphi 0, %s208
      %s225 = sphi 0, %s209
      %s231 = sphi 0, %s233
      %s234 = sphi 0, %s231
      %s235 = sphi 0, %s234
      %s251 = sphi 0, %s235
      %s257 = sphi 0, %s259
      %s260 = sphi 0, %s257
      %s261 = sphi 0, %s260
      %s277 = sphi 0, %s261
      %s283 = sphi 0, %s285
      %s286 = sphi 0, %s283
      %s287 = sphi 0, %s286
      %s303 = sphi 0, %s287
      %s309 = sphi 0, %s311
      %s312 = sphi 0, %s309
      %s313 = sphi 0, %s312
      %s329 = sphi 0, %s313
      %s335 = sphi 0, %s337
      %s338 = sphi 0, %s335
      %s339 = sphi 0, %s338
      %s355 = sphi 0, %s339
      %s361 = sphi 0, %s363
      %s364 = sphi 0, %s361
      %s365 = sphi 0, %s364
      %s381 = sphi 0, %s365
      %s385 = sphi 0, %s385
      %s387 = sphi 0, %s385
      %s388 = sphi 0, %s387
      %s402 = sphi 0, %s388
    $region4: #{tpu_custom_call.1} parent=1 // loop_header_branch
      %26 = sbr.rel (%p24) target = $region8
    $region5: #{tpu_custom_call.1} parent=1 // loop_body
      %s28 = ssub.s32 %s23, 1
      %s29 = ssub.s32 %s23, 2
      %s30 = sadd.s32 %s23, 1
      %s32 = sadd.s32 %s31, 1
      %p35 = scmp.eq.s32.totalorder %s23, 1
      %p36 = scmp.ne.s32.totalorder %s31, %s33
      %p37 = scmp.eq.s32.totalorder %s23, 0
      %p38 = por %p36, %p37
      %p39 = scmp.ne.s32.totalorder %s31, %s33
      %p40 = scmp.eq.s32.totalorder %s28, 1
      %p41 = por %p39, %p40
      %p42 = scmp.ne.s32.totalorder %s33, %s34
      %p43 = scmp.eq.s32.totalorder %s28, 0
      %p44 = por %p42, %p43
      %p45 = scmp.ne.s32.totalorder %s33, %s34
      %p46 = scmp.eq.s32.totalorder %s29, 1
      %p47 = por %p45, %p46
      %p49 = scmp.ne.s32.totalorder %s34, %s48
      %p50 = scmp.eq.s32.totalorder %s29, 0
      %p51 = por %p49, %p50
      %s53 = sadd.s32 %s52, 1
      %p56 = scmp.eq.s32.totalorder %s23, 1
      %p57 = scmp.ne.s32.totalorder %s52, %s54
      %p58 = scmp.eq.s32.totalorder %s23, 0
      %p59 = por %p57, %p58
      %p60 = scmp.ne.s32.totalorder %s52, %s54
      %p61 = scmp.eq.s32.totalorder %s28, 1
      %p62 = por %p60, %p61
      %p63 = scmp.ne.s32.totalorder %s54, %s55
      %p64 = scmp.eq.s32.totalorder %s28, 0
      %p65 = por %p63, %p64
      %p66 = scmp.ne.s32.totalorder %s54, %s55
      %p67 = scmp.eq.s32.totalorder %s29, 1
      %p68 = por %p66, %p67
      %p70 = scmp.ne.s32.totalorder %s55, %s69
      %p71 = scmp.eq.s32.totalorder %s29, 0
      %p72 = por %p70, %p71
      %s73 = ssub.s32 %s23, %s30
      %p74 = scmp.eq.s32.totalorder %s73, 0
      %s76 = sadd.s32 %s75, 1
      %s77 = scalar_select %p74, %s75, %s76
      %p80 = pneg %p74
      %p81 = scmp.eq.s32.totalorder %s23, 1
      %p82 = por %p80, %p81
      %p83 = scmp.ne.s32.totalorder %s75, %s78
      %p84 = scmp.eq.s32.totalorder %s23, 0
      %p85 = por %p83, %p84
      %p86 = scmp.ne.s32.totalorder %s75, %s78
      %p87 = scmp.eq.s32.totalorder %s28, 1
      %p88 = por %p86, %p87
      %p89 = scmp.ne.s32.totalorder %s78, %s79
      %p90 = scmp.eq.s32.totalorder %s28, 0
      %p91 = por %p89, %p90
      %p92 = scmp.ne.s32.totalorder %s78, %s79
      %p93 = scmp.eq.s32.totalorder %s29, 1
      %p94 = por %p92, %p93
      %p96 = scmp.ne.s32.totalorder %s79, %s95
      %p97 = scmp.eq.s32.totalorder %s29, 0
      %p98 = por %p96, %p97
      %s99 = ssub.s32 %s23, %s30
      %p100 = scmp.eq.s32.totalorder %s99, 0
      %s102 = sadd.s32 %s101, 1
      %s103 = scalar_select %p100, %s101, %s102
      %p106 = pneg %p100
      %p107 = scmp.eq.s32.totalorder %s23, 1
      %p108 = por %p106, %p107
      %p109 = scmp.ne.s32.totalorder %s101, %s104
      %p110 = scmp.eq.s32.totalorder %s23, 0
      %p111 = por %p109, %p110
      %p112 = scmp.ne.s32.totalorder %s101, %s104
      %p113 = scmp.eq.s32.totalorder %s28, 1
      %p114 = por %p112, %p113
      %p115 = scmp.ne.s32.totalorder %s104, %s105
      %p116 = scmp.eq.s32.totalorder %s28, 0
      %p117 = por %p115, %p116
      %p118 = scmp.ne.s32.totalorder %s104, %s105
      %p119 = scmp.eq.s32.totalorder %s29, 1
      %p120 = por %p118, %p119
      %p122 = scmp.ne.s32.totalorder %s105, %s121
      %p123 = scmp.eq.s32.totalorder %s29, 0
      %p124 = por %p122, %p123
      %s125 = ssub.s32 %s23, %s30
      %p126 = scmp.eq.s32.totalorder %s125, 0
      %s128 = sadd.s32 %s127, 1
      %s129 = scalar_select %p126, %s127, %s128
      %p132 = pneg %p126
      %p133 = scmp.eq.s32.totalorder %s23, 1
      %p134 = por %p132, %p133
      %p135 = scmp.ne.s32.totalorder %s127, %s130
      %p136 = scmp.eq.s32.totalorder %s23, 0
      %p137 = por %p135, %p136
      %p138 = scmp.ne.s32.totalorder %s127, %s130
      %p139 = scmp.eq.s32.totalorder %s28, 1
      %p140 = por %p138, %p139
      %p141 = scmp.ne.s32.totalorder %s130, %s131
      %p142 = scmp.eq.s32.totalorder %s28, 0
      %p143 = por %p141, %p142
      %p144 = scmp.ne.s32.totalorder %s130, %s131
      %p145 = scmp.eq.s32.totalorder %s29, 1
      %p146 = por %p144, %p145
      %p148 = scmp.ne.s32.totalorder %s131, %s147
      %p149 = scmp.eq.s32.totalorder %s29, 0
      %p150 = por %p148, %p149
      %s151 = ssub.s32 %s23, %s30
      %p152 = scmp.eq.s32.totalorder %s151, 0
      %s154 = sadd.s32 %s153, 1
      %s155 = scalar_select %p152, %s153, %s154
      %p158 = pneg %p152
      %p159 = scmp.eq.s32.totalorder %s23, 1
      %p160 = por %p158, %p159
      %p161 = scmp.ne.s32.totalorder %s153, %s156
      %p162 = scmp.eq.s32.totalorder %s23, 0
      %p163 = por %p161, %p162
      %p164 = scmp.ne.s32.totalorder %s153, %s156
      %p165 = scmp.eq.s32.totalorder %s28, 1
      %p166 = por %p164, %p165
      %p167 = scmp.ne.s32.totalorder %s156, %s157
      %p168 = scmp.eq.s32.totalorder %s28, 0
      %p169 = por %p167, %p168
      %p170 = scmp.ne.s32.totalorder %s156, %s157
      %p171 = scmp.eq.s32.totalorder %s29, 1
      %p172 = por %p170, %p171
      %p174 = scmp.ne.s32.totalorder %s157, %s173
      %p175 = scmp.eq.s32.totalorder %s29, 0
      %p176 = por %p174, %p175
      %s177 = ssub.s32 %s23, %s30
      %p178 = scmp.eq.s32.totalorder %s177, 0
      %s180 = sadd.s32 %s179, 1
      %s181 = scalar_select %p178, %s179, %s180
      %p184 = pneg %p178
      %p185 = scmp.eq.s32.totalorder %s23, 1
      %p186 = por %p184, %p185
      %p187 = scmp.ne.s32.totalorder %s179, %s182
      %p188 = scmp.eq.s32.totalorder %s23, 0
      %p189 = por %p187, %p188
      %p190 = scmp.ne.s32.totalorder %s179, %s182
      %p191 = scmp.eq.s32.totalorder %s28, 1
      %p192 = por %p190, %p191
      %p193 = scmp.ne.s32.totalorder %s182, %s183
      %p194 = scmp.eq.s32.totalorder %s28, 0
      %p195 = por %p193, %p194
      %p196 = scmp.ne.s32.totalorder %s182, %s183
      %p197 = scmp.eq.s32.totalorder %s29, 1
      %p198 = por %p196, %p197
      %p200 = scmp.ne.s32.totalorder %s183, %s199
      %p201 = scmp.eq.s32.totalorder %s29, 0
      %p202 = por %p200, %p201
      %s203 = ssub.s32 %s23, %s30
      %p204 = scmp.eq.s32.totalorder %s203, 0
      %s206 = sadd.s32 %s205, 1
      %s207 = scalar_select %p204, %s205, %s206
      %p210 = pneg %p204
      %p211 = scmp.eq.s32.totalorder %s23, 1
      %p212 = por %p210, %p211
      %p213 = scmp.ne.s32.totalorder %s205, %s208
      %p214 = scmp.eq.s32.totalorder %s23, 0
      %p215 = por %p213, %p214
      %p216 = scmp.ne.s32.totalorder %s205, %s208
      %p217 = scmp.eq.s32.totalorder %s28, 1
      %p218 = por %p216, %p217
      %p219 = scmp.ne.s32.totalorder %s208, %s209
      %p220 = scmp.eq.s32.totalorder %s28, 0
      %p221 = por %p219, %p220
      %p222 = scmp.ne.s32.totalorder %s208, %s209
      %p223 = scmp.eq.s32.totalorder %s29, 1
      %p224 = por %p222, %p223
      %p226 = scmp.ne.s32.totalorder %s209, %s225
      %p227 = scmp.eq.s32.totalorder %s29, 0
      %p228 = por %p226, %p227
      %s229 = ssub.s32 %s23, %s30
      %p230 = scmp.eq.s32.totalorder %s229, 0
      %s232 = sadd.s32 %s231, 1
      %s233 = scalar_select %p230, %s231, %s232
      %p236 = pneg %p230
      %p237 = scmp.eq.s32.totalorder %s23, 1
      %p238 = por %p236, %p237
      %p239 = scmp.ne.s32.totalorder %s231, %s234
      %p240 = scmp.eq.s32.totalorder %s23, 0
      %p241 = por %p239, %p240
      %p242 = scmp.ne.s32.totalorder %s231, %s234
      %p243 = scmp.eq.s32.totalorder %s28, 1
      %p244 = por %p242, %p243
      %p245 = scmp.ne.s32.totalorder %s234, %s235
      %p246 = scmp.eq.s32.totalorder %s28, 0
      %p247 = por %p245, %p246
      %p248 = scmp.ne.s32.totalorder %s234, %s235
      %p249 = scmp.eq.s32.totalorder %s29, 1
      %p250 = por %p248, %p249
      %p252 = scmp.ne.s32.totalorder %s235, %s251
      %p253 = scmp.eq.s32.totalorder %s29, 0
      %p254 = por %p252, %p253
      %s255 = ssub.s32 %s23, %s30
      %p256 = scmp.eq.s32.totalorder %s255, 0
      %s258 = sadd.s32 %s257, 1
      %s259 = scalar_select %p256, %s257, %s258
      %p262 = pneg %p256
      %p263 = scmp.eq.s32.totalorder %s23, 1
      %p264 = por %p262, %p263
      %p265 = scmp.ne.s32.totalorder %s257, %s260
      %p266 = scmp.eq.s32.totalorder %s23, 0
      %p267 = por %p265, %p266
      %p268 = scmp.ne.s32.totalorder %s257, %s260
      %p269 = scmp.eq.s32.totalorder %s28, 1
      %p270 = por %p268, %p269
      %p271 = scmp.ne.s32.totalorder %s260, %s261
      %p272 = scmp.eq.s32.totalorder %s28, 0
      %p273 = por %p271, %p272
      %p274 = scmp.ne.s32.totalorder %s260, %s261
      %p275 = scmp.eq.s32.totalorder %s29, 1
      %p276 = por %p274, %p275
      %p278 = scmp.ne.s32.totalorder %s261, %s277
      %p279 = scmp.eq.s32.totalorder %s29, 0
      %p280 = por %p278, %p279
      %s281 = ssub.s32 %s23, %s30
      %p282 = scmp.eq.s32.totalorder %s281, 0
      %s284 = sadd.s32 %s283, 1
      %s285 = scalar_select %p282, %s283, %s284
      %p288 = pneg %p282
      %p289 = scmp.eq.s32.totalorder %s23, 1
      %p290 = por %p288, %p289
      %p291 = scmp.ne.s32.totalorder %s283, %s286
      %p292 = scmp.eq.s32.totalorder %s23, 0
      %p293 = por %p291, %p292
      %p294 = scmp.ne.s32.totalorder %s283, %s286
      %p295 = scmp.eq.s32.totalorder %s28, 1
      %p296 = por %p294, %p295
      %p297 = scmp.ne.s32.totalorder %s286, %s287
      %p298 = scmp.eq.s32.totalorder %s28, 0
      %p299 = por %p297, %p298
      %p300 = scmp.ne.s32.totalorder %s286, %s287
      %p301 = scmp.eq.s32.totalorder %s29, 1
      %p302 = por %p300, %p301
      %p304 = scmp.ne.s32.totalorder %s287, %s303
      %p305 = scmp.eq.s32.totalorder %s29, 0
      %p306 = por %p304, %p305
      %s307 = ssub.s32 %s23, %s30
      %p308 = scmp.eq.s32.totalorder %s307, 0
      %s310 = sadd.s32 %s309, 1
      %s311 = scalar_select %p308, %s309, %s310
      %p314 = pneg %p308
      %p315 = scmp.eq.s32.totalorder %s23, 1
      %p316 = por %p314, %p315
      %p317 = scmp.ne.s32.totalorder %s309, %s312
      %p318 = scmp.eq.s32.totalorder %s23, 0
      %p319 = por %p317, %p318
      %p320 = scmp.ne.s32.totalorder %s309, %s312
      %p321 = scmp.eq.s32.totalorder %s28, 1
      %p322 = por %p320, %p321
      %p323 = scmp.ne.s32.totalorder %s312, %s313
      %p324 = scmp.eq.s32.totalorder %s28, 0
      %p325 = por %p323, %p324
      %p326 = scmp.ne.s32.totalorder %s312, %s313
      %p327 = scmp.eq.s32.totalorder %s29, 1
      %p328 = por %p326, %p327
      %p330 = scmp.ne.s32.totalorder %s313, %s329
      %p331 = scmp.eq.s32.totalorder %s29, 0
      %p332 = por %p330, %p331
      %s333 = ssub.s32 %s23, %s30
      %p334 = scmp.eq.s32.totalorder %s333, 0
      %s336 = sadd.s32 %s335, 1
      %s337 = scalar_select %p334, %s335, %s336
      %p340 = pneg %p334
      %p341 = scmp.eq.s32.totalorder %s23, 1
      %p342 = por %p340, %p341
      %p343 = scmp.ne.s32.totalorder %s335, %s338
      %p344 = scmp.eq.s32.totalorder %s23, 0
      %p345 = por %p343, %p344
      %p346 = scmp.ne.s32.totalorder %s335, %s338
      %p347 = scmp.eq.s32.totalorder %s28, 1
      %p348 = por %p346, %p347
      %p349 = scmp.ne.s32.totalorder %s338, %s339
      %p350 = scmp.eq.s32.totalorder %s28, 0
      %p351 = por %p349, %p350
      %p352 = scmp.ne.s32.totalorder %s338, %s339
      %p353 = scmp.eq.s32.totalorder %s29, 1
      %p354 = por %p352, %p353
      %p356 = scmp.ne.s32.totalorder %s339, %s355
      %p357 = scmp.eq.s32.totalorder %s29, 0
      %p358 = por %p356, %p357
      %s359 = ssub.s32 %s23, %s30
      %p360 = scmp.eq.s32.totalorder %s359, 0
      %s362 = sadd.s32 %s361, 1
      %s363 = scalar_select %p360, %s361, %s362
      %p366 = pneg %p360
      %p367 = scmp.eq.s32.totalorder %s23, 1
      %p368 = por %p366, %p367
      %p369 = scmp.ne.s32.totalorder %s361, %s364
      %p370 = scmp.eq.s32.totalorder %s23, 0
      %p371 = por %p369, %p370
      %p372 = scmp.ne.s32.totalorder %s361, %s364
      %p373 = scmp.eq.s32.totalorder %s28, 1
      %p374 = por %p372, %p373
      %p375 = scmp.ne.s32.totalorder %s364, %s365
      %p376 = scmp.eq.s32.totalorder %s28, 0
      %p377 = por %p375, %p376
      %p378 = scmp.ne.s32.totalorder %s364, %s365
      %p379 = scmp.eq.s32.totalorder %s29, 1
      %p380 = por %p378, %p379
      %p382 = scmp.ne.s32.totalorder %s365, %s381
      %p383 = scmp.eq.s32.totalorder %s29, 0
      %p384 = por %p382, %p383
      %s386 = sadd.s32 %s385, 1
      %p389 = scmp.eq.s32.totalorder %s23, 1
      %p390 = scmp.ne.s32.totalorder %s385, %s387
      %p391 = scmp.eq.s32.totalorder %s23, 0
      %p392 = por %p390, %p391
      %p393 = scmp.ne.s32.totalorder %s385, %s387
      %p394 = scmp.eq.s32.totalorder %s28, 1
      %p395 = por %p393, %p394
      %p396 = scmp.ne.s32.totalorder %s387, %s388
      %p397 = scmp.eq.s32.totalorder %s28, 0
      %p398 = por %p396, %p397
      %p399 = scmp.ne.s32.totalorder %s387, %s388
      %p400 = scmp.eq.s32.totalorder %s29, 1
      %p401 = por %p399, %p400
      %p403 = scmp.ne.s32.totalorder %s388, %s402
      %p404 = scmp.eq.s32.totalorder %s29, 0
      %p405 = por %p403, %p404
      %p406 = scmp.le.s32.totalorder 1, %s23
      %p407 = scmp.lt.s32.totalorder %s23, 3
      %p408 = pnand %p406, %p407
      %p409 = pneg %p408
      // Predicated region
      $region9: #{tpu_custom_call.1} parent=5 // pred_check
        _
      $region10: #{tpu_custom_call.1} parent=5 // pred_check_branch
        %411 = sbr.rel (%p408) target = $region12
      $region11: #{tpu_custom_call.1} parent=5 // pred_region
        %s412 = ssub.s32 %s23, 1
        // Predicated region
        $region13: #{tpu_custom_call.1} parent=11 // pred_check
          %p413 = pneg %p44
        $region14: #{tpu_custom_call.1} parent=11 // pred_check_branch
          %415 = sbr.rel (%p413) target = $region16
        $region15: #{tpu_custom_call.1} parent=11 // pred_region
          %s417 = ssub.s32 512, 512
          %418 = vsyncadd [#allocation4], %s417
          %s419 = sshll.u32 [#allocation3], 4
          %s420 = int_to_ptr.vmem [resolvable:$true] %s419
          %425 = dma.hbm_to_vmem [thread:$0]  %s0, 512, %s420, [#allocation4], 128, 128, 8
        $region16: #{tpu_custom_call.1} parent=11 // pred_fallthru
          _
        // Predicated region
        $region17: #{tpu_custom_call.1} parent=11 // pred_check
          %p426 = pneg %p65
        $region18: #{tpu_custom_call.1} parent=11 // pred_check_branch
          %428 = sbr.rel (%p426) target = $region20
        $region19: #{tpu_custom_call.1} parent=11 // pred_region
          %s430 = ssub.s32 64, 64
          %431 = vsyncadd [#allocation7], %s430
          %s433 = sshll.u32 [#allocation6], 4
          %s434 = int_to_ptr.vmem [resolvable:$true] %s433
          %436 = dma.hbm_to_vmem [thread:$0]  %s1, 64, %s434, [#allocation7]
        $region20: #{tpu_custom_call.1} parent=11 // pred_fallthru
          _
      $region12: #{tpu_custom_call.1} parent=5 // pred_fallthru
        _
      %p437 = scmp.lt.s32.totalorder %s23, 2
      // Predicated region
      $region21: #{tpu_custom_call.1} parent=5 // pred_check
        %p438 = pneg %p437
      $region22: #{tpu_custom_call.1} parent=5 // pred_check_branch
        %440 = sbr.rel (%p438) target = $region24
      $region23: #{tpu_custom_call.1} parent=5 // pred_region
        // Predicated region
        $region25: #{tpu_custom_call.1} parent=23 // pred_check
          %p441 = pneg %p85
        $region26: #{tpu_custom_call.1} parent=23 // pred_check_branch
          %443 = sbr.rel (%p441) target = $region28
        $region27: #{tpu_custom_call.1} parent=23 // pred_region
          %s444 = sand.u32 %s23, 1
          %s445 = scalar_lea.sflag [#allocation4], %s444
          %s446 = sand.u32 %s75, 1
          %s447 = smul.addr %s446, 192
          %s448 = scalar_lea.vmem [#allocation8], %s447
          %s450 = ssub.s32 3072, 3072
          %451 = vsyncadd %s445, %s450
          %s452 = smul.addr %s23, 48
          %s453 = smul.addr %s452, 64
          %s454 = scalar_lea.hbm %s2, %s453
          %s455 = sshll.u32 %s448, 4
          %s456 = int_to_ptr.vmem [resolvable:$true] %s455
          %461 = dma.hbm_to_vmem [thread:$0]  %s454, 3072, %s456, %s445, 192, 192, 12
        $region28: #{tpu_custom_call.1} parent=23 // pred_fallthru
          _
        // Predicated region
        $region29: #{tpu_custom_call.1} parent=23 // pred_check
          %p462 = pneg %p111
        $region30: #{tpu_custom_call.1} parent=23 // pred_check_branch
          %464 = sbr.rel (%p462) target = $region32
        $region31: #{tpu_custom_call.1} parent=23 // pred_region
          %p465 = scmp.lt.s32.totalorder %s23, 1
          %s466 = scalar_select %p465, %s23, 1
          %s467 = smul.addr %s466, 3
          %s468 = scalar_lea.vmem %s3, %s467
        $region32: #{tpu_custom_call.1} parent=23 // pred_fallthru
          _
        // Predicated region
        $region33: #{tpu_custom_call.1} parent=23 // pred_check
          %p469 = pneg %p137
        $region34: #{tpu_custom_call.1} parent=23 // pred_check_branch
          %471 = sbr.rel (%p469) target = $region36
        $region35: #{tpu_custom_call.1} parent=23 // pred_region
          %s472 = sand.u32 %s23, 1
          %s473 = scalar_lea.sflag [#allocation4], %s472
          %s474 = sand.u32 %s127, 1
          %s475 = smul.addr %s474, 64
          %s476 = scalar_lea.vmem [#allocation9], %s475
          %s478 = ssub.s32 1024, 1024
          %479 = vsyncadd %s473, %s478
          %s480 = smul.addr %s23, 16
          %s481 = smul.addr %s480, 64
          %s482 = scalar_lea.hbm %s4, %s481
          %s483 = sshll.u32 %s476, 4
          %s484 = int_to_ptr.vmem [resolvable:$true] %s483
          %489 = dma.hbm_to_vmem [thread:$0]  %s482, 1024, %s484, %s473, 64, 64, 4
        $region36: #{tpu_custom_call.1} parent=23 // pred_fallthru
          _
        // Predicated region
        $region37: #{tpu_custom_call.1} parent=23 // pred_check
          %p490 = pneg %p163
        $region38: #{tpu_custom_call.1} parent=23 // pred_check_branch
          %492 = sbr.rel (%p490) target = $region40
        $region39: #{tpu_custom_call.1} parent=23 // pred_region
          %p493 = scmp.lt.s32.totalorder %s23, 1
          %s494 = scalar_select %p493, %s23, 1
          %s495 = scalar_lea.vmem %s5, %s494
        $region40: #{tpu_custom_call.1} parent=23 // pred_fallthru
          _
        // Predicated region
        $region41: #{tpu_custom_call.1} parent=23 // pred_check
          %p496 = pneg %p189
        $region42: #{tpu_custom_call.1} parent=23 // pred_check_branch
          %498 = sbr.rel (%p496) target = $region44
        $region43: #{tpu_custom_call.1} parent=23 // pred_region
          %p499 = scmp.lt.s32.totalorder %s23, 1
          %s500 = scalar_select %p499, %s23, 1
          %s501 = scalar_lea.vmem %s6, %s500
        $region44: #{tpu_custom_call.1} parent=23 // pred_fallthru
          _
        // Predicated region
        $region45: #{tpu_custom_call.1} parent=23 // pred_check
          %p502 = pneg %p215
        $region46: #{tpu_custom_call.1} parent=23 // pred_check_branch
          %504 = sbr.rel (%p502) target = $region48
        $region47: #{tpu_custom_call.1} parent=23 // pred_region
          %p505 = scmp.lt.s32.totalorder %s23, 1
          %s506 = scalar_select %p505, %s23, 1
          %s507 = scalar_lea.vmem %s7, %s506
        $region48: #{tpu_custom_call.1} parent=23 // pred_fallthru
          _
        // Predicated region
        $region49: #{tpu_custom_call.1} parent=23 // pred_check
          %p508 = pneg %p241
        $region50: #{tpu_custom_call.1} parent=23 // pred_check_branch
          %510 = sbr.rel (%p508) target = $region52
        $region51: #{tpu_custom_call.1} parent=23 // pred_region
          %s511 = sand.u32 %s23, 1
          %s512 = scalar_lea.sflag [#allocation4], %s511
          %s513 = sand.u32 %s231, 1
          %s514 = smul.addr %s513, 256
          %s515 = scalar_lea.vmem [#allocation10], %s514
          %s517 = ssub.s32 4096, 4096
          %518 = vsyncadd %s512, %s517
          %s519 = smul.addr %s23, 64
          %s520 = smul.addr %s519, 64
          %s521 = scalar_lea.hbm %s8, %s520
          %s522 = sshll.u32 %s515, 4
          %s523 = int_to_ptr.vmem [resolvable:$true] %s522
          %528 = dma.hbm_to_vmem [thread:$0]  %s521, 4096, %s523, %s512, 256, 256, 16
        $region52: #{tpu_custom_call.1} parent=23 // pred_fallthru
          _
        // Predicated region
        $region53: #{tpu_custom_call.1} parent=23 // pred_check
          %p529 = pneg %p267
        $region54: #{tpu_custom_call.1} parent=23 // pred_check_branch
          %531 = sbr.rel (%p529) target = $region56
        $region55: #{tpu_custom_call.1} parent=23 // pred_region
          %p532 = scmp.lt.s32.totalorder %s23, 1
          %s533 = scalar_select %p532, %s23, 1
          %s534 = smul.addr %s533, 4
          %s535 = scalar_lea.vmem %s9, %s534
        $region56: #{tpu_custom_call.1} parent=23 // pred_fallthru
          _
        // Predicated region
        $region57: #{tpu_custom_call.1} parent=23 // pred_check
          %p536 = pneg %p293
        $region58: #{tpu_custom_call.1} parent=23 // pred_check_branch
          %538 = sbr.rel (%p536) target = $region60
        $region59: #{tpu_custom_call.1} parent=23 // pred_region
          %s539 = sand.u32 %s23, 1
          %s540 = scalar_lea.sflag [#allocation4], %s539
          %s541 = sand.u32 %s283, 1
          %s542 = smul.addr %s541, 256
          %s543 = scalar_lea.vmem [#allocation11], %s542
          %s545 = ssub.s32 4096, 4096
          %546 = vsyncadd %s540, %s545
          %s547 = smul.addr %s23, 64
          %s548 = smul.addr %s547, 64
          %s549 = scalar_lea.hbm %s10, %s548
          %s550 = sshll.u32 %s543, 4
          %s551 = int_to_ptr.vmem [resolvable:$true] %s550
          %556 = dma.hbm_to_vmem [thread:$0]  %s549, 4096, %s551, %s540, 64, 64, 4
        $region60: #{tpu_custom_call.1} parent=23 // pred_fallthru
          _
        // Predicated region
        $region61: #{tpu_custom_call.1} parent=23 // pred_check
          %p557 = pneg %p319
        $region62: #{tpu_custom_call.1} parent=23 // pred_check_branch
          %559 = sbr.rel (%p557) target = $region64
        $region63: #{tpu_custom_call.1} parent=23 // pred_region
          %p560 = scmp.lt.s32.totalorder %s23, 1
          %s561 = scalar_select %p560, %s23, 1
          %s562 = scalar_lea.vmem %s11, %s561
        $region64: #{tpu_custom_call.1} parent=23 // pred_fallthru
          _
        // Predicated region
        $region65: #{tpu_custom_call.1} parent=23 // pred_check
          %p563 = pneg %p345
        $region66: #{tpu_custom_call.1} parent=23 // pred_check_branch
          %565 = sbr.rel (%p563) target = $region68
        $region67: #{tpu_custom_call.1} parent=23 // pred_region
          %p566 = scmp.lt.s32.totalorder %s23, 1
          %s567 = scalar_select %p566, %s23, 1
          %s568 = scalar_lea.vmem %s12, %s567
        $region68: #{tpu_custom_call.1} parent=23 // pred_fallthru
          _
        // Predicated region
        $region69: #{tpu_custom_call.1} parent=23 // pred_check
          %p569 = pneg %p371
        $region70: #{tpu_custom_call.1} parent=23 // pred_check_branch
          %571 = sbr.rel (%p569) target = $region72
        $region71: #{tpu_custom_call.1} parent=23 // pred_region
          %p572 = scmp.lt.s32.totalorder %s23, 1
          %s573 = scalar_select %p572, %s23, 1
          %s574 = scalar_lea.vmem %s13, %s573
        $region72: #{tpu_custom_call.1} parent=23 // pred_fallthru
          _
      $region24: #{tpu_custom_call.1} parent=5 // pred_fallthru
        _
      %p575 = scmp.le.s32.totalorder 1, %s23
      %p576 = scmp.lt.s32.totalorder %s23, 3
      %p577 = pnand %p575, %p576
      %p578 = pneg %p577
      // Predicated region
      $region73: #{tpu_custom_call.1} parent=5 // pred_check
        _
      $region74: #{tpu_custom_call.1} parent=5 // pred_check_branch
        %580 = sbr.rel (%p577) target = $region76
      $region75: #{tpu_custom_call.1} parent=5 // pred_region
        %s581 = ssub.s32 %s23, 1
        // Predicated region
        $region77: #{tpu_custom_call.1} parent=75 // pred_check
          %p582 = pneg %p44
        $region78: #{tpu_custom_call.1} parent=75 // pred_check_branch
          %584 = sbr.rel (%p582) target = $region80
        $region79: #{tpu_custom_call.1} parent=75 // pred_region
          %585 = dma.done [#allocation4], 512
        $region80: #{tpu_custom_call.1} parent=75 // pred_fallthru
          _
        // Predicated region
        $region81: #{tpu_custom_call.1} parent=75 // pred_check
          %p586 = pneg %p65
        $region82: #{tpu_custom_call.1} parent=75 // pred_check_branch
          %588 = sbr.rel (%p586) target = $region84
        $region83: #{tpu_custom_call.1} parent=75 // pred_region
          %589 = dma.done [#allocation7], 64
        $region84: #{tpu_custom_call.1} parent=75 // pred_fallthru
          _
        %s590 = sand.u32 %s28, 1
        %s591 = scalar_lea.sflag [#allocation4], %s590
        %s592 = sand.u32 %s78, 1
        %s593 = smul.addr %s592, 192
        %s594 = scalar_lea.vmem [#allocation8], %s593
        // Predicated region
        $region85: #{tpu_custom_call.1} parent=75 // pred_check
          %p595 = pneg %p91
        $region86: #{tpu_custom_call.1} parent=75 // pred_check_branch
          %597 = sbr.rel (%p595) target = $region88
        $region87: #{tpu_custom_call.1} parent=75 // pred_region
          %598 = dma.done %s591, 3072
        $region88: #{tpu_custom_call.1} parent=75 // pred_fallthru
          _
        %s599 = sand.u32 %s28, 1
        %s600 = scalar_lea.sflag [#allocation4], %s599
        %s601 = sand.u32 %s130, 1
        %s602 = smul.addr %s601, 64
        %s603 = scalar_lea.vmem [#allocation9], %s602
        // Predicated region
        $region89: #{tpu_custom_call.1} parent=75 // pred_check
          %p604 = pneg %p143
        $region90: #{tpu_custom_call.1} parent=75 // pred_check_branch
          %606 = sbr.rel (%p604) target = $region92
        $region91: #{tpu_custom_call.1} parent=75 // pred_region
          %607 = dma.done %s600, 1024
        $region92: #{tpu_custom_call.1} parent=75 // pred_fallthru
          _
        %s608 = sand.u32 %s28, 1
        %s609 = scalar_lea.sflag [#allocation4], %s608
        %s610 = sand.u32 %s234, 1
        %s611 = smul.addr %s610, 256
        %s612 = scalar_lea.vmem [#allocation10], %s611
        // Predicated region
        $region93: #{tpu_custom_call.1} parent=75 // pred_check
          %p613 = pneg %p247
        $region94: #{tpu_custom_call.1} parent=75 // pred_check_branch
          %615 = sbr.rel (%p613) target = $region96
        $region95: #{tpu_custom_call.1} parent=75 // pred_region
          %616 = dma.done %s609, 4096
        $region96: #{tpu_custom_call.1} parent=75 // pred_fallthru
          _
        %s617 = sand.u32 %s28, 1
        %s618 = scalar_lea.sflag [#allocation4], %s617
        %s619 = sand.u32 %s286, 1
        %s620 = smul.addr %s619, 256
        %s621 = scalar_lea.vmem [#allocation11], %s620
        // Predicated region
        $region97: #{tpu_custom_call.1} parent=75 // pred_check
          %p622 = pneg %p299
        $region98: #{tpu_custom_call.1} parent=75 // pred_check_branch
          %624 = sbr.rel (%p622) target = $region100
        $region99: #{tpu_custom_call.1} parent=75 // pred_region
          %625 = dma.done %s618, 4096
        $region100: #{tpu_custom_call.1} parent=75 // pred_fallthru
          _
        %p626 = pneg %p44
        %p627 = pneg %p41
        %p628 = pneg %p65
        %p629 = pneg %p62
        %s630 = sand.u32 %s28, 1
        %s631 = scalar_lea.sflag [#allocation4], %s630
        %s632 = sand.u32 %s78, 1
        %s633 = smul.addr %s632, 192
        %s634 = scalar_lea.vmem [#allocation8], %s633
        %p635 = pneg %p91
        %p636 = pneg %p88
        %p637 = scmp.lt.s32.totalorder %s28, 1
        %s638 = scalar_select %p637, %s28, 1
        %s639 = smul.addr %s638, 3
        %s640 = scalar_lea.vmem %s3, %s639
        %p641 = pneg %p117
        %p642 = pneg %p114
        %s643 = sand.u32 %s28, 1
        %s644 = scalar_lea.sflag [#allocation4], %s643
        %s645 = sand.u32 %s130, 1
        %s646 = smul.addr %s645, 64
        %s647 = scalar_lea.vmem [#allocation9], %s646
        %p648 = pneg %p143
        %p649 = pneg %p140
        %p650 = scmp.lt.s32.totalorder %s28, 1
        %s651 = scalar_select %p650, %s28, 1
        %s652 = scalar_lea.vmem %s5, %s651
        %p653 = pneg %p169
        %p654 = pneg %p166
        %p655 = scmp.lt.s32.totalorder %s28, 1
        %s656 = scalar_select %p655, %s28, 1
        %s657 = scalar_lea.vmem %s6, %s656
        %p658 = pneg %p195
        %p659 = pneg %p192
        %p660 = scmp.lt.s32.totalorder %s28, 1
        %s661 = scalar_select %p660, %s28, 1
        %s662 = scalar_lea.vmem %s7, %s661
        %p663 = pneg %p221
        %p664 = pneg %p218
        %s665 = sand.u32 %s28, 1
        %s666 = scalar_lea.sflag [#allocation4], %s665
        %s667 = sand.u32 %s234, 1
        %s668 = smul.addr %s667, 256
        %s669 = scalar_lea.vmem [#allocation10], %s668
        %p670 = pneg %p247
        %p671 = pneg %p244
        %p672 = scmp.lt.s32.totalorder %s28, 1
        %s673 = scalar_select %p672, %s28, 1
        %s674 = smul.addr %s673, 4
        %s675 = scalar_lea.vmem %s9, %s674
        %p676 = pneg %p273
        %p677 = pneg %p270
        %s678 = sand.u32 %s28, 1
        %s679 = scalar_lea.sflag [#allocation4], %s678
        %s680 = sand.u32 %s286, 1
        %s681 = smul.addr %s680, 256
        %s682 = scalar_lea.vmem [#allocation11], %s681
        %p683 = pneg %p299
        %p684 = pneg %p296
        %p685 = scmp.lt.s32.totalorder %s28, 1
        %s686 = scalar_select %p685, %s28, 1
        %s687 = scalar_lea.vmem %s11, %s686
        %p688 = pneg %p325
        %p689 = pneg %p322
        %p690 = scmp.lt.s32.totalorder %s28, 1
        %s691 = scalar_select %p690, %s28, 1
        %s692 = scalar_lea.vmem %s12, %s691
        %p693 = pneg %p351
        %p694 = pneg %p348
        %p695 = scmp.lt.s32.totalorder %s28, 1
        %s696 = scalar_select %p695, %s28, 1
        %s697 = scalar_lea.vmem %s13, %s696
        %p698 = pneg %p377
        %p699 = pneg %p374
        %p700 = pneg %p398
        %p701 = pneg %p395
        %p702 = scmp.lt.s32.totalorder %s28, 1
        %s703 = scalar_select %p702, %s28, 1
        %s704 = smul.addr %s703, 3
        %s705 = scalar_lea.vmem %s3, %s704
        %p706 = scmp.lt.s32.totalorder %s28, 1
        %s707 = scalar_select %p706, %s28, 1
        %s708 = scalar_lea.vmem %s5, %s707
        %p709 = scmp.lt.s32.totalorder %s28, 1
        %s710 = scalar_select %p709, %s28, 1
        %s711 = scalar_lea.vmem %s6, %s710
        %p712 = scmp.lt.s32.totalorder %s28, 1
        %s713 = scalar_select %p712, %s28, 1
        %s714 = scalar_lea.vmem %s7, %s713
        %p715 = scmp.lt.s32.totalorder %s28, 1
        %s716 = scalar_select %p715, %s28, 1
        %s717 = smul.addr %s716, 4
        %s718 = scalar_lea.vmem %s9, %s717
        %p719 = scmp.lt.s32.totalorder %s28, 1
        %s720 = scalar_select %p719, %s28, 1
        %s721 = scalar_lea.vmem %s11, %s720
        %p722 = scmp.lt.s32.totalorder %s28, 1
        %s723 = scalar_select %p722, %s28, 1
        %s724 = scalar_lea.vmem %s12, %s723
        %p725 = scmp.lt.s32.totalorder %s28, 1
        %s726 = scalar_select %p725, %s28, 1
        %s727 = scalar_lea.vmem %s13, %s726
        %p729 = scmp.eq.s32.totalorder %s28, 0
        // Predicated region
        $region101: #{tpu_custom_call.1} parent=75 // pred_check
          %p730 = pneg %p729
        $region102: #{tpu_custom_call.1} parent=75 // pred_check_branch
          %732 = sbr.rel (%p730) target = $region104
        $region103: #{tpu_custom_call.1} parent=75 // pred_region
          %v733 = vld [vmem:[#allocation3] sm:$0xff]
          %v734 = vld [vmem:[#allocation3 + $0x8] sm:$0xff]
          %v735 = vld [vmem:[#allocation3 + $0x10] sm:$0xff]
          %v736 = vld [vmem:[#allocation3 + $0x18] sm:$0xff]
          %737 = vst [vmem:[#allocation2] sm:$0xff] %v733
          %738 = vst [vmem:[#allocation2 + $0x8] sm:$0xff] %v734
          %739 = vst [vmem:[#allocation2 + $0x10] sm:$0xff] %v735
          %740 = vst [vmem:[#allocation2 + $0x18] sm:$0xff] %v736
        $region104: #{tpu_custom_call.1} parent=75 // pred_fallthru
          _
        %v741 = vld [vmem:[#allocation2] sm:$0xff]
        %v742 = vld [vmem:[#allocation2 + $0x8] sm:$0xff]
        %v743 = vld [vmem:[#allocation2 + $0x10] sm:$0xff]
        %v744 = vld [vmem:[#allocation2 + $0x18] sm:$0xff]
        %v745 = vpack.c.bf16 %v742, %v741
        %v746 = vpack.c.bf16 %v744, %v743
        %v747 = vld [vmem:[#allocation6] sm:$0xf]
        %v748 = vsub.f32 1.0, %v747
        %v749 = vmul.f32 %v748, -1e+09
        %v750 = vld [vmem:[%s594] sm:$0xff]
        %v751 = vld [vmem:[%s594 + $0x8] sm:$0xf]
        %v752 = vld [vmem:[%s594 + $0xc] sm:$0xff]
        %v753 = vld [vmem:[%s594 + $0x14] sm:$0xf]
        %v754 = vld [vmem:[%s594 + $0x18] sm:$0xff]
        %v755 = vld [vmem:[%s594 + $0x20] sm:$0xf]
        %v756 = vld [vmem:[%s594 + $0x24] sm:$0xff]
        %v757 = vld [vmem:[%s594 + $0x2c] sm:$0xf]
        %v758 = vld [vmem:[%s594 + $0x30] sm:$0xff]
        %v759 = vld [vmem:[%s594 + $0x38] sm:$0xf]
        %v760 = vld [vmem:[%s594 + $0x3c] sm:$0xff]
        %v761 = vld [vmem:[%s594 + $0x44] sm:$0xf]
        %v762 = vld [vmem:[%s594 + $0x48] sm:$0xff]
        %v763 = vld [vmem:[%s594 + $0x50] sm:$0xf]
        %v764 = vld [vmem:[%s594 + $0x54] sm:$0xff]
        %v765 = vld [vmem:[%s594 + $0x5c] sm:$0xf]
        %v766 = vld [vmem:[%s594 + $0x60] sm:$0xff]
        %v767 = vld [vmem:[%s594 + $0x68] sm:$0xf]
        %v768 = vld [vmem:[%s594 + $0x6c] sm:$0xff]
        %v769 = vld [vmem:[%s594 + $0x74] sm:$0xf]
        %v770 = vld [vmem:[%s594 + $0x78] sm:$0xff]
        %v771 = vld [vmem:[%s594 + $0x80] sm:$0xf]
        %v772 = vld [vmem:[%s594 + $0x84] sm:$0xff]
        %v773 = vld [vmem:[%s594 + $0x8c] sm:$0xf]
        %v774 = vld [vmem:[%s594 + $0x90] sm:$0xff]
        %v775 = vld [vmem:[%s594 + $0x98] sm:$0xf]
        %v776 = vld [vmem:[%s594 + $0x9c] sm:$0xff]
        %v777 = vld [vmem:[%s594 + $0xa4] sm:$0xf]
        %v778 = vld [vmem:[%s594 + $0xa8] sm:$0xff]
        %v779 = vld [vmem:[%s594 + $0xb0] sm:$0xf]
        %v780 = vld [vmem:[%s594 + $0xb4] sm:$0xff]
        %v781 = vld [vmem:[%s594 + $0xbc] sm:$0xf]
        %v782 = vld [vmem:[%s705] sm:$0x7]
        %v784 = vlaneseq
        %v785 = vshrl.u32 %v784, 7
        %v786 = vsub.s32 0, %v785
        %v787 = vrot.slane %v782, %v786
        %v788 = vlaneseq
        %v789 = vshrl.u32 %v788, 7
        %v790 = vsub.s32 1, %v789
        %v791 = vrot.slane %v782, %v790
        %v792 = vlaneseq
        %v793 = vshrl.u32 %v792, 7
        %v794 = vsub.s32 2, %v793
        %v795 = vrot.slane %v782, %v794
        %v831 = vunpack.c.l.b16 %v750
        %v832 = vunpack.c.h.b16 %v750
        %v833 = vunpack.c.l.b16 %v751
        %v834 = vunpack.c.l.b16 %v752
        %v835 = vunpack.c.h.b16 %v752
        %v836 = vunpack.c.l.b16 %v753
        %v837 = vunpack.c.l.b16 %v754
        %v838 = vunpack.c.h.b16 %v754
        %v839 = vunpack.c.l.b16 %v755
        %v840 = vunpack.c.l.b16 %v756
        %v841 = vunpack.c.h.b16 %v756
        %v842 = vunpack.c.l.b16 %v757
        %v843 = vunpack.c.l.b16 %v758
        %v844 = vunpack.c.h.b16 %v758
        %v845 = vunpack.c.l.b16 %v759
        %v846 = vunpack.c.l.b16 %v760
        %v847 = vunpack.c.h.b16 %v760
        %v848 = vunpack.c.l.b16 %v761
        %v849 = vunpack.c.l.b16 %v762
        %v850 = vunpack.c.h.b16 %v762
        %v851 = vunpack.c.l.b16 %v763
        %v852 = vunpack.c.l.b16 %v764
        %v853 = vunpack.c.h.b16 %v764
        %v854 = vunpack.c.l.b16 %v765
        %v855 = vunpack.c.l.b16 %v766
        %v856 = vunpack.c.h.b16 %v766
        %v857 = vunpack.c.l.b16 %v767
        %v858 = vunpack.c.l.b16 %v768
        %v859 = vunpack.c.h.b16 %v768
        %v860 = vunpack.c.l.b16 %v769
        %v861 = vunpack.c.l.b16 %v770
        %v862 = vunpack.c.h.b16 %v770
        %v863 = vunpack.c.l.b16 %v771
        %v864 = vunpack.c.l.b16 %v772
        %v865 = vunpack.c.h.b16 %v772
        %v866 = vunpack.c.l.b16 %v773
        %v867 = vunpack.c.l.b16 %v774
        %v868 = vunpack.c.h.b16 %v774
        %v869 = vunpack.c.l.b16 %v775
        %v870 = vunpack.c.l.b16 %v776
        %v871 = vunpack.c.h.b16 %v776
        %v872 = vunpack.c.l.b16 %v777
        %v873 = vunpack.c.l.b16 %v778
        %v874 = vunpack.c.h.b16 %v778
        %v875 = vunpack.c.l.b16 %v779
        %v876 = vunpack.c.l.b16 %v780
        %v877 = vunpack.c.h.b16 %v780
        %v878 = vunpack.c.l.b16 %v781
        %v879 = vpack.c.b16 %v834, %v831
        %v880 = vpack.c.b16 %v835, %v832
        %v881 = vpack.c.b16 %v836, %v833
        %v882 = vpack.c.b16 %v840, %v837
        %v883 = vpack.c.b16 %v841, %v838
        %v884 = vpack.c.b16 %v842, %v839
        %v885 = vpack.c.b16 %v846, %v843
        %v886 = vpack.c.b16 %v847, %v844
        %v887 = vpack.c.b16 %v848, %v845
        %v888 = vpack.c.b16 %v852, %v849
        %v889 = vpack.c.b16 %v853, %v850
        %v890 = vpack.c.b16 %v854, %v851
        %v891 = vpack.c.b16 %v858, %v855
        %v892 = vpack.c.b16 %v859, %v856
        %v893 = vpack.c.b16 %v860, %v857
        %v894 = vpack.c.b16 %v864, %v861
        %v895 = vpack.c.b16 %v865, %v862
        %v896 = vpack.c.b16 %v866, %v863
        %v897 = vpack.c.b16 %v870, %v867
        %v898 = vpack.c.b16 %v871, %v868
        %v899 = vpack.c.b16 %v872, %v869
        %v900 = vpack.c.b16 %v876, %v873
        %v901 = vpack.c.b16 %v877, %v874
        %v902 = vpack.c.b16 %v878, %v875
        %927 = vmatprep.subr.bf16.mxu0 %v880
        %928 = vmatpush1.bf16.msra.mxu0 %v879
        %929 = vmatprep.subr.bf16.mxu0 %v883
        %930 = vmatpush1.bf16.msra.mxu0 %v882
        %931 = vmatprep.subr.bf16.mxu0 %v886
        %932 = vmatpush1.bf16.msra.mxu0 %v885
        %933 = vmatprep.subr.bf16.mxu0 %v889
        %934 = vmatpush1.bf16.msra.mxu0 %v888
        %935 = vmatprep.subr.bf16.mxu0 %v892
        %936 = vmatpush1.bf16.msra.mxu0 %v891
        %937 = vmatprep.subr.bf16.mxu0 %v895
        %938 = vmatpush1.bf16.msra.mxu0 %v894
        %939 = vmatprep.subr.bf16.mxu0 %v898
        %940 = vmatpush1.bf16.msra.mxu0 %v897
        %941 = vmatprep.subr.bf16.mxu0 %v901
        %942 = vmatpush1.bf16.msra.mxu0 %v900
        %943 = vmatprep.subr.bf16.mxu0 0
        %944 = vmatpush1.bf16.msra.mxu0 0
        %945 = vmatprep.subr.bf16.mxu0 0
        %946 = vmatpush1.bf16.msra.mxu0 0
        %947 = vmatprep.subr.bf16.mxu0 0
        %948 = vmatpush1.bf16.msra.mxu0 0
        %949 = vmatprep.subr.bf16.mxu0 0
        %950 = vmatpush1.bf16.msra.mxu0 0
        %951 = vmatprep.subr.bf16.mxu0 0
        %952 = vmatpush1.bf16.msra.mxu0 0
        %953 = vmatprep.subr.bf16.mxu0 0
        %954 = vmatpush1.bf16.msra.mxu0 0
        %955 = vmatprep.subr.bf16.mxu0 0
        %956 = vmatpush1.bf16.msra.mxu0 0
        %957 = vmatprep.subr.bf16.mxu0 0
        %958 = vmatpush1.bf16.msra.mxu0 0
        %959 = vmatprep.mubr.bf16.mxu0 0
        %960 = vmatmul.mubr.bf16.gmra.mrb[0].mxu0 %v745
        %v961 = vpop.f32.mrb[0].mxu0
        %v962 = vadd.f32 %v787, %v961
        %v963 = vpop.f32.mrb[0].mxu0
        %v964 = vadd.f32 %v791, %v963
        %v965 = vpop.f32.mrb[0].mxu0
        %v966 = vadd.f32 %v787, %v965
        %v967 = vpop.f32.mrb[0].mxu0
        %v968 = vadd.f32 %v791, %v967
        %969 = vmatprep.mubr.bf16.mxu0 0
        %970 = vmatmul.mubr.bf16.gmra.mrb[0].mxu0 %v746
        %v971 = vpop.f32.mrb[0].mxu0
        %v972 = vadd.f32 %v787, %v971
        %v973 = vpop.f32.mrb[0].mxu0
        %v974 = vadd.f32 %v791, %v973
        %v975 = vpop.f32.mrb[0].mxu0
        %v976 = vadd.f32 %v787, %v975
        %v977 = vpop.f32.mrb[0].mxu0
        %v978 = vadd.f32 %v791, %v977
        %979 = vdwg.mxu0
        %980 = vmatprep.subr.bf16.mxu0 0
        %981 = vmatpush1.bf16.msra.mxu0 %v881
        %982 = vmatprep.subr.bf16.mxu0 0
        %983 = vmatpush1.bf16.msra.mxu0 %v884
        %984 = vmatprep.subr.bf16.mxu0 0
        %985 = vmatpush1.bf16.msra.mxu0 %v887
        %986 = vmatprep.subr.bf16.mxu0 0
        %987 = vmatpush1.bf16.msra.mxu0 %v890
        %988 = vmatprep.subr.bf16.mxu0 0
        %989 = vmatpush1.bf16.msra.mxu0 %v893
        %990 = vmatprep.subr.bf16.mxu0 0
        %991 = vmatpush1.bf16.msra.mxu0 %v896
        %992 = vmatprep.subr.bf16.mxu0 0
        %993 = vmatpush1.bf16.msra.mxu0 %v899
        %994 = vmatprep.subr.bf16.mxu0 0
        %995 = vmatpush1.bf16.msra.mxu0 %v902
        %996 = vmatprep.subr.bf16.mxu0 0
        %997 = vmatpush1.bf16.msra.mxu0 0
        %998 = vmatprep.subr.bf16.mxu0 0
        %999 = vmatpush1.bf16.msra.mxu0 0
        %1000 = vmatprep.subr.bf16.mxu0 0
        %1001 = vmatpush1.bf16.msra.mxu0 0
        %1002 = vmatprep.subr.bf16.mxu0 0
        %1003 = vmatpush1.bf16.msra.mxu0 0
        %1004 = vmatprep.subr.bf16.mxu0 0
        %1005 = vmatpush1.bf16.msra.mxu0 0
        %1006 = vmatprep.subr.bf16.mxu0 0
        %1007 = vmatpush1.bf16.msra.mxu0 0
        %1008 = vmatprep.subr.bf16.mxu0 0
        %1009 = vmatpush1.bf16.msra.mxu0 0
        %1010 = vmatprep.subr.bf16.mxu0 0
        %1011 = vmatpush1.bf16.msra.mxu0 0
        %1012 = vmatprep.mubr.bf16.mxu0 0
        %1013 = vmatmul.mubr.bf16.gmra.mrb[0].mxu0 %v745
        %v1014 = vpop.f32.mrb[0].mxu0
        %v1015 = vadd.f32 %v795, %v1014
        %v1016 = vpop.f32.mrb[0].mxu0
        %v1017 = vpop.f32.mrb[0].mxu0
        %v1018 = vadd.f32 %v795, %v1017
        %v1019 = vpop.f32.mrb[0].mxu0
        %1020 = vmatprep.mubr.bf16.mxu0 0
        %1021 = vmatmul.mubr.bf16.gmra.mrb[0].mxu0 %v746
        %v1022 = vpop.f32.mrb[0].mxu0
        %v1023 = vadd.f32 %v795, %v1022
        %v1024 = vpop.f32.mrb[0].mxu0
        %v1025 = vpop.f32.mrb[0].mxu0
        %v1026 = vadd.f32 %v795, %v1025
        %v1027 = vpop.f32.mrb[0].mxu0
        %1028 = vdwg.mxu0
        %v1029 = vld [vmem:[%s603] sm:$0xf]
        %v1030 = vld [vmem:[%s603 + $0x4] sm:$0xf]
        %v1031 = vld [vmem:[%s603 + $0x8] sm:$0xf]
        %v1032 = vld [vmem:[%s603 + $0xc] sm:$0xf]
        %v1033 = vld [vmem:[%s603 + $0x10] sm:$0xf]
        %v1034 = vld [vmem:[%s603 + $0x14] sm:$0xf]
        %v1035 = vld [vmem:[%s603 + $0x18] sm:$0xf]
        %v1036 = vld [vmem:[%s603 + $0x1c] sm:$0xf]
        %v1037 = vld [vmem:[%s603 + $0x20] sm:$0xf]
        %v1038 = vld [vmem:[%s603 + $0x24] sm:$0xf]
        %v1039 = vld [vmem:[%s603 + $0x28] sm:$0xf]
        %v1040 = vld [vmem:[%s603 + $0x2c] sm:$0xf]
        %v1041 = vld [vmem:[%s603 + $0x30] sm:$0xf]
        %v1042 = vld [vmem:[%s603 + $0x34] sm:$0xf]
        %v1043 = vld [vmem:[%s603 + $0x38] sm:$0xf]
        %v1044 = vld [vmem:[%s603 + $0x3c] sm:$0xf]
        %vm1045 = vcmask 523264
        %v1047 = vsel %vm1045, %v962, 0
        %v1050 = vsel %vm1045, %v964, 0
        %1052 = vmatprep.subr.mxu0 0.0
        %1053 = vmatpush1.xpose.msra.mxu0 %v1050
        %1054 = vmatprep.subr.mxu0 0.0
        %1055 = vmatpush1.xpose.msra.mxu0 0.0
        %1056 = vmatprep.subr.mxu0 0.0
        %1057 = vmatpush1.xpose.msra.mxu0 0.0
        %1058 = vmatprep.subr.mxu0 0.0
        %1059 = vmatpush1.xpose.msra.mxu0 0.0
        %1060 = vmatprep.subr.mxu0 0.0
        %1061 = vmatpush1.xpose.msra.mxu0 0.0
        %1062 = vmatprep.subr.mxu0 0.0
        %1063 = vmatpush1.xpose.msra.mxu0 0.0
        %1064 = vmatprep.subr.mxu0 0.0
        %1065 = vmatpush1.xpose.msra.mxu0 0.0
        %1066 = vmatprep.subr.mxu0 0.0
        %1067 = vmatpush1.xpose.msra.mxu0 0.0
        %1068 = vmatprep.subr.mxu0 0.0
        %1069 = vmatpush1.xpose.msra.mxu0 0.0
        %1070 = vmatprep.subr.mxu0 0.0
        %1071 = vmatpush1.xpose.msra.mxu0 0.0
        %1072 = vmatprep.subr.mxu0 0.0
        %1073 = vmatpush1.xpose.msra.mxu0 0.0
        %1074 = vmatprep.subr.mxu0 0.0
        %1075 = vmatpush1.xpose.msra.mxu0 0.0
        %1076 = vmatprep.subr.mxu0 0.0
        %1077 = vmatpush1.xpose.msra.mxu0 0.0
        %1078 = vmatprep.subr.mxu0 0.0
        %1079 = vmatpush1.xpose.msra.mxu0 0.0
        %1080 = vmatprep.subr.mxu0 0.0
        %1081 = vmatpush1.xpose.msra.mxu0 0.0
        %1082 = vmatprep.subr.mxu0 0.0
        %1083 = vmatpush1.xpose.msra.mxu0 0.0
        %1084 = vmatprep.subr.mxu0 0.0
        %1085 = vmatpush1.xpose.msra.mxu0 0.0
        %1086 = vmatprep.subr.mxu0 0.0
        %1087 = vmatpush1.xpose.msra.mxu0 0.0
        %1088 = vmatprep.subr.mxu0 0.0
        %1089 = vmatpush1.xpose.msra.mxu0 0.0
        %1090 = vmatprep.subr.mxu0 0.0
        %1091 = vmatpush1.xpose.msra.mxu0 0.0
        %1092 = vmatprep.subr.mxu0 0.0
        %1093 = vmatpush1.xpose.msra.mxu0 0.0
        %1094 = vmatprep.subr.mxu0 0.0
        %1095 = vmatpush1.xpose.msra.mxu0 0.0
        %1096 = vmatprep.subr.mxu0 0.0
        %1097 = vmatpush1.xpose.msra.mxu0 0.0
        %1098 = vmatprep.subr.mxu0 0.0
        %1099 = vmatpush1.xpose.msra.mxu0 0.0
        %1100 = vmatprep.subr.mxu0 0.0
        %1101 = vmatpush1.xpose.msra.mxu0 0.0
        %1102 = vmatprep.subr.mxu0 0.0
        %1103 = vmatpush1.xpose.msra.mxu0 0.0
        %1104 = vmatprep.subr.mxu0 0.0
        %1105 = vmatpush1.xpose.msra.mxu0 0.0
        %1106 = vmatprep.subr.mxu0 0.0
        %1107 = vmatpush1.xpose.msra.mxu0 0.0
        %1108 = vmatprep.subr.mxu0 0.0
        %1109 = vmatpush1.xpose.msra.mxu0 0.0
        %1110 = vmatprep.subr.mxu0 0.0
        %1111 = vmatpush1.xpose.msra.mxu0 0.0
        %1112 = vmatprep.subr.mxu0 0.0
        %1113 = vmatpush1.xpose.msra.mxu0 0.0
        %1114 = vmatprep.subr.mxu0 0.0
        %1115 = vmatpush1.xpose.msra.mxu0 0.0
        %1116 = vmatprep.mubr.f32.mxu0 0.0
        %1117 = vmatmul.mubr.f32.gmra.mrb[0].mxu0 %v1047
        %v1118 = vpop.f32.mrb[0].mxu0
        %v1119 = vadd.f32 0.0, %v1118
        %v1120 = vpop.f32.mrb[0].mxu0
        %1121 = vdwg.mxu0
        %v1123 = vsel %vm1045, %v966, 0
        %v1126 = vsel %vm1045, %v968, 0
        %1128 = vmatprep.subr.mxu0 0.0
        %1129 = vmatpush1.xpose.msra.mxu0 %v1126
        %1130 = vmatprep.subr.mxu0 0.0
        %1131 = vmatpush1.xpose.msra.mxu0 0.0
        %1132 = vmatprep.subr.mxu0 0.0
        %1133 = vmatpush1.xpose.msra.mxu0 0.0
        %1134 = vmatprep.subr.mxu0 0.0
        %1135 = vmatpush1.xpose.msra.mxu0 0.0
        %1136 = vmatprep.subr.mxu0 0.0
        %1137 = vmatpush1.xpose.msra.mxu0 0.0
        %1138 = vmatprep.subr.mxu0 0.0
        %1139 = vmatpush1.xpose.msra.mxu0 0.0
        %1140 = vmatprep.subr.mxu0 0.0
        %1141 = vmatpush1.xpose.msra.mxu0 0.0
        %1142 = vmatprep.subr.mxu0 0.0
        %1143 = vmatpush1.xpose.msra.mxu0 0.0
        %1144 = vmatprep.subr.mxu0 0.0
        %1145 = vmatpush1.xpose.msra.mxu0 0.0
        %1146 = vmatprep.subr.mxu0 0.0
        %1147 = vmatpush1.xpose.msra.mxu0 0.0
        %1148 = vmatprep.subr.mxu0 0.0
        %1149 = vmatpush1.xpose.msra.mxu0 0.0
        %1150 = vmatprep.subr.mxu0 0.0
        %1151 = vmatpush1.xpose.msra.mxu0 0.0
        %1152 = vmatprep.subr.mxu0 0.0
        %1153 = vmatpush1.xpose.msra.mxu0 0.0
        %1154 = vmatprep.subr.mxu0 0.0
        %1155 = vmatpush1.xpose.msra.mxu0 0.0
        %1156 = vmatprep.subr.mxu0 0.0
        %1157 = vmatpush1.xpose.msra.mxu0 0.0
        %1158 = vmatprep.subr.mxu0 0.0
        %1159 = vmatpush1.xpose.msra.mxu0 0.0
        %1160 = vmatprep.subr.mxu0 0.0
        %1161 = vmatpush1.xpose.msra.mxu0 0.0
        %1162 = vmatprep.subr.mxu0 0.0
        %1163 = vmatpush1.xpose.msra.mxu0 0.0
        %1164 = vmatprep.subr.mxu0 0.0
        %1165 = vmatpush1.xpose.msra.mxu0 0.0
        %1166 = vmatprep.subr.mxu0 0.0
        %1167 = vmatpush1.xpose.msra.mxu0 0.0
        %1168 = vmatprep.subr.mxu0 0.0
        %1169 = vmatpush1.xpose.msra.mxu0 0.0
        %1170 = vmatprep.subr.mxu0 0.0
        %1171 = vmatpush1.xpose.msra.mxu0 0.0
        %1172 = vmatprep.subr.mxu0 0.0
        %1173 = vmatpush1.xpose.msra.mxu0 0.0
        %1174 = vmatprep.subr.mxu0 0.0
        %1175 = vmatpush1.xpose.msra.mxu0 0.0
        %1176 = vmatprep.subr.mxu0 0.0
        %1177 = vmatpush1.xpose.msra.mxu0 0.0
        %1178 = vmatprep.subr.mxu0 0.0
        %1179 = vmatpush1.xpose.msra.mxu0 0.0
        %1180 = vmatprep.subr.mxu0 0.0
        %1181 = vmatpush1.xpose.msra.mxu0 0.0
        %1182 = vmatprep.subr.mxu0 0.0
        %1183 = vmatpush1.xpose.msra.mxu0 0.0
        %1184 = vmatprep.subr.mxu0 0.0
        %1185 = vmatpush1.xpose.msra.mxu0 0.0
        %1186 = vmatprep.subr.mxu0 0.0
        %1187 = vmatpush1.xpose.msra.mxu0 0.0
        %1188 = vmatprep.subr.mxu0 0.0
        %1189 = vmatpush1.xpose.msra.mxu0 0.0
        %1190 = vmatprep.subr.mxu0 0.0
        %1191 = vmatpush1.xpose.msra.mxu0 0.0
        %1192 = vmatprep.mubr.f32.mxu0 0.0
        %1193 = vmatmul.mubr.f32.gmra.mrb[0].mxu0 %v1123
        %v1194 = vpop.f32.mrb[0].mxu0
        %v1195 = vadd.f32 0.0, %v1194
        %v1196 = vpop.f32.mrb[0].mxu0
        %1197 = vdwg.mxu0
        %v1199 = vsel %vm1045, %v972, 0
        %v1202 = vsel %vm1045, %v974, 0
        %1204 = vmatprep.subr.mxu0 0.0
        %1205 = vmatpush1.xpose.msra.mxu0 %v1202
        %1206 = vmatprep.subr.mxu0 0.0
        %1207 = vmatpush1.xpose.msra.mxu0 0.0
        %1208 = vmatprep.subr.mxu0 0.0
        %1209 = vmatpush1.xpose.msra.mxu0 0.0
        %1210 = vmatprep.subr.mxu0 0.0
        %1211 = vmatpush1.xpose.msra.mxu0 0.0
        %1212 = vmatprep.subr.mxu0 0.0
        %1213 = vmatpush1.xpose.msra.mxu0 0.0
        %1214 = vmatprep.subr.mxu0 0.0
        %1215 = vmatpush1.xpose.msra.mxu0 0.0
        %1216 = vmatprep.subr.mxu0 0.0
        %1217 = vmatpush1.xpose.msra.mxu0 0.0
        %1218 = vmatprep.subr.mxu0 0.0
        %1219 = vmatpush1.xpose.msra.mxu0 0.0
        %1220 = vmatprep.subr.mxu0 0.0
        %1221 = vmatpush1.xpose.msra.mxu0 0.0
        %1222 = vmatprep.subr.mxu0 0.0
        %1223 = vmatpush1.xpose.msra.mxu0 0.0
        %1224 = vmatprep.subr.mxu0 0.0
        %1225 = vmatpush1.xpose.msra.mxu0 0.0
        %1226 = vmatprep.subr.mxu0 0.0
        %1227 = vmatpush1.xpose.msra.mxu0 0.0
        %1228 = vmatprep.subr.mxu0 0.0
        %1229 = vmatpush1.xpose.msra.mxu0 0.0
        %1230 = vmatprep.subr.mxu0 0.0
        %1231 = vmatpush1.xpose.msra.mxu0 0.0
        %1232 = vmatprep.subr.mxu0 0.0
        %1233 = vmatpush1.xpose.msra.mxu0 0.0
        %1234 = vmatprep.subr.mxu0 0.0
        %1235 = vmatpush1.xpose.msra.mxu0 0.0
        %1236 = vmatprep.subr.mxu0 0.0
        %1237 = vmatpush1.xpose.msra.mxu0 0.0
        %1238 = vmatprep.subr.mxu0 0.0
        %1239 = vmatpush1.xpose.msra.mxu0 0.0
        %1240 = vmatprep.subr.mxu0 0.0
        %1241 = vmatpush1.xpose.msra.mxu0 0.0
        %1242 = vmatprep.subr.mxu0 0.0
        %1243 = vmatpush1.xpose.msra.mxu0 0.0
        %1244 = vmatprep.subr.mxu0 0.0
        %1245 = vmatpush1.xpose.msra.mxu0 0.0
        %1246 = vmatprep.subr.mxu0 0.0
        %1247 = vmatpush1.xpose.msra.mxu0 0.0
        %1248 = vmatprep.subr.mxu0 0.0
        %1249 = vmatpush1.xpose.msra.mxu0 0.0
        %1250 = vmatprep.subr.mxu0 0.0
        %1251 = vmatpush1.xpose.msra.mxu0 0.0
        %1252 = vmatprep.subr.mxu0 0.0
        %1253 = vmatpush1.xpose.msra.mxu0 0.0
        %1254 = vmatprep.subr.mxu0 0.0
        %1255 = vmatpush1.xpose.msra.mxu0 0.0
        %1256 = vmatprep.subr.mxu0 0.0
        %1257 = vmatpush1.xpose.msra.mxu0 0.0
        %1258 = vmatprep.subr.mxu0 0.0
        %1259 = vmatpush1.xpose.msra.mxu0 0.0
        %1260 = vmatprep.subr.mxu0 0.0
        %1261 = vmatpush1.xpose.msra.mxu0 0.0
        %1262 = vmatprep.subr.mxu0 0.0
        %1263 = vmatpush1.xpose.msra.mxu0 0.0
        %1264 = vmatprep.subr.mxu0 0.0
        %1265 = vmatpush1.xpose.msra.mxu0 0.0
        %1266 = vmatprep.subr.mxu0 0.0
        %1267 = vmatpush1.xpose.msra.mxu0 0.0
        %1268 = vmatprep.mubr.f32.mxu0 0.0
        %1269 = vmatmul.mubr.f32.gmra.mrb[0].mxu0 %v1199
        %v1270 = vpop.f32.mrb[0].mxu0
        %v1271 = vadd.f32 0.0, %v1270
        %v1272 = vpop.f32.mrb[0].mxu0
        %1273 = vdwg.mxu0
        %v1275 = vsel %vm1045, %v976, 0
        %v1278 = vsel %vm1045, %v978, 0
        %1280 = vmatprep.subr.mxu0 0.0
        %1281 = vmatpush1.xpose.msra.mxu0 %v1278
        %1282 = vmatprep.subr.mxu0 0.0
        %1283 = vmatpush1.xpose.msra.mxu0 0.0
        %1284 = vmatprep.subr.mxu0 0.0
        %1285 = vmatpush1.xpose.msra.mxu0 0.0
        %1286 = vmatprep.subr.mxu0 0.0
        %1287 = vmatpush1.xpose.msra.mxu0 0.0
        %1288 = vmatprep.subr.mxu0 0.0
        %1289 = vmatpush1.xpose.msra.mxu0 0.0
        %1290 = vmatprep.subr.mxu0 0.0
        %1291 = vmatpush1.xpose.msra.mxu0 0.0
        %1292 = vmatprep.subr.mxu0 0.0
        %1293 = vmatpush1.xpose.msra.mxu0 0.0
        %1294 = vmatprep.subr.mxu0 0.0
        %1295 = vmatpush1.xpose.msra.mxu0 0.0
        %1296 = vmatprep.subr.mxu0 0.0
        %1297 = vmatpush1.xpose.msra.mxu0 0.0
        %1298 = vmatprep.subr.mxu0 0.0
        %1299 = vmatpush1.xpose.msra.mxu0 0.0
        %1300 = vmatprep.subr.mxu0 0.0
        %1301 = vmatpush1.xpose.msra.mxu0 0.0
        %1302 = vmatprep.subr.mxu0 0.0
        %1303 = vmatpush1.xpose.msra.mxu0 0.0
        %1304 = vmatprep.subr.mxu0 0.0
        %1305 = vmatpush1.xpose.msra.mxu0 0.0
        %1306 = vmatprep.subr.mxu0 0.0
        %1307 = vmatpush1.xpose.msra.mxu0 0.0
        %1308 = vmatprep.subr.mxu0 0.0
        %1309 = vmatpush1.xpose.msra.mxu0 0.0
        %1310 = vmatprep.subr.mxu0 0.0
        %1311 = vmatpush1.xpose.msra.mxu0 0.0
        %1312 = vmatprep.subr.mxu0 0.0
        %1313 = vmatpush1.xpose.msra.mxu0 0.0
        %1314 = vmatprep.subr.mxu0 0.0
        %1315 = vmatpush1.xpose.msra.mxu0 0.0
        %1316 = vmatprep.subr.mxu0 0.0
        %1317 = vmatpush1.xpose.msra.mxu0 0.0
        %1318 = vmatprep.subr.mxu0 0.0
        %1319 = vmatpush1.xpose.msra.mxu0 0.0
        %1320 = vmatprep.subr.mxu0 0.0
        %1321 = vmatpush1.xpose.msra.mxu0 0.0
        %1322 = vmatprep.subr.mxu0 0.0
        %1323 = vmatpush1.xpose.msra.mxu0 0.0
        %1324 = vmatprep.subr.mxu0 0.0
        %1325 = vmatpush1.xpose.msra.mxu0 0.0
        %1326 = vmatprep.subr.mxu0 0.0
        %1327 = vmatpush1.xpose.msra.mxu0 0.0
        %1328 = vmatprep.subr.mxu0 0.0
        %1329 = vmatpush1.xpose.msra.mxu0 0.0
        %1330 = vmatprep.subr.mxu0 0.0
        %1331 = vmatpush1.xpose.msra.mxu0 0.0
        %1332 = vmatprep.subr.mxu0 0.0
        %1333 = vmatpush1.xpose.msra.mxu0 0.0
        %1334 = vmatprep.subr.mxu0 0.0
        %1335 = vmatpush1.xpose.msra.mxu0 0.0
        %1336 = vmatprep.subr.mxu0 0.0
        %1337 = vmatpush1.xpose.msra.mxu0 0.0
        %1338 = vmatprep.subr.mxu0 0.0
        %1339 = vmatpush1.xpose.msra.mxu0 0.0
        %1340 = vmatprep.subr.mxu0 0.0
        %1341 = vmatpush1.xpose.msra.mxu0 0.0
        %1342 = vmatprep.subr.mxu0 0.0
        %1343 = vmatpush1.xpose.msra.mxu0 0.0
        %1344 = vmatprep.mubr.f32.mxu0 0.0
        %1345 = vmatmul.mubr.f32.gmra.mrb[0].mxu0 %v1275
        %v1346 = vpop.f32.mrb[0].mxu0
        %v1347 = vadd.f32 0.0, %v1346
        %v1348 = vpop.f32.mrb[0].mxu0
        %1349 = vdwg.mxu0
        %v1350 = vmul.f32 %v1119, 0.125
        %v1351 = vmul.f32 %v1195, 0.125
        %v1352 = vmul.f32 %v1271, 0.125
        %v1353 = vmul.f32 %v1347, 0.125
        %v1356 = vunpack.c.l.s4 1966171168
        %v1357 = vunpack.c.0.s8 %v1356
        %v1358 = vlaneseq
        %v1359 = vshrl.u32 %v1358, 7
        %v1360 = vsub.s32 %v1357, %v1359
        %v1361 = vrot.slane %v749, %v1360
        %v1362 = vcombine.high %v1361, %v1361
        %v1364 = vunpack.c.l.s4 1966171168
        %v1365 = vunpack.c.0.s8 %v1364
        %v1366 = vlaneseq
        %v1367 = vshrl.u32 %v1366, 7
        %v1368 = vsub.s32 %v1365, %v1367
        %v1369 = vrot.slane %v1361, %v1368
        %v1371 = vunpack.c.l.s4 1966171168
        %v1372 = vunpack.c.0.s8 %v1371
        %v1373 = vlaneseq
        %v1374 = vshrl.u32 %v1373, 7
        %v1375 = vsub.s32 %v1372, %v1374
        %v1376 = vrot.slane %v1362, %v1375
        %v1377 = vcombine.high %v1369, %v1369
        %v1378 = vcombine.high %v1376, %v1376
        %v1379 = vlaneseq
        %v1380 = vshrl.u32 %v1379, 7
        %v1381 = vsub.s32 0, %v1380
        %v1382 = vrot.slane %v1369, %v1381
        %v1383 = vlaneseq
        %v1384 = vshrl.u32 %v1383, 7
        %v1385 = vsub.s32 0, %v1384
        %v1386 = vrot.slane %v1376, %v1385
        %v1387 = vlaneseq
        %v1388 = vshrl.u32 %v1387, 7
        %v1389 = vsub.s32 0, %v1388
        %v1390 = vrot.slane %v1377, %v1389
        %v1391 = vlaneseq
        %v1392 = vshrl.u32 %v1391, 7
        %v1393 = vsub.s32 0, %v1392
        %v1394 = vrot.slane %v1378, %v1393
        %v1399 = vadd.f32 %v1350, %v1382
        %v1400 = vadd.f32 %v1351, %v1386
        %v1401 = vadd.f32 %v1352, %v1390
        %v1402 = vadd.f32 %v1353, %v1394
        %vm1403 = vcmask 64512
        %v1404 = vsel %vm1403, %v1399, -inf
        %1405 = vmax.xlane.f32.xlu0 %v1404
        %v1406 = vpop.xlane.xlu0 %1405
        %v1407 = vsel %vm1403, %v1400, -inf
        %1408 = vmax.xlane.f32.xlu0 %v1407
        %v1409 = vpop.xlane.xlu0 %1408
        %v1410 = vsel %vm1403, %v1401, -inf
        %1411 = vmax.xlane.f32.xlu0 %v1410
        %v1412 = vpop.xlane.xlu0 %1411
        %v1413 = vsel %vm1403, %v1402, -inf
        %1414 = vmax.xlane.f32.xlu0 %v1413
        %v1415 = vpop.xlane.xlu0 %1414
        %v1416 = vsub.f32 %v1399, %v1406
        %v1417 = vsub.f32 %v1400, %v1409
        %v1418 = vsub.f32 %v1401, %v1412
        %v1419 = vsub.f32 %v1402, %v1415
        %v1420 = vmul.f32 %v1416, 1.442695
        %v1421 = vpow.pop %v1420
        %v1422 = vmul.f32 %v1417, 1.442695
        %v1423 = vpow.pop %v1422
        %v1424 = vmul.f32 %v1418, 1.442695
        %v1425 = vpow.pop %v1424
        %v1426 = vmul.f32 %v1419, 1.442695
        %v1427 = vpow.pop %v1426
        %v1428 = vsel %vm1403, %v1421, 0.0
        %1429 = vadd.xlane.f32.xlu0 %v1428
        %v1430 = vpop.xlane.xlu0 %1429
        %v1431 = vsel %vm1403, %v1423, 0.0
        %1432 = vadd.xlane.f32.xlu0 %v1431
        %v1433 = vpop.xlane.xlu0 %1432
        %v1434 = vsel %vm1403, %v1425, 0.0
        %1435 = vadd.xlane.f32.xlu0 %v1434
        %v1436 = vpop.xlane.xlu0 %1435
        %v1437 = vsel %vm1403, %v1427, 0.0
        %1438 = vadd.xlane.f32.xlu0 %v1437
        %v1439 = vpop.xlane.xlu0 %1438
        %v1440 = vrcp.pop %v1430
        %v1441 = vrcp.pop %v1433
        %v1442 = vrcp.pop %v1436
        %v1443 = vrcp.pop %v1439
        %v1444 = vmul.f32 %v1421, %v1440
        %v1445 = vmul.f32 %v1423, %v1441
        %v1446 = vmul.f32 %v1425, %v1442
        %v1447 = vmul.f32 %v1427, %v1443
        %v1449 = vsel %vm1403, %v1444, 0
        %1451 = vmatprep.subr.mxu0 0.0
        %1452 = vmatpush1.msra.mxu0 %v1015
        %1453 = vmatprep.subr.mxu0 0.0
        %1454 = vmatpush1.msra.mxu0 0.0
        %1455 = vmatprep.subr.mxu0 0.0
        %1456 = vmatpush1.msra.mxu0 0.0
        %1457 = vmatprep.subr.mxu0 0.0
        %1458 = vmatpush1.msra.mxu0 0.0
        %1459 = vmatprep.subr.mxu0 0.0
        %1460 = vmatpush1.msra.mxu0 0.0
        %1461 = vmatprep.subr.mxu0 0.0
        %1462 = vmatpush1.msra.mxu0 0.0
        %1463 = vmatprep.subr.mxu0 0.0
        %1464 = vmatpush1.msra.mxu0 0.0
        %1465 = vmatprep.subr.mxu0 0.0
        %1466 = vmatpush1.msra.mxu0 0.0
        %1467 = vmatprep.subr.mxu0 0.0
        %1468 = vmatpush1.msra.mxu0 0.0
        %1469 = vmatprep.subr.mxu0 0.0
        %1470 = vmatpush1.msra.mxu0 0.0
        %1471 = vmatprep.subr.mxu0 0.0
        %1472 = vmatpush1.msra.mxu0 0.0
        %1473 = vmatprep.subr.mxu0 0.0
        %1474 = vmatpush1.msra.mxu0 0.0
        %1475 = vmatprep.subr.mxu0 0.0
        %1476 = vmatpush1.msra.mxu0 0.0
        %1477 = vmatprep.subr.mxu0 0.0
        %1478 = vmatpush1.msra.mxu0 0.0
        %1479 = vmatprep.subr.mxu0 0.0
        %1480 = vmatpush1.msra.mxu0 0.0
        %1481 = vmatprep.subr.mxu0 0.0
        %1482 = vmatpush1.msra.mxu0 0.0
        %1483 = vmatprep.subr.mxu0 0.0
        %1484 = vmatpush1.msra.mxu0 0.0
        %1485 = vmatprep.subr.mxu0 0.0
        %1486 = vmatpush1.msra.mxu0 0.0
        %1487 = vmatprep.subr.mxu0 0.0
        %1488 = vmatpush1.msra.mxu0 0.0
        %1489 = vmatprep.subr.mxu0 0.0
        %1490 = vmatpush1.msra.mxu0 0.0
        %1491 = vmatprep.subr.mxu0 0.0
        %1492 = vmatpush1.msra.mxu0 0.0
        %1493 = vmatprep.subr.mxu0 0.0
        %1494 = vmatpush1.msra.mxu0 0.0
        %1495 = vmatprep.subr.mxu0 0.0
        %1496 = vmatpush1.msra.mxu0 0.0
        %1497 = vmatprep.subr.mxu0 0.0
        %1498 = vmatpush1.msra.mxu0 0.0
        %1499 = vmatprep.subr.mxu0 0.0
        %1500 = vmatpush1.msra.mxu0 0.0
        %1501 = vmatprep.subr.mxu0 0.0
        %1502 = vmatpush1.msra.mxu0 0.0
        %1503 = vmatprep.subr.mxu0 0.0
        %1504 = vmatpush1.msra.mxu0 0.0
        %1505 = vmatprep.subr.mxu0 0.0
        %1506 = vmatpush1.msra.mxu0 0.0
        %1507 = vmatprep.subr.mxu0 0.0
        %1508 = vmatpush1.msra.mxu0 0.0
        %1509 = vmatprep.subr.mxu0 0.0
        %1510 = vmatpush1.msra.mxu0 0.0
        %1511 = vmatprep.subr.mxu0 0.0
        %1512 = vmatpush1.msra.mxu0 0.0
        %1513 = vmatprep.subr.mxu0 0.0
        %1514 = vmatpush1.msra.mxu0 0.0
        %1515 = vmatprep.mubr.f32.mxu0 0.0
        %1516 = vmatmul.mubr.f32.gmra.mrb[0].mxu0 %v1449
        %v1517 = vpop.f32.mrb[0].mxu0
        %v1518 = vadd.f32 0.0, %v1517
        %v1519 = vpop.f32.mrb[0].mxu0
        %1520 = vdwg.mxu0
        %v1522 = vsel %vm1403, %v1445, 0
        %1524 = vmatprep.subr.mxu0 0.0
        %1525 = vmatpush1.msra.mxu0 %v1018
        %1526 = vmatprep.subr.mxu0 0.0
        %1527 = vmatpush1.msra.mxu0 0.0
        %1528 = vmatprep.subr.mxu0 0.0
        %1529 = vmatpush1.msra.mxu0 0.0
        %1530 = vmatprep.subr.mxu0 0.0
        %1531 = vmatpush1.msra.mxu0 0.0
        %1532 = vmatprep.subr.mxu0 0.0
        %1533 = vmatpush1.msra.mxu0 0.0
        %1534 = vmatprep.subr.mxu0 0.0
        %1535 = vmatpush1.msra.mxu0 0.0
        %1536 = vmatprep.subr.mxu0 0.0
        %1537 = vmatpush1.msra.mxu0 0.0
        %1538 = vmatprep.subr.mxu0 0.0
        %1539 = vmatpush1.msra.mxu0 0.0
        %1540 = vmatprep.subr.mxu0 0.0
        %1541 = vmatpush1.msra.mxu0 0.0
        %1542 = vmatprep.subr.mxu0 0.0
        %1543 = vmatpush1.msra.mxu0 0.0
        %1544 = vmatprep.subr.mxu0 0.0
        %1545 = vmatpush1.msra.mxu0 0.0
        %1546 = vmatprep.subr.mxu0 0.0
        %1547 = vmatpush1.msra.mxu0 0.0
        %1548 = vmatprep.subr.mxu0 0.0
        %1549 = vmatpush1.msra.mxu0 0.0
        %1550 = vmatprep.subr.mxu0 0.0
        %1551 = vmatpush1.msra.mxu0 0.0
        %1552 = vmatprep.subr.mxu0 0.0
        %1553 = vmatpush1.msra.mxu0 0.0
        %1554 = vmatprep.subr.mxu0 0.0
        %1555 = vmatpush1.msra.mxu0 0.0
        %1556 = vmatprep.subr.mxu0 0.0
        %1557 = vmatpush1.msra.mxu0 0.0
        %1558 = vmatprep.subr.mxu0 0.0
        %1559 = vmatpush1.msra.mxu0 0.0
        %1560 = vmatprep.subr.mxu0 0.0
        %1561 = vmatpush1.msra.mxu0 0.0
        %1562 = vmatprep.subr.mxu0 0.0
        %1563 = vmatpush1.msra.mxu0 0.0
        %1564 = vmatprep.subr.mxu0 0.0
        %1565 = vmatpush1.msra.mxu0 0.0
        %1566 = vmatprep.subr.mxu0 0.0
        %1567 = vmatpush1.msra.mxu0 0.0
        %1568 = vmatprep.subr.mxu0 0.0
        %1569 = vmatpush1.msra.mxu0 0.0
        %1570 = vmatprep.subr.mxu0 0.0
        %1571 = vmatpush1.msra.mxu0 0.0
        %1572 = vmatprep.subr.mxu0 0.0
        %1573 = vmatpush1.msra.mxu0 0.0
        %1574 = vmatprep.subr.mxu0 0.0
        %1575 = vmatpush1.msra.mxu0 0.0
        %1576 = vmatprep.subr.mxu0 0.0
        %1577 = vmatpush1.msra.mxu0 0.0
        %1578 = vmatprep.subr.mxu0 0.0
        %1579 = vmatpush1.msra.mxu0 0.0
        %1580 = vmatprep.subr.mxu0 0.0
        %1581 = vmatpush1.msra.mxu0 0.0
        %1582 = vmatprep.subr.mxu0 0.0
        %1583 = vmatpush1.msra.mxu0 0.0
        %1584 = vmatprep.subr.mxu0 0.0
        %1585 = vmatpush1.msra.mxu0 0.0
        %1586 = vmatprep.subr.mxu0 0.0
        %1587 = vmatpush1.msra.mxu0 0.0
        %1588 = vmatprep.mubr.f32.mxu0 0.0
        %1589 = vmatmul.mubr.f32.gmra.mrb[0].mxu0 %v1522
        %v1590 = vpop.f32.mrb[0].mxu0
        %v1591 = vadd.f32 0.0, %v1590
        %v1592 = vpop.f32.mrb[0].mxu0
        %1593 = vdwg.mxu0
        %v1595 = vsel %vm1403, %v1446, 0
        %1597 = vmatprep.subr.mxu0 0.0
        %1598 = vmatpush1.msra.mxu0 %v1023
        %1599 = vmatprep.subr.mxu0 0.0
        %1600 = vmatpush1.msra.mxu0 0.0
        %1601 = vmatprep.subr.mxu0 0.0
        %1602 = vmatpush1.msra.mxu0 0.0
        %1603 = vmatprep.subr.mxu0 0.0
        %1604 = vmatpush1.msra.mxu0 0.0
        %1605 = vmatprep.subr.mxu0 0.0
        %1606 = vmatpush1.msra.mxu0 0.0
        %1607 = vmatprep.subr.mxu0 0.0
        %1608 = vmatpush1.msra.mxu0 0.0
        %1609 = vmatprep.subr.mxu0 0.0
        %1610 = vmatpush1.msra.mxu0 0.0
        %1611 = vmatprep.subr.mxu0 0.0
        %1612 = vmatpush1.msra.mxu0 0.0
        %1613 = vmatprep.subr.mxu0 0.0
        %1614 = vmatpush1.msra.mxu0 0.0
        %1615 = vmatprep.subr.mxu0 0.0
        %1616 = vmatpush1.msra.mxu0 0.0
        %1617 = vmatprep.subr.mxu0 0.0
        %1618 = vmatpush1.msra.mxu0 0.0
        %1619 = vmatprep.subr.mxu0 0.0
        %1620 = vmatpush1.msra.mxu0 0.0
        %1621 = vmatprep.subr.mxu0 0.0
        %1622 = vmatpush1.msra.mxu0 0.0
        %1623 = vmatprep.subr.mxu0 0.0
        %1624 = vmatpush1.msra.mxu0 0.0
        %1625 = vmatprep.subr.mxu0 0.0
        %1626 = vmatpush1.msra.mxu0 0.0
        %1627 = vmatprep.subr.mxu0 0.0
        %1628 = vmatpush1.msra.mxu0 0.0
        %1629 = vmatprep.subr.mxu0 0.0
        %1630 = vmatpush1.msra.mxu0 0.0
        %1631 = vmatprep.subr.mxu0 0.0
        %1632 = vmatpush1.msra.mxu0 0.0
        %1633 = vmatprep.subr.mxu0 0.0
        %1634 = vmatpush1.msra.mxu0 0.0
        %1635 = vmatprep.subr.mxu0 0.0
        %1636 = vmatpush1.msra.mxu0 0.0
        %1637 = vmatprep.subr.mxu0 0.0
        %1638 = vmatpush1.msra.mxu0 0.0
        %1639 = vmatprep.subr.mxu0 0.0
        %1640 = vmatpush1.msra.mxu0 0.0
        %1641 = vmatprep.subr.mxu0 0.0
        %1642 = vmatpush1.msra.mxu0 0.0
        %1643 = vmatprep.subr.mxu0 0.0
        %1644 = vmatpush1.msra.mxu0 0.0
        %1645 = vmatprep.subr.mxu0 0.0
        %1646 = vmatpush1.msra.mxu0 0.0
        %1647 = vmatprep.subr.mxu0 0.0
        %1648 = vmatpush1.msra.mxu0 0.0
        %1649 = vmatprep.subr.mxu0 0.0
        %1650 = vmatpush1.msra.mxu0 0.0
        %1651 = vmatprep.subr.mxu0 0.0
        %1652 = vmatpush1.msra.mxu0 0.0
        %1653 = vmatprep.subr.mxu0 0.0
        %1654 = vmatpush1.msra.mxu0 0.0
        %1655 = vmatprep.subr.mxu0 0.0
        %1656 = vmatpush1.msra.mxu0 0.0
        %1657 = vmatprep.subr.mxu0 0.0
        %1658 = vmatpush1.msra.mxu0 0.0
        %1659 = vmatprep.subr.mxu0 0.0
        %1660 = vmatpush1.msra.mxu0 0.0
        %1661 = vmatprep.mubr.f32.mxu0 0.0
        %1662 = vmatmul.mubr.f32.gmra.mrb[0].mxu0 %v1595
        %v1663 = vpop.f32.mrb[0].mxu0
        %v1664 = vadd.f32 0.0, %v1663
        %v1665 = vpop.f32.mrb[0].mxu0
        %1666 = vdwg.mxu0
        %v1668 = vsel %vm1403, %v1447, 0
        %1670 = vmatprep.subr.mxu0 0.0
        %1671 = vmatpush1.msra.mxu0 %v1026
        %1672 = vmatprep.subr.mxu0 0.0
        %1673 = vmatpush1.msra.mxu0 0.0
        %1674 = vmatprep.subr.mxu0 0.0
        %1675 = vmatpush1.msra.mxu0 0.0
        %1676 = vmatprep.subr.mxu0 0.0
        %1677 = vmatpush1.msra.mxu0 0.0
        %1678 = vmatprep.subr.mxu0 0.0
        %1679 = vmatpush1.msra.mxu0 0.0
        %1680 = vmatprep.subr.mxu0 0.0
        %1681 = vmatpush1.msra.mxu0 0.0
        %1682 = vmatprep.subr.mxu0 0.0
        %1683 = vmatpush1.msra.mxu0 0.0
        %1684 = vmatprep.subr.mxu0 0.0
        %1685 = vmatpush1.msra.mxu0 0.0
        %1686 = vmatprep.subr.mxu0 0.0
        %1687 = vmatpush1.msra.mxu0 0.0
        %1688 = vmatprep.subr.mxu0 0.0
        %1689 = vmatpush1.msra.mxu0 0.0
        %1690 = vmatprep.subr.mxu0 0.0
        %1691 = vmatpush1.msra.mxu0 0.0
        %1692 = vmatprep.subr.mxu0 0.0
        %1693 = vmatpush1.msra.mxu0 0.0
        %1694 = vmatprep.subr.mxu0 0.0
        %1695 = vmatpush1.msra.mxu0 0.0
        %1696 = vmatprep.subr.mxu0 0.0
        %1697 = vmatpush1.msra.mxu0 0.0
        %1698 = vmatprep.subr.mxu0 0.0
        %1699 = vmatpush1.msra.mxu0 0.0
        %1700 = vmatprep.subr.mxu0 0.0
        %1701 = vmatpush1.msra.mxu0 0.0
        %1702 = vmatprep.subr.mxu0 0.0
        %1703 = vmatpush1.msra.mxu0 0.0
        %1704 = vmatprep.subr.mxu0 0.0
        %1705 = vmatpush1.msra.mxu0 0.0
        %1706 = vmatprep.subr.mxu0 0.0
        %1707 = vmatpush1.msra.mxu0 0.0
        %1708 = vmatprep.subr.mxu0 0.0
        %1709 = vmatpush1.msra.mxu0 0.0
        %1710 = vmatprep.subr.mxu0 0.0
        %1711 = vmatpush1.msra.mxu0 0.0
        %1712 = vmatprep.subr.mxu0 0.0
        %1713 = vmatpush1.msra.mxu0 0.0
        %1714 = vmatprep.subr.mxu0 0.0
        %1715 = vmatpush1.msra.mxu0 0.0
        %1716 = vmatprep.subr.mxu0 0.0
        %1717 = vmatpush1.msra.mxu0 0.0
        %1718 = vmatprep.subr.mxu0 0.0
        %1719 = vmatpush1.msra.mxu0 0.0
        %1720 = vmatprep.subr.mxu0 0.0
        %1721 = vmatpush1.msra.mxu0 0.0
        %1722 = vmatprep.subr.mxu0 0.0
        %1723 = vmatpush1.msra.mxu0 0.0
        %1724 = vmatprep.subr.mxu0 0.0
        %1725 = vmatpush1.msra.mxu0 0.0
        %1726 = vmatprep.subr.mxu0 0.0
        %1727 = vmatpush1.msra.mxu0 0.0
        %1728 = vmatprep.subr.mxu0 0.0
        %1729 = vmatpush1.msra.mxu0 0.0
        %1730 = vmatprep.subr.mxu0 0.0
        %1731 = vmatpush1.msra.mxu0 0.0
        %1732 = vmatprep.subr.mxu0 0.0
        %1733 = vmatpush1.msra.mxu0 0.0
        %1734 = vmatprep.mubr.f32.mxu0 0.0
        %1735 = vmatmul.mubr.f32.gmra.mrb[0].mxu0 %v1668
        %v1736 = vpop.f32.mrb[0].mxu0
        %v1737 = vadd.f32 0.0, %v1736
        %v1738 = vpop.f32.mrb[0].mxu0
        %1739 = vdwg.mxu0
        %v1740 = vpack.c.bf16 %v1591, %v1518
        %v1741 = vpack.c.bf16 %v1737, %v1664
        %1742 = vrot.lane.b32.xlu0 %v962, 64
        %v1743 = vpop.permute.xlu0 %1742
        %1744 = vrot.lane.b32.xlu0 %v964, 64
        %v1745 = vpop.permute.xlu0 %1744
        %v1746 = vsel %vm1045, %v1743, 0
        %v1748 = vsel %vm1045, %v1745, 0
        %1750 = vmatprep.subr.mxu0 0.0
        %1751 = vmatpush1.xpose.msra.mxu0 %v1748
        %1752 = vmatprep.subr.mxu0 0.0
        %1753 = vmatpush1.xpose.msra.mxu0 0.0
        %1754 = vmatprep.subr.mxu0 0.0
        %1755 = vmatpush1.xpose.msra.mxu0 0.0
        %1756 = vmatprep.subr.mxu0 0.0
        %1757 = vmatpush1.xpose.msra.mxu0 0.0
        %1758 = vmatprep.subr.mxu0 0.0
        %1759 = vmatpush1.xpose.msra.mxu0 0.0
        %1760 = vmatprep.subr.mxu0 0.0
        %1761 = vmatpush1.xpose.msra.mxu0 0.0
        %1762 = vmatprep.subr.mxu0 0.0
        %1763 = vmatpush1.xpose.msra.mxu0 0.0
        %1764 = vmatprep.subr.mxu0 0.0
        %1765 = vmatpush1.xpose.msra.mxu0 0.0
        %1766 = vmatprep.subr.mxu0 0.0
        %1767 = vmatpush1.xpose.msra.mxu0 0.0
        %1768 = vmatprep.subr.mxu0 0.0
        %1769 = vmatpush1.xpose.msra.mxu0 0.0
        %1770 = vmatprep.subr.mxu0 0.0
        %1771 = vmatpush1.xpose.msra.mxu0 0.0
        %1772 = vmatprep.subr.mxu0 0.0
        %1773 = vmatpush1.xpose.msra.mxu0 0.0
        %1774 = vmatprep.subr.mxu0 0.0
        %1775 = vmatpush1.xpose.msra.mxu0 0.0
        %1776 = vmatprep.subr.mxu0 0.0
        %1777 = vmatpush1.xpose.msra.mxu0 0.0
        %1778 = vmatprep.subr.mxu0 0.0
        %1779 = vmatpush1.xpose.msra.mxu0 0.0
        %1780 = vmatprep.subr.mxu0 0.0
        %1781 = vmatpush1.xpose.msra.mxu0 0.0
        %1782 = vmatprep.subr.mxu0 0.0
        %1783 = vmatpush1.xpose.msra.mxu0 0.0
        %1784 = vmatprep.subr.mxu0 0.0
        %1785 = vmatpush1.xpose.msra.mxu0 0.0
        %1786 = vmatprep.subr.mxu0 0.0
        %1787 = vmatpush1.xpose.msra.mxu0 0.0
        %1788 = vmatprep.subr.mxu0 0.0
        %1789 = vmatpush1.xpose.msra.mxu0 0.0
        %1790 = vmatprep.subr.mxu0 0.0
        %1791 = vmatpush1.xpose.msra.mxu0 0.0
        %1792 = vmatprep.subr.mxu0 0.0
        %1793 = vmatpush1.xpose.msra.mxu0 0.0
        %1794 = vmatprep.subr.mxu0 0.0
        %1795 = vmatpush1.xpose.msra.mxu0 0.0
        %1796 = vmatprep.subr.mxu0 0.0
        %1797 = vmatpush1.xpose.msra.mxu0 0.0
        %1798 = vmatprep.subr.mxu0 0.0
        %1799 = vmatpush1.xpose.msra.mxu0 0.0
        %1800 = vmatprep.subr.mxu0 0.0
        %1801 = vmatpush1.xpose.msra.mxu0 0.0
        %1802 = vmatprep.subr.mxu0 0.0
        %1803 = vmatpush1.xpose.msra.mxu0 0.0
        %1804 = vmatprep.subr.mxu0 0.0
        %1805 = vmatpush1.xpose.msra.mxu0 0.0
        %1806 = vmatprep.subr.mxu0 0.0
        %1807 = vmatpush1.xpose.msra.mxu0 0.0
        %1808 = vmatprep.subr.mxu0 0.0
        %1809 = vmatpush1.xpose.msra.mxu0 0.0
        %1810 = vmatprep.subr.mxu0 0.0
        %1811 = vmatpush1.xpose.msra.mxu0 0.0
        %1812 = vmatprep.subr.mxu0 0.0
        %1813 = vmatpush1.xpose.msra.mxu0 0.0
        %1814 = vmatprep.mubr.f32.mxu0 0.0
        %1815 = vmatmul.mubr.f32.gmra.mrb[0].mxu0 %v1746
        %v1816 = vpop.f32.mrb[0].mxu0
        %v1817 = vadd.f32 0.0, %v1816
        %v1818 = vpop.f32.mrb[0].mxu0
        %1819 = vdwg.mxu0
        %1820 = vrot.lane.b32.xlu0 %v966, 64
        %v1821 = vpop.permute.xlu0 %1820
        %1822 = vrot.lane.b32.xlu0 %v968, 64
        %v1823 = vpop.permute.xlu0 %1822
        %v1824 = vsel %vm1045, %v1821, 0
        %v1826 = vsel %vm1045, %v1823, 0
        %1828 = vmatprep.subr.mxu0 0.0
        %1829 = vmatpush1.xpose.msra.mxu0 %v1826
        %1830 = vmatprep.subr.mxu0 0.0
        %1831 = vmatpush1.xpose.msra.mxu0 0.0
        %1832 = vmatprep.subr.mxu0 0.0
        %1833 = vmatpush1.xpose.msra.mxu0 0.0
        %1834 = vmatprep.subr.mxu0 0.0
        %1835 = vmatpush1.xpose.msra.mxu0 0.0
        %1836 = vmatprep.subr.mxu0 0.0
        %1837 = vmatpush1.xpose.msra.mxu0 0.0
        %1838 = vmatprep.subr.mxu0 0.0
        %1839 = vmatpush1.xpose.msra.mxu0 0.0
        %1840 = vmatprep.subr.mxu0 0.0
        %1841 = vmatpush1.xpose.msra.mxu0 0.0
        %1842 = vmatprep.subr.mxu0 0.0
        %1843 = vmatpush1.xpose.msra.mxu0 0.0
        %1844 = vmatprep.subr.mxu0 0.0
        %1845 = vmatpush1.xpose.msra.mxu0 0.0
        %1846 = vmatprep.subr.mxu0 0.0
        %1847 = vmatpush1.xpose.msra.mxu0 0.0
        %1848 = vmatprep.subr.mxu0 0.0
        %1849 = vmatpush1.xpose.msra.mxu0 0.0
        %1850 = vmatprep.subr.mxu0 0.0
        %1851 = vmatpush1.xpose.msra.mxu0 0.0
        %1852 = vmatprep.subr.mxu0 0.0
        %1853 = vmatpush1.xpose.msra.mxu0 0.0
        %1854 = vmatprep.subr.mxu0 0.0
        %1855 = vmatpush1.xpose.msra.mxu0 0.0
        %1856 = vmatprep.subr.mxu0 0.0
        %1857 = vmatpush1.xpose.msra.mxu0 0.0
        %1858 = vmatprep.subr.mxu0 0.0
        %1859 = vmatpush1.xpose.msra.mxu0 0.0
        %1860 = vmatprep.subr.mxu0 0.0
        %1861 = vmatpush1.xpose.msra.mxu0 0.0
        %1862 = vmatprep.subr.mxu0 0.0
        %1863 = vmatpush1.xpose.msra.mxu0 0.0
        %1864 = vmatprep.subr.mxu0 0.0
        %1865 = vmatpush1.xpose.msra.mxu0 0.0
        %1866 = vmatprep.subr.mxu0 0.0
        %1867 = vmatpush1.xpose.msra.mxu0 0.0
        %1868 = vmatprep.subr.mxu0 0.0
        %1869 = vmatpush1.xpose.msra.mxu0 0.0
        %1870 = vmatprep.subr.mxu0 0.0
        %1871 = vmatpush1.xpose.msra.mxu0 0.0
        %1872 = vmatprep.subr.mxu0 0.0
        %1873 = vmatpush1.xpose.msra.mxu0 0.0
        %1874 = vmatprep.subr.mxu0 0.0
        %1875 = vmatpush1.xpose.msra.mxu0 0.0
        %1876 = vmatprep.subr.mxu0 0.0
        %1877 = vmatpush1.xpose.msra.mxu0 0.0
        %1878 = vmatprep.subr.mxu0 0.0
        %1879 = vmatpush1.xpose.msra.mxu0 0.0
        %1880 = vmatprep.subr.mxu0 0.0
        %1881 = vmatpush1.xpose.msra.mxu0 0.0
        %1882 = vmatprep.subr.mxu0 0.0
        %1883 = vmatpush1.xpose.msra.mxu0 0.0
        %1884 = vmatprep.subr.mxu0 0.0
        %1885 = vmatpush1.xpose.msra.mxu0 0.0
        %1886 = vmatprep.subr.mxu0 0.0
        %1887 = vmatpush1.xpose.msra.mxu0 0.0
        %1888 = vmatprep.subr.mxu0 0.0
        %1889 = vmatpush1.xpose.msra.mxu0 0.0
        %1890 = vmatprep.subr.mxu0 0.0
        %1891 = vmatpush1.xpose.msra.mxu0 0.0
        %1892 = vmatprep.mubr.f32.mxu0 0.0
        %1893 = vmatmul.mubr.f32.gmra.mrb[0].mxu0 %v1824
        %v1894 = vpop.f32.mrb[0].mxu0
        %v1895 = vadd.f32 0.0, %v1894
        %v1896 = vpop.f32.mrb[0].mxu0
        %1897 = vdwg.mxu0
        %1898 = vrot.lane.b32.xlu0 %v972, 64
        %v1899 = vpop.permute.xlu0 %1898
        %1900 = vrot.lane.b32.xlu0 %v974, 64
        %v1901 = vpop.permute.xlu0 %1900
        %v1902 = vsel %vm1045, %v1899, 0
        %v1904 = vsel %vm1045, %v1901, 0
        %1906 = vmatprep.subr.mxu0 0.0
        %1907 = vmatpush1.xpose.msra.mxu0 %v1904
        %1908 = vmatprep.subr.mxu0 0.0
        %1909 = vmatpush1.xpose.msra.mxu0 0.0
        %1910 = vmatprep.subr.mxu0 0.0
        %1911 = vmatpush1.xpose.msra.mxu0 0.0
        %1912 = vmatprep.subr.mxu0 0.0
        %1913 = vmatpush1.xpose.msra.mxu0 0.0
        %1914 = vmatprep.subr.mxu0 0.0
        %1915 = vmatpush1.xpose.msra.mxu0 0.0
        %1916 = vmatprep.subr.mxu0 0.0
        %1917 = vmatpush1.xpose.msra.mxu0 0.0
        %1918 = vmatprep.subr.mxu0 0.0
        %1919 = vmatpush1.xpose.msra.mxu0 0.0
        %1920 = vmatprep.subr.mxu0 0.0
        %1921 = vmatpush1.xpose.msra.mxu0 0.0
        %1922 = vmatprep.subr.mxu0 0.0
        %1923 = vmatpush1.xpose.msra.mxu0 0.0
        %1924 = vmatprep.subr.mxu0 0.0
        %1925 = vmatpush1.xpose.msra.mxu0 0.0
        %1926 = vmatprep.subr.mxu0 0.0
        %1927 = vmatpush1.xpose.msra.mxu0 0.0
        %1928 = vmatprep.subr.mxu0 0.0
        %1929 = vmatpush1.xpose.msra.mxu0 0.0
        %1930 = vmatprep.subr.mxu0 0.0
        %1931 = vmatpush1.xpose.msra.mxu0 0.0
        %1932 = vmatprep.subr.mxu0 0.0
        %1933 = vmatpush1.xpose.msra.mxu0 0.0
        %1934 = vmatprep.subr.mxu0 0.0
        %1935 = vmatpush1.xpose.msra.mxu0 0.0
        %1936 = vmatprep.subr.mxu0 0.0
        %1937 = vmatpush1.xpose.msra.mxu0 0.0
        %1938 = vmatprep.subr.mxu0 0.0
        %1939 = vmatpush1.xpose.msra.mxu0 0.0
        %1940 = vmatprep.subr.mxu0 0.0
        %1941 = vmatpush1.xpose.msra.mxu0 0.0
        %1942 = vmatprep.subr.mxu0 0.0
        %1943 = vmatpush1.xpose.msra.mxu0 0.0
        %1944 = vmatprep.subr.mxu0 0.0
        %1945 = vmatpush1.xpose.msra.mxu0 0.0
        %1946 = vmatprep.subr.mxu0 0.0
        %1947 = vmatpush1.xpose.msra.mxu0 0.0
        %1948 = vmatprep.subr.mxu0 0.0
        %1949 = vmatpush1.xpose.msra.mxu0 0.0
        %1950 = vmatprep.subr.mxu0 0.0
        %1951 = vmatpush1.xpose.msra.mxu0 0.0
        %1952 = vmatprep.subr.mxu0 0.0
        %1953 = vmatpush1.xpose.msra.mxu0 0.0
        %1954 = vmatprep.subr.mxu0 0.0
        %1955 = vmatpush1.xpose.msra.mxu0 0.0
        %1956 = vmatprep.subr.mxu0 0.0
        %1957 = vmatpush1.xpose.msra.mxu0 0.0
        %1958 = vmatprep.subr.mxu0 0.0
        %1959 = vmatpush1.xpose.msra.mxu0 0.0
        %1960 = vmatprep.subr.mxu0 0.0
        %1961 = vmatpush1.xpose.msra.mxu0 0.0
        %1962 = vmatprep.subr.mxu0 0.0
        %1963 = vmatpush1.xpose.msra.mxu0 0.0
        %1964 = vmatprep.subr.mxu0 0.0
        %1965 = vmatpush1.xpose.msra.mxu0 0.0
        %1966 = vmatprep.subr.mxu0 0.0
        %1967 = vmatpush1.xpose.msra.mxu0 0.0
        %1968 = vmatprep.subr.mxu0 0.0
        %1969 = vmatpush1.xpose.msra.mxu0 0.0
        %1970 = vmatprep.mubr.f32.mxu0 0.0
        %1971 = vmatmul.mubr.f32.gmra.mrb[0].mxu0 %v1902
        %v1972 = vpop.f32.mrb[0].mxu0
        %v1973 = vadd.f32 0.0, %v1972
        %v1974 = vpop.f32.mrb[0].mxu0
        %1975 = vdwg.mxu0
        %1976 = vrot.lane.b32.xlu0 %v976, 64
        %v1977 = vpop.permute.xlu0 %1976
        %1978 = vrot.lane.b32.xlu0 %v978, 64
        %v1979 = vpop.permute.xlu0 %1978
        %v1980 = vsel %vm1045, %v1977, 0
        %v1982 = vsel %vm1045, %v1979, 0
        %1984 = vmatprep.subr.mxu0 0.0
        %1985 = vmatpush1.xpose.msra.mxu0 %v1982
        %1986 = vmatprep.subr.mxu0 0.0
        %1987 = vmatpush1.xpose.msra.mxu0 0.0
        %1988 = vmatprep.subr.mxu0 0.0
        %1989 = vmatpush1.xpose.msra.mxu0 0.0
        %1990 = vmatprep.subr.mxu0 0.0
        %1991 = vmatpush1.xpose.msra.mxu0 0.0
        %1992 = vmatprep.subr.mxu0 0.0
        %1993 = vmatpush1.xpose.msra.mxu0 0.0
        %1994 = vmatprep.subr.mxu0 0.0
        %1995 = vmatpush1.xpose.msra.mxu0 0.0
        %1996 = vmatprep.subr.mxu0 0.0
        %1997 = vmatpush1.xpose.msra.mxu0 0.0
        %1998 = vmatprep.subr.mxu0 0.0
        %1999 = vmatpush1.xpose.msra.mxu0 0.0
        %2000 = vmatprep.subr.mxu0 0.0
        %2001 = vmatpush1.xpose.msra.mxu0 0.0
        %2002 = vmatprep.subr.mxu0 0.0
        %2003 = vmatpush1.xpose.msra.mxu0 0.0
        %2004 = vmatprep.subr.mxu0 0.0
        %2005 = vmatpush1.xpose.msra.mxu0 0.0
        %2006 = vmatprep.subr.mxu0 0.0
        %2007 = vmatpush1.xpose.msra.mxu0 0.0
        %2008 = vmatprep.subr.mxu0 0.0
        %2009 = vmatpush1.xpose.msra.mxu0 0.0
        %2010 = vmatprep.subr.mxu0 0.0
        %2011 = vmatpush1.xpose.msra.mxu0 0.0
        %2012 = vmatprep.subr.mxu0 0.0
        %2013 = vmatpush1.xpose.msra.mxu0 0.0
        %2014 = vmatprep.subr.mxu0 0.0
        %2015 = vmatpush1.xpose.msra.mxu0 0.0
        %2016 = vmatprep.subr.mxu0 0.0
        %2017 = vmatpush1.xpose.msra.mxu0 0.0
        %2018 = vmatprep.subr.mxu0 0.0
        %2019 = vmatpush1.xpose.msra.mxu0 0.0
        %2020 = vmatprep.subr.mxu0 0.0
        %2021 = vmatpush1.xpose.msra.mxu0 0.0
        %2022 = vmatprep.subr.mxu0 0.0
        %2023 = vmatpush1.xpose.msra.mxu0 0.0
        %2024 = vmatprep.subr.mxu0 0.0
        %2025 = vmatpush1.xpose.msra.mxu0 0.0
        %2026 = vmatprep.subr.mxu0 0.0
        %2027 = vmatpush1.xpose.msra.mxu0 0.0
        %2028 = vmatprep.subr.mxu0 0.0
        %2029 = vmatpush1.xpose.msra.mxu0 0.0
        %2030 = vmatprep.subr.mxu0 0.0
        %2031 = vmatpush1.xpose.msra.mxu0 0.0
        %2032 = vmatprep.subr.mxu0 0.0
        %2033 = vmatpush1.xpose.msra.mxu0 0.0
        %2034 = vmatprep.subr.mxu0 0.0
        %2035 = vmatpush1.xpose.msra.mxu0 0.0
        %2036 = vmatprep.subr.mxu0 0.0
        %2037 = vmatpush1.xpose.msra.mxu0 0.0
        %2038 = vmatprep.subr.mxu0 0.0
        %2039 = vmatpush1.xpose.msra.mxu0 0.0
        %2040 = vmatprep.subr.mxu0 0.0
        %2041 = vmatpush1.xpose.msra.mxu0 0.0
        %2042 = vmatprep.subr.mxu0 0.0
        %2043 = vmatpush1.xpose.msra.mxu0 0.0
        %2044 = vmatprep.subr.mxu0 0.0
        %2045 = vmatpush1.xpose.msra.mxu0 0.0
        %2046 = vmatprep.subr.mxu0 0.0
        %2047 = vmatpush1.xpose.msra.mxu0 0.0
        %2048 = vmatprep.mubr.f32.mxu0 0.0
        %2049 = vmatmul.mubr.f32.gmra.mrb[0].mxu0 %v1980
        %v2050 = vpop.f32.mrb[0].mxu0
        %v2051 = vadd.f32 0.0, %v2050
        %v2052 = vpop.f32.mrb[0].mxu0
        %2053 = vdwg.mxu0
        %v2054 = vmul.f32 %v1817, 0.125
        %v2055 = vmul.f32 %v1895, 0.125
        %v2056 = vmul.f32 %v1973, 0.125
        %v2057 = vmul.f32 %v2051, 0.125
        %v2058 = vadd.f32 %v2054, %v1382
        %v2059 = vadd.f32 %v2055, %v1386
        %v2060 = vadd.f32 %v2056, %v1390
        %v2061 = vadd.f32 %v2057, %v1394
        %v2062 = vsel %vm1403, %v2058, -inf
        %2063 = vmax.xlane.f32.xlu0 %v2062
        %v2064 = vpop.xlane.xlu0 %2063
        %v2065 = vsel %vm1403, %v2059, -inf
        %2066 = vmax.xlane.f32.xlu0 %v2065
        %v2067 = vpop.xlane.xlu0 %2066
        %v2068 = vsel %vm1403, %v2060, -inf
        %2069 = vmax.xlane.f32.xlu0 %v2068
        %v2070 = vpop.xlane.xlu0 %2069
        %v2071 = vsel %vm1403, %v2061, -inf
        %2072 = vmax.xlane.f32.xlu0 %v2071
        %v2073 = vpop.xlane.xlu0 %2072
        %v2074 = vsub.f32 %v2058, %v2064
        %v2075 = vsub.f32 %v2059, %v2067
        %v2076 = vsub.f32 %v2060, %v2070
        %v2077 = vsub.f32 %v2061, %v2073
        %v2078 = vmul.f32 %v2074, 1.442695
        %v2079 = vpow.pop %v2078
        %v2080 = vmul.f32 %v2075, 1.442695
        %v2081 = vpow.pop %v2080
        %v2082 = vmul.f32 %v2076, 1.442695
        %v2083 = vpow.pop %v2082
        %v2084 = vmul.f32 %v2077, 1.442695
        %v2085 = vpow.pop %v2084
        %v2086 = vsel %vm1403, %v2079, 0.0
        %2087 = vadd.xlane.f32.xlu0 %v2086
        %v2088 = vpop.xlane.xlu0 %2087
        %v2089 = vsel %vm1403, %v2081, 0.0
        %2090 = vadd.xlane.f32.xlu0 %v2089
        %v2091 = vpop.xlane.xlu0 %2090
        %v2092 = vsel %vm1403, %v2083, 0.0
        %2093 = vadd.xlane.f32.xlu0 %v2092
        %v2094 = vpop.xlane.xlu0 %2093
        %v2095 = vsel %vm1403, %v2085, 0.0
        %2096 = vadd.xlane.f32.xlu0 %v2095
        %v2097 = vpop.xlane.xlu0 %2096
        %v2098 = vrcp.pop %v2088
        %v2099 = vrcp.pop %v2091
        %v2100 = vrcp.pop %v2094
        %v2101 = vrcp.pop %v2097
        %v2102 = vmul.f32 %v2079, %v2098
        %v2103 = vmul.f32 %v2081, %v2099
        %v2104 = vmul.f32 %v2083, %v2100
        %v2105 = vmul.f32 %v2085, %v2101
        %2107 = vrot.lane.b32.xlu0 %v1015, 64
        %v2108 = vpop.permute.xlu0 %2107
        %v2111 = vsel %vm1403, %v2102, 0
        %2113 = vmatprep.subr.mxu0 0.0
        %2114 = vmatpush1.msra.mxu0 %v2108
        %2115 = vmatprep.subr.mxu0 0.0
        %2116 = vmatpush1.msra.mxu0 0.0
        %2117 = vmatprep.subr.mxu0 0.0
        %2118 = vmatpush1.msra.mxu0 0.0
        %2119 = vmatprep.subr.mxu0 0.0
        %2120 = vmatpush1.msra.mxu0 0.0
        %2121 = vmatprep.subr.mxu0 0.0
        %2122 = vmatpush1.msra.mxu0 0.0
        %2123 = vmatprep.subr.mxu0 0.0
        %2124 = vmatpush1.msra.mxu0 0.0
        %2125 = vmatprep.subr.mxu0 0.0
        %2126 = vmatpush1.msra.mxu0 0.0
        %2127 = vmatprep.subr.mxu0 0.0
        %2128 = vmatpush1.msra.mxu0 0.0
        %2129 = vmatprep.subr.mxu0 0.0
        %2130 = vmatpush1.msra.mxu0 0.0
        %2131 = vmatprep.subr.mxu0 0.0
        %2132 = vmatpush1.msra.mxu0 0.0
        %2133 = vmatprep.subr.mxu0 0.0
        %2134 = vmatpush1.msra.mxu0 0.0
        %2135 = vmatprep.subr.mxu0 0.0
        %2136 = vmatpush1.msra.mxu0 0.0
        %2137 = vmatprep.subr.mxu0 0.0
        %2138 = vmatpush1.msra.mxu0 0.0
        %2139 = vmatprep.subr.mxu0 0.0
        %2140 = vmatpush1.msra.mxu0 0.0
        %2141 = vmatprep.subr.mxu0 0.0
        %2142 = vmatpush1.msra.mxu0 0.0
        %2143 = vmatprep.subr.mxu0 0.0
        %2144 = vmatpush1.msra.mxu0 0.0
        %2145 = vmatprep.subr.mxu0 0.0
        %2146 = vmatpush1.msra.mxu0 0.0
        %2147 = vmatprep.subr.mxu0 0.0
        %2148 = vmatpush1.msra.mxu0 0.0
        %2149 = vmatprep.subr.mxu0 0.0
        %2150 = vmatpush1.msra.mxu0 0.0
        %2151 = vmatprep.subr.mxu0 0.0
        %2152 = vmatpush1.msra.mxu0 0.0
        %2153 = vmatprep.subr.mxu0 0.0
        %2154 = vmatpush1.msra.mxu0 0.0
        %2155 = vmatprep.subr.mxu0 0.0
        %2156 = vmatpush1.msra.mxu0 0.0
        %2157 = vmatprep.subr.mxu0 0.0
        %2158 = vmatpush1.msra.mxu0 0.0
        %2159 = vmatprep.subr.mxu0 0.0
        %2160 = vmatpush1.msra.mxu0 0.0
        %2161 = vmatprep.subr.mxu0 0.0
        %2162 = vmatpush1.msra.mxu0 0.0
        %2163 = vmatprep.subr.mxu0 0.0
        %2164 = vmatpush1.msra.mxu0 0.0
        %2165 = vmatprep.subr.mxu0 0.0
        %2166 = vmatpush1.msra.mxu0 0.0
        %2167 = vmatprep.subr.mxu0 0.0
        %2168 = vmatpush1.msra.mxu0 0.0
        %2169 = vmatprep.subr.mxu0 0.0
        %2170 = vmatpush1.msra.mxu0 0.0
        %2171 = vmatprep.subr.mxu0 0.0
        %2172 = vmatpush1.msra.mxu0 0.0
        %2173 = vmatprep.subr.mxu0 0.0
        %2174 = vmatpush1.msra.mxu0 0.0
        %2175 = vmatprep.subr.mxu0 0.0
        %2176 = vmatpush1.msra.mxu0 0.0
        %2177 = vmatprep.mubr.f32.mxu0 0.0
        %2178 = vmatmul.mubr.f32.gmra.mrb[0].mxu0 %v2111
        %v2179 = vpop.f32.mrb[0].mxu0
        %v2180 = vadd.f32 0.0, %v2179
        %v2181 = vpop.f32.mrb[0].mxu0
        %2182 = vdwg.mxu0
        %2184 = vrot.lane.b32.xlu0 %v1018, 64
        %v2185 = vpop.permute.xlu0 %2184
        %v2188 = vsel %vm1403, %v2103, 0
        %2190 = vmatprep.subr.mxu0 0.0
        %2191 = vmatpush1.msra.mxu0 %v2185
        %2192 = vmatprep.subr.mxu0 0.0
        %2193 = vmatpush1.msra.mxu0 0.0
        %2194 = vmatprep.subr.mxu0 0.0
        %2195 = vmatpush1.msra.mxu0 0.0
        %2196 = vmatprep.subr.mxu0 0.0
        %2197 = vmatpush1.msra.mxu0 0.0
        %2198 = vmatprep.subr.mxu0 0.0
        %2199 = vmatpush1.msra.mxu0 0.0
        %2200 = vmatprep.subr.mxu0 0.0
        %2201 = vmatpush1.msra.mxu0 0.0
        %2202 = vmatprep.subr.mxu0 0.0
        %2203 = vmatpush1.msra.mxu0 0.0
        %2204 = vmatprep.subr.mxu0 0.0
        %2205 = vmatpush1.msra.mxu0 0.0
        %2206 = vmatprep.subr.mxu0 0.0
        %2207 = vmatpush1.msra.mxu0 0.0
        %2208 = vmatprep.subr.mxu0 0.0
        %2209 = vmatpush1.msra.mxu0 0.0
        %2210 = vmatprep.subr.mxu0 0.0
        %2211 = vmatpush1.msra.mxu0 0.0
        %2212 = vmatprep.subr.mxu0 0.0
        %2213 = vmatpush1.msra.mxu0 0.0
        %2214 = vmatprep.subr.mxu0 0.0
        %2215 = vmatpush1.msra.mxu0 0.0
        %2216 = vmatprep.subr.mxu0 0.0
        %2217 = vmatpush1.msra.mxu0 0.0
        %2218 = vmatprep.subr.mxu0 0.0
        %2219 = vmatpush1.msra.mxu0 0.0
        %2220 = vmatprep.subr.mxu0 0.0
        %2221 = vmatpush1.msra.mxu0 0.0
        %2222 = vmatprep.subr.mxu0 0.0
        %2223 = vmatpush1.msra.mxu0 0.0
        %2224 = vmatprep.subr.mxu0 0.0
        %2225 = vmatpush1.msra.mxu0 0.0
        %2226 = vmatprep.subr.mxu0 0.0
        %2227 = vmatpush1.msra.mxu0 0.0
        %2228 = vmatprep.subr.mxu0 0.0
        %2229 = vmatpush1.msra.mxu0 0.0
        %2230 = vmatprep.subr.mxu0 0.0
        %2231 = vmatpush1.msra.mxu0 0.0
        %2232 = vmatprep.subr.mxu0 0.0
        %2233 = vmatpush1.msra.mxu0 0.0
        %2234 = vmatprep.subr.mxu0 0.0
        %2235 = vmatpush1.msra.mxu0 0.0
        %2236 = vmatprep.subr.mxu0 0.0
        %2237 = vmatpush1.msra.mxu0 0.0
        %2238 = vmatprep.subr.mxu0 0.0
        %2239 = vmatpush1.msra.mxu0 0.0
        %2240 = vmatprep.subr.mxu0 0.0
        %2241 = vmatpush1.msra.mxu0 0.0
        %2242 = vmatprep.subr.mxu0 0.0
        %2243 = vmatpush1.msra.mxu0 0.0
        %2244 = vmatprep.subr.mxu0 0.0
        %2245 = vmatpush1.msra.mxu0 0.0
        %2246 = vmatprep.subr.mxu0 0.0
        %2247 = vmatpush1.msra.mxu0 0.0
        %2248 = vmatprep.subr.mxu0 0.0
        %2249 = vmatpush1.msra.mxu0 0.0
        %2250 = vmatprep.subr.mxu0 0.0
        %2251 = vmatpush1.msra.mxu0 0.0
        %2252 = vmatprep.subr.mxu0 0.0
        %2253 = vmatpush1.msra.mxu0 0.0
        %2254 = vmatprep.mubr.f32.mxu0 0.0
        %2255 = vmatmul.mubr.f32.gmra.mrb[0].mxu0 %v2188
        %v2256 = vpop.f32.mrb[0].mxu0
        %v2257 = vadd.f32 0.0, %v2256
        %v2258 = vpop.f32.mrb[0].mxu0
        %2259 = vdwg.mxu0
        %2261 = vrot.lane.b32.xlu0 %v1023, 64
        %v2262 = vpop.permute.xlu0 %2261
        %v2265 = vsel %vm1403, %v2104, 0
        %2267 = vmatprep.subr.mxu0 0.0
        %2268 = vmatpush1.msra.mxu0 %v2262
        %2269 = vmatprep.subr.mxu0 0.0
        %2270 = vmatpush1.msra.mxu0 0.0
        %2271 = vmatprep.subr.mxu0 0.0
        %2272 = vmatpush1.msra.mxu0 0.0
        %2273 = vmatprep.subr.mxu0 0.0
        %2274 = vmatpush1.msra.mxu0 0.0
        %2275 = vmatprep.subr.mxu0 0.0
        %2276 = vmatpush1.msra.mxu0 0.0
        %2277 = vmatprep.subr.mxu0 0.0
        %2278 = vmatpush1.msra.mxu0 0.0
        %2279 = vmatprep.subr.mxu0 0.0
        %2280 = vmatpush1.msra.mxu0 0.0
        %2281 = vmatprep.subr.mxu0 0.0
        %2282 = vmatpush1.msra.mxu0 0.0
        %2283 = vmatprep.subr.mxu0 0.0
        %2284 = vmatpush1.msra.mxu0 0.0
        %2285 = vmatprep.subr.mxu0 0.0
        %2286 = vmatpush1.msra.mxu0 0.0
        %2287 = vmatprep.subr.mxu0 0.0
        %2288 = vmatpush1.msra.mxu0 0.0
        %2289 = vmatprep.subr.mxu0 0.0
        %2290 = vmatpush1.msra.mxu0 0.0
        %2291 = vmatprep.subr.mxu0 0.0
        %2292 = vmatpush1.msra.mxu0 0.0
        %2293 = vmatprep.subr.mxu0 0.0
        %2294 = vmatpush1.msra.mxu0 0.0
        %2295 = vmatprep.subr.mxu0 0.0
        %2296 = vmatpush1.msra.mxu0 0.0
        %2297 = vmatprep.subr.mxu0 0.0
        %2298 = vmatpush1.msra.mxu0 0.0
        %2299 = vmatprep.subr.mxu0 0.0
        %2300 = vmatpush1.msra.mxu0 0.0
        %2301 = vmatprep.subr.mxu0 0.0
        %2302 = vmatpush1.msra.mxu0 0.0
        %2303 = vmatprep.subr.mxu0 0.0
        %2304 = vmatpush1.msra.mxu0 0.0
        %2305 = vmatprep.subr.mxu0 0.0
        %2306 = vmatpush1.msra.mxu0 0.0
        %2307 = vmatprep.subr.mxu0 0.0
        %2308 = vmatpush1.msra.mxu0 0.0
        %2309 = vmatprep.subr.mxu0 0.0
        %2310 = vmatpush1.msra.mxu0 0.0
        %2311 = vmatprep.subr.mxu0 0.0
        %2312 = vmatpush1.msra.mxu0 0.0
        %2313 = vmatprep.subr.mxu0 0.0
        %2314 = vmatpush1.msra.mxu0 0.0
        %2315 = vmatprep.subr.mxu0 0.0
        %2316 = vmatpush1.msra.mxu0 0.0
        %2317 = vmatprep.subr.mxu0 0.0
        %2318 = vmatpush1.msra.mxu0 0.0
        %2319 = vmatprep.subr.mxu0 0.0
        %2320 = vmatpush1.msra.mxu0 0.0
        %2321 = vmatprep.subr.mxu0 0.0
        %2322 = vmatpush1.msra.mxu0 0.0
        %2323 = vmatprep.subr.mxu0 0.0
        %2324 = vmatpush1.msra.mxu0 0.0
        %2325 = vmatprep.subr.mxu0 0.0
        %2326 = vmatpush1.msra.mxu0 0.0
        %2327 = vmatprep.subr.mxu0 0.0
        %2328 = vmatpush1.msra.mxu0 0.0
        %2329 = vmatprep.subr.mxu0 0.0
        %2330 = vmatpush1.msra.mxu0 0.0
        %2331 = vmatprep.mubr.f32.mxu0 0.0
        %2332 = vmatmul.mubr.f32.gmra.mrb[0].mxu0 %v2265
        %v2333 = vpop.f32.mrb[0].mxu0
        %v2334 = vadd.f32 0.0, %v2333
        %v2335 = vpop.f32.mrb[0].mxu0
        %2336 = vdwg.mxu0
        %2338 = vrot.lane.b32.xlu0 %v1026, 64
        %v2339 = vpop.permute.xlu0 %2338
        %v2342 = vsel %vm1403, %v2105, 0
        %2344 = vmatprep.subr.mxu0 0.0
        %2345 = vmatpush1.msra.mxu0 %v2339
        %2346 = vmatprep.subr.mxu0 0.0
        %2347 = vmatpush1.msra.mxu0 0.0
        %2348 = vmatprep.subr.mxu0 0.0
        %2349 = vmatpush1.msra.mxu0 0.0
        %2350 = vmatprep.subr.mxu0 0.0
        %2351 = vmatpush1.msra.mxu0 0.0
        %2352 = vmatprep.subr.mxu0 0.0
        %2353 = vmatpush1.msra.mxu0 0.0
        %2354 = vmatprep.subr.mxu0 0.0
        %2355 = vmatpush1.msra.mxu0 0.0
        %2356 = vmatprep.subr.mxu0 0.0
        %2357 = vmatpush1.msra.mxu0 0.0
        %2358 = vmatprep.subr.mxu0 0.0
        %2359 = vmatpush1.msra.mxu0 0.0
        %2360 = vmatprep.subr.mxu0 0.0
        %2361 = vmatpush1.msra.mxu0 0.0
        %2362 = vmatprep.subr.mxu0 0.0
        %2363 = vmatpush1.msra.mxu0 0.0
        %2364 = vmatprep.subr.mxu0 0.0
        %2365 = vmatpush1.msra.mxu0 0.0
        %2366 = vmatprep.subr.mxu0 0.0
        %2367 = vmatpush1.msra.mxu0 0.0
        %2368 = vmatprep.subr.mxu0 0.0
        %2369 = vmatpush1.msra.mxu0 0.0
        %2370 = vmatprep.subr.mxu0 0.0
        %2371 = vmatpush1.msra.mxu0 0.0
        %2372 = vmatprep.subr.mxu0 0.0
        %2373 = vmatpush1.msra.mxu0 0.0
        %2374 = vmatprep.subr.mxu0 0.0
        %2375 = vmatpush1.msra.mxu0 0.0
        %2376 = vmatprep.subr.mxu0 0.0
        %2377 = vmatpush1.msra.mxu0 0.0
        %2378 = vmatprep.subr.mxu0 0.0
        %2379 = vmatpush1.msra.mxu0 0.0
        %2380 = vmatprep.subr.mxu0 0.0
        %2381 = vmatpush1.msra.mxu0 0.0
        %2382 = vmatprep.subr.mxu0 0.0
        %2383 = vmatpush1.msra.mxu0 0.0
        %2384 = vmatprep.subr.mxu0 0.0
        %2385 = vmatpush1.msra.mxu0 0.0
        %2386 = vmatprep.subr.mxu0 0.0
        %2387 = vmatpush1.msra.mxu0 0.0
        %2388 = vmatprep.subr.mxu0 0.0
        %2389 = vmatpush1.msra.mxu0 0.0
        %2390 = vmatprep.subr.mxu0 0.0
        %2391 = vmatpush1.msra.mxu0 0.0
        %2392 = vmatprep.subr.mxu0 0.0
        %2393 = vmatpush1.msra.mxu0 0.0
        %2394 = vmatprep.subr.mxu0 0.0
        %2395 = vmatpush1.msra.mxu0 0.0
        %2396 = vmatprep.subr.mxu0 0.0
        %2397 = vmatpush1.msra.mxu0 0.0
        %2398 = vmatprep.subr.mxu0 0.0
        %2399 = vmatpush1.msra.mxu0 0.0
        %2400 = vmatprep.subr.mxu0 0.0
        %2401 = vmatpush1.msra.mxu0 0.0
        %2402 = vmatprep.subr.mxu0 0.0
        %2403 = vmatpush1.msra.mxu0 0.0
        %2404 = vmatprep.subr.mxu0 0.0
        %2405 = vmatpush1.msra.mxu0 0.0
        %2406 = vmatprep.subr.mxu0 0.0
        %2407 = vmatpush1.msra.mxu0 0.0
        %2408 = vmatprep.mubr.f32.mxu0 0.0
        %2409 = vmatmul.mubr.f32.gmra.mrb[0].mxu0 %v2342
        %v2410 = vpop.f32.mrb[0].mxu0
        %v2411 = vadd.f32 0.0, %v2410
        %v2412 = vpop.f32.mrb[0].mxu0
        %2413 = vdwg.mxu0
        %v2414 = vpack.c.bf16 %v2257, %v2180
        %v2415 = vpack.c.bf16 %v2411, %v2334
        %v2424 = vunpack.c.l.b16 %v1037
        %v2425 = vunpack.c.l.b16 %v1038
        %v2426 = vunpack.c.l.b16 %v1039
        %v2427 = vunpack.c.l.b16 %v1040
        %v2428 = vunpack.c.l.b16 %v1041
        %v2429 = vunpack.c.l.b16 %v1042
        %v2430 = vunpack.c.l.b16 %v1043
        %v2431 = vunpack.c.l.b16 %v1044
        %v2432 = vpack.c.b16 %v2425, %v2424
        %v2433 = vpack.c.b16 %v2427, %v2426
        %v2434 = vpack.c.b16 %v2429, %v2428
        %v2435 = vpack.c.b16 %v2431, %v2430
        %v2441 = vsel %vm1045, %v2414, 0
        %v2444 = vsel %vm1045, %v2415, 0
        %2446 = vmatprep.subr.bf16.mxu0 0
        %2447 = vmatpush1.bf16.msra.mxu0 %v2432
        %2448 = vmatprep.subr.bf16.mxu0 0
        %2449 = vmatpush1.bf16.msra.mxu0 %v2433
        %2450 = vmatprep.subr.bf16.mxu0 0
        %2451 = vmatpush1.bf16.msra.mxu0 %v2434
        %2452 = vmatprep.subr.bf16.mxu0 0
        %2453 = vmatpush1.bf16.msra.mxu0 %v2435
        %2454 = vmatprep.subr.bf16.mxu0 0
        %2455 = vmatpush1.bf16.msra.mxu0 0
        %2456 = vmatprep.subr.bf16.mxu0 0
        %2457 = vmatpush1.bf16.msra.mxu0 0
        %2458 = vmatprep.subr.bf16.mxu0 0
        %2459 = vmatpush1.bf16.msra.mxu0 0
        %2460 = vmatprep.subr.bf16.mxu0 0
        %2461 = vmatpush1.bf16.msra.mxu0 0
        %2462 = vmatprep.subr.bf16.mxu0 0
        %2463 = vmatpush1.bf16.msra.mxu0 0
        %2464 = vmatprep.subr.bf16.mxu0 0
        %2465 = vmatpush1.bf16.msra.mxu0 0
        %2466 = vmatprep.subr.bf16.mxu0 0
        %2467 = vmatpush1.bf16.msra.mxu0 0
        %2468 = vmatprep.subr.bf16.mxu0 0
        %2469 = vmatpush1.bf16.msra.mxu0 0
        %2470 = vmatprep.subr.bf16.mxu0 0
        %2471 = vmatpush1.bf16.msra.mxu0 0
        %2472 = vmatprep.subr.bf16.mxu0 0
        %2473 = vmatpush1.bf16.msra.mxu0 0
        %2474 = vmatprep.subr.bf16.mxu0 0
        %2475 = vmatpush1.bf16.msra.mxu0 0
        %2476 = vmatprep.subr.bf16.mxu0 0
        %2477 = vmatpush1.bf16.msra.mxu0 0
        %2478 = vmatprep.mubr.bf16.mxu0 0
        %2479 = vmatmul.mubr.bf16.gmra.mrb[0].mxu0 %v2441
        %v2480 = vpop.f32.mrb[0].mxu0
        %v2481 = vadd.f32 0.0, %v2480
        %v2482 = vpop.f32.mrb[0].mxu0
        %v2483 = vpop.f32.mrb[0].mxu0
        %v2484 = vadd.f32 0.0, %v2483
        %v2485 = vpop.f32.mrb[0].mxu0
        %2486 = vmatprep.mubr.bf16.mxu0 0
        %2487 = vmatmul.mubr.bf16.gmra.mrb[0].mxu0 %v2444
        %v2488 = vpop.f32.mrb[0].mxu0
        %v2489 = vadd.f32 0.0, %v2488
        %v2490 = vpop.f32.mrb[0].mxu0
        %v2491 = vpop.f32.mrb[0].mxu0
        %v2492 = vadd.f32 0.0, %v2491
        %v2493 = vpop.f32.mrb[0].mxu0
        %2494 = vdwg.mxu0
        %v2503 = vunpack.c.l.b16 %v1029
        %v2504 = vunpack.c.l.b16 %v1030
        %v2505 = vunpack.c.l.b16 %v1031
        %v2506 = vunpack.c.l.b16 %v1032
        %v2507 = vunpack.c.l.b16 %v1033
        %v2508 = vunpack.c.l.b16 %v1034
        %v2509 = vunpack.c.l.b16 %v1035
        %v2510 = vunpack.c.l.b16 %v1036
        %v2511 = vpack.c.b16 %v2504, %v2503
        %v2512 = vpack.c.b16 %v2506, %v2505
        %v2513 = vpack.c.b16 %v2508, %v2507
        %v2514 = vpack.c.b16 %v2510, %v2509
        %v2520 = vsel %vm1045, %v1740, 0
        %v2523 = vsel %vm1045, %v1741, 0
        %2525 = vmatprep.subr.bf16.mxu0 0
        %2526 = vmatpush1.bf16.msra.mxu0 %v2511
        %2527 = vmatprep.subr.bf16.mxu0 0
        %2528 = vmatpush1.bf16.msra.mxu0 %v2512
        %2529 = vmatprep.subr.bf16.mxu0 0
        %2530 = vmatpush1.bf16.msra.mxu0 %v2513
        %2531 = vmatprep.subr.bf16.mxu0 0
        %2532 = vmatpush1.bf16.msra.mxu0 %v2514
        %2533 = vmatprep.subr.bf16.mxu0 0
        %2534 = vmatpush1.bf16.msra.mxu0 0
        %2535 = vmatprep.subr.bf16.mxu0 0
        %2536 = vmatpush1.bf16.msra.mxu0 0
        %2537 = vmatprep.subr.bf16.mxu0 0
        %2538 = vmatpush1.bf16.msra.mxu0 0
        %2539 = vmatprep.subr.bf16.mxu0 0
        %2540 = vmatpush1.bf16.msra.mxu0 0
        %2541 = vmatprep.subr.bf16.mxu0 0
        %2542 = vmatpush1.bf16.msra.mxu0 0
        %2543 = vmatprep.subr.bf16.mxu0 0
        %2544 = vmatpush1.bf16.msra.mxu0 0
        %2545 = vmatprep.subr.bf16.mxu0 0
        %2546 = vmatpush1.bf16.msra.mxu0 0
        %2547 = vmatprep.subr.bf16.mxu0 0
        %2548 = vmatpush1.bf16.msra.mxu0 0
        %2549 = vmatprep.subr.bf16.mxu0 0
        %2550 = vmatpush1.bf16.msra.mxu0 0
        %2551 = vmatprep.subr.bf16.mxu0 0
        %2552 = vmatpush1.bf16.msra.mxu0 0
        %2553 = vmatprep.subr.bf16.mxu0 0
        %2554 = vmatpush1.bf16.msra.mxu0 0
        %2555 = vmatprep.subr.bf16.mxu0 0
        %2556 = vmatpush1.bf16.msra.mxu0 0
        %2557 = vmatprep.mubr.bf16.mxu0 0
        %2558 = vmatmul.mubr.bf16.gmra.mrb[0].mxu0 %v2520
        %v2559 = vpop.f32.mrb[0].mxu0
        %v2560 = vadd.f32 %v2481, %v2559
        %v2561 = vpop.f32.mrb[0].mxu0
        %v2562 = vpop.f32.mrb[0].mxu0
        %v2563 = vadd.f32 %v2484, %v2562
        %v2564 = vpop.f32.mrb[0].mxu0
        %2565 = vmatprep.mubr.bf16.mxu0 0
        %2566 = vmatmul.mubr.bf16.gmra.mrb[0].mxu0 %v2523
        %v2567 = vpop.f32.mrb[0].mxu0
        %v2568 = vadd.f32 %v2489, %v2567
        %v2569 = vpop.f32.mrb[0].mxu0
        %v2570 = vpop.f32.mrb[0].mxu0
        %v2571 = vadd.f32 %v2492, %v2570
        %v2572 = vpop.f32.mrb[0].mxu0
        %2573 = vdwg.mxu0
        %v2574 = vld [vmem:[%s708] sm:$0x1]
        %v2576 = vlaneseq
        %v2577 = vshrl.u32 %v2576, 7
        %v2578 = vsub.s32 0, %v2577
        %v2579 = vrot.slane %v2574, %v2578
        %v2581 = vadd.f32 %v2560, %v2579
        %v2582 = vadd.f32 %v2563, %v2579
        %v2583 = vadd.f32 %v2568, %v2579
        %v2584 = vadd.f32 %v2571, %v2579
        %v2585 = vadd.f32 %v741, %v2581
        %v2586 = vadd.f32 %v742, %v2582
        %v2587 = vadd.f32 %v743, %v2583
        %v2588 = vadd.f32 %v744, %v2584
        %v2589 = vld [vmem:[%s711] sm:$0x1]
        %v2590 = vld [vmem:[%s714] sm:$0x1]
        %2591 = vadd.xlane.f32.xlu0 %v2585
        %v2592 = vpop.xlane.xlu0 %2591
        %2593 = vadd.xlane.f32.xlu0 %v2586
        %v2594 = vpop.xlane.xlu0 %2593
        %2595 = vadd.xlane.f32.xlu0 %v2587
        %v2596 = vpop.xlane.xlu0 %2595
        %2597 = vadd.xlane.f32.xlu0 %v2588
        %v2598 = vpop.xlane.xlu0 %2597
        %v2599 = vrcp.pop 128.0
        %v2600 = vmul.f32 %v2592, %v2599
        %v2601 = vmul.f32 %v2594, %v2599
        %v2602 = vmul.f32 %v2596, %v2599
        %v2603 = vmul.f32 %v2598, %v2599
        %v2604 = vsub.f32 %v2585, %v2600
        %v2605 = vsub.f32 %v2586, %v2601
        %v2606 = vsub.f32 %v2587, %v2602
        %v2607 = vsub.f32 %v2588, %v2603
        %v2608 = vmul.f32 %v2604, %v2604
        %v2609 = vmul.f32 %v2605, %v2605
        %v2610 = vmul.f32 %v2606, %v2606
        %v2611 = vmul.f32 %v2607, %v2607
        %2612 = vadd.xlane.f32.xlu0 %v2608
        %v2613 = vpop.xlane.xlu0 %2612
        %2614 = vadd.xlane.f32.xlu0 %v2609
        %v2615 = vpop.xlane.xlu0 %2614
        %2616 = vadd.xlane.f32.xlu0 %v2610
        %v2617 = vpop.xlane.xlu0 %2616
        %2618 = vadd.xlane.f32.xlu0 %v2611
        %v2619 = vpop.xlane.xlu0 %2618
        %v2620 = vmul.f32 %v2613, %v2599
        %v2621 = vmul.f32 %v2615, %v2599
        %v2622 = vmul.f32 %v2617, %v2599
        %v2623 = vmul.f32 %v2619, %v2599
        %v2624 = vadd.f32 %v2620, 1e-12
        %v2625 = vadd.f32 %v2621, 1e-12
        %v2626 = vadd.f32 %v2622, 1e-12
        %v2627 = vadd.f32 %v2623, 1e-12
        %v2628 = vrsqrt.pop %v2624
        %v2629 = vrsqrt.pop %v2625
        %v2630 = vrsqrt.pop %v2626
        %v2631 = vrsqrt.pop %v2627
        %v2632 = vmul.f32 %v2604, %v2628
        %v2633 = vmul.f32 %v2605, %v2629
        %v2634 = vmul.f32 %v2606, %v2630
        %v2635 = vmul.f32 %v2607, %v2631
        %v2637 = vlaneseq
        %v2638 = vshrl.u32 %v2637, 7
        %v2639 = vsub.s32 0, %v2638
        %v2640 = vrot.slane %v2589, %v2639
        %v2642 = vmul.f32 %v2632, %v2640
        %v2643 = vmul.f32 %v2633, %v2640
        %v2644 = vmul.f32 %v2634, %v2640
        %v2645 = vmul.f32 %v2635, %v2640
        %v2647 = vlaneseq
        %v2648 = vshrl.u32 %v2647, 7
        %v2649 = vsub.s32 0, %v2648
        %v2650 = vrot.slane %v2590, %v2649
        %v2652 = vadd.f32 %v2642, %v2650
        %v2653 = vadd.f32 %v2643, %v2650
        %v2654 = vadd.f32 %v2644, %v2650
        %v2655 = vadd.f32 %v2645, %v2650
        %v2656 = vpack.c.bf16 %v2653, %v2652
        %v2657 = vpack.c.bf16 %v2655, %v2654
        %v2658 = vld [vmem:[%s612] sm:$0xff]
        %v2659 = vld [vmem:[%s612 + $0x8] sm:$0xff]
        %v2660 = vld [vmem:[%s612 + $0x10] sm:$0xff]
        %v2661 = vld [vmem:[%s612 + $0x18] sm:$0xff]
        %v2662 = vld [vmem:[%s612 + $0x20] sm:$0xff]
        %v2663 = vld [vmem:[%s612 + $0x28] sm:$0xff]
        %v2664 = vld [vmem:[%s612 + $0x30] sm:$0xff]
        %v2665 = vld [vmem:[%s612 + $0x38] sm:$0xff]
        %v2666 = vld [vmem:[%s612 + $0x40] sm:$0xff]
        %v2667 = vld [vmem:[%s612 + $0x48] sm:$0xff]
        %v2668 = vld [vmem:[%s612 + $0x50] sm:$0xff]
        %v2669 = vld [vmem:[%s612 + $0x58] sm:$0xff]
        %v2670 = vld [vmem:[%s612 + $0x60] sm:$0xff]
        %v2671 = vld [vmem:[%s612 + $0x68] sm:$0xff]
        %v2672 = vld [vmem:[%s612 + $0x70] sm:$0xff]
        %v2673 = vld [vmem:[%s612 + $0x78] sm:$0xff]
        %v2674 = vld [vmem:[%s612 + $0x80] sm:$0xff]
        %v2675 = vld [vmem:[%s612 + $0x88] sm:$0xff]
        %v2676 = vld [vmem:[%s612 + $0x90] sm:$0xff]
        %v2677 = vld [vmem:[%s612 + $0x98] sm:$0xff]
        %v2678 = vld [vmem:[%s612 + $0xa0] sm:$0xff]
        %v2679 = vld [vmem:[%s612 + $0xa8] sm:$0xff]
        %v2680 = vld [vmem:[%s612 + $0xb0] sm:$0xff]
        %v2681 = vld [vmem:[%s612 + $0xb8] sm:$0xff]
        %v2682 = vld [vmem:[%s612 + $0xc0] sm:$0xff]
        %v2683 = vld [vmem:[%s612 + $0xc8] sm:$0xff]
        %v2684 = vld [vmem:[%s612 + $0xd0] sm:$0xff]
        %v2685 = vld [vmem:[%s612 + $0xd8] sm:$0xff]
        %v2686 = vld [vmem:[%s612 + $0xe0] sm:$0xff]
        %v2687 = vld [vmem:[%s612 + $0xe8] sm:$0xff]
        %v2688 = vld [vmem:[%s612 + $0xf0] sm:$0xff]
        %v2689 = vld [vmem:[%s612 + $0xf8] sm:$0xff]
        %v2690 = vld [vmem:[%s718] sm:$0xf]
        %v2692 = vlaneseq
        %v2693 = vshrl.u32 %v2692, 7
        %v2694 = vsub.s32 0, %v2693
        %v2695 = vrot.slane %v2690, %v2694
        %v2696 = vlaneseq
        %v2697 = vshrl.u32 %v2696, 7
        %v2698 = vsub.s32 1, %v2697
        %v2699 = vrot.slane %v2690, %v2698
        %v2700 = vlaneseq
        %v2701 = vshrl.u32 %v2700, 7
        %v2702 = vsub.s32 2, %v2701
        %v2703 = vrot.slane %v2690, %v2702
        %v2704 = vlaneseq
        %v2705 = vshrl.u32 %v2704, 7
        %v2706 = vsub.s32 3, %v2705
        %v2707 = vrot.slane %v2690, %v2706
        %v2744 = vunpack.c.l.b16 %v2658
        %v2745 = vunpack.c.h.b16 %v2658
        %v2746 = vunpack.c.l.b16 %v2659
        %v2747 = vunpack.c.h.b16 %v2659
        %v2748 = vunpack.c.l.b16 %v2660
        %v2749 = vunpack.c.h.b16 %v2660
        %v2750 = vunpack.c.l.b16 %v2661
        %v2751 = vunpack.c.h.b16 %v2661
        %v2752 = vunpack.c.l.b16 %v2662
        %v2753 = vunpack.c.h.b16 %v2662
        %v2754 = vunpack.c.l.b16 %v2663
        %v2755 = vunpack.c.h.b16 %v2663
        %v2756 = vunpack.c.l.b16 %v2664
        %v2757 = vunpack.c.h.b16 %v2664
        %v2758 = vunpack.c.l.b16 %v2665
        %v2759 = vunpack.c.h.b16 %v2665
        %v2760 = vunpack.c.l.b16 %v2666
        %v2761 = vunpack.c.h.b16 %v2666
        %v2762 = vunpack.c.l.b16 %v2667
        %v2763 = vunpack.c.h.b16 %v2667
        %v2764 = vunpack.c.l.b16 %v2668
        %v2765 = vunpack.c.h.b16 %v2668
        %v2766 = vunpack.c.l.b16 %v2669
        %v2767 = vunpack.c.h.b16 %v2669
        %v2768 = vunpack.c.l.b16 %v2670
        %v2769 = vunpack.c.h.b16 %v2670
        %v2770 = vunpack.c.l.b16 %v2671
        %v2771 = vunpack.c.h.b16 %v2671
        %v2772 = vunpack.c.l.b16 %v2672
        %v2773 = vunpack.c.h.b16 %v2672
        %v2774 = vunpack.c.l.b16 %v2673
        %v2775 = vunpack.c.h.b16 %v2673
        %v2776 = vunpack.c.l.b16 %v2674
        %v2777 = vunpack.c.h.b16 %v2674
        %v2778 = vunpack.c.l.b16 %v2675
        %v2779 = vunpack.c.h.b16 %v2675
        %v2780 = vunpack.c.l.b16 %v2676
        %v2781 = vunpack.c.h.b16 %v2676
        %v2782 = vunpack.c.l.b16 %v2677
        %v2783 = vunpack.c.h.b16 %v2677
        %v2784 = vunpack.c.l.b16 %v2678
        %v2785 = vunpack.c.h.b16 %v2678
        %v2786 = vunpack.c.l.b16 %v2679
        %v2787 = vunpack.c.h.b16 %v2679
        %v2788 = vunpack.c.l.b16 %v2680
        %v2789 = vunpack.c.h.b16 %v2680
        %v2790 = vunpack.c.l.b16 %v2681
        %v2791 = vunpack.c.h.b16 %v2681
        %v2792 = vunpack.c.l.b16 %v2682
        %v2793 = vunpack.c.h.b16 %v2682
        %v2794 = vunpack.c.l.b16 %v2683
        %v2795 = vunpack.c.h.b16 %v2683
        %v2796 = vunpack.c.l.b16 %v2684
        %v2797 = vunpack.c.h.b16 %v2684
        %v2798 = vunpack.c.l.b16 %v2685
        %v2799 = vunpack.c.h.b16 %v2685
        %v2800 = vunpack.c.l.b16 %v2686
        %v2801 = vunpack.c.h.b16 %v2686
        %v2802 = vunpack.c.l.b16 %v2687
        %v2803 = vunpack.c.h.b16 %v2687
        %v2804 = vunpack.c.l.b16 %v2688
        %v2805 = vunpack.c.h.b16 %v2688
        %v2806 = vunpack.c.l.b16 %v2689
        %v2807 = vunpack.c.h.b16 %v2689
        %v2808 = vpack.c.b16 %v2748, %v2744
        %v2809 = vpack.c.b16 %v2749, %v2745
        %v2810 = vpack.c.b16 %v2750, %v2746
        %v2811 = vpack.c.b16 %v2751, %v2747
        %v2812 = vpack.c.b16 %v2756, %v2752
        %v2813 = vpack.c.b16 %v2757, %v2753
        %v2814 = vpack.c.b16 %v2758, %v2754
        %v2815 = vpack.c.b16 %v2759, %v2755
        %v2816 = vpack.c.b16 %v2764, %v2760
        %v2817 = vpack.c.b16 %v2765, %v2761
        %v2818 = vpack.c.b16 %v2766, %v2762
        %v2819 = vpack.c.b16 %v2767, %v2763
        %v2820 = vpack.c.b16 %v2772, %v2768
        %v2821 = vpack.c.b16 %v2773, %v2769
        %v2822 = vpack.c.b16 %v2774, %v2770
        %v2823 = vpack.c.b16 %v2775, %v2771
        %v2824 = vpack.c.b16 %v2780, %v2776
        %v2825 = vpack.c.b16 %v2781, %v2777
        %v2826 = vpack.c.b16 %v2782, %v2778
        %v2827 = vpack.c.b16 %v2783, %v2779
        %v2828 = vpack.c.b16 %v2788, %v2784
        %v2829 = vpack.c.b16 %v2789, %v2785
        %v2830 = vpack.c.b16 %v2790, %v2786
        %v2831 = vpack.c.b16 %v2791, %v2787
        %v2832 = vpack.c.b16 %v2796, %v2792
        %v2833 = vpack.c.b16 %v2797, %v2793
        %v2834 = vpack.c.b16 %v2798, %v2794
        %v2835 = vpack.c.b16 %v2799, %v2795
        %v2836 = vpack.c.b16 %v2804, %v2800
        %v2837 = vpack.c.b16 %v2805, %v2801
        %v2838 = vpack.c.b16 %v2806, %v2802
        %v2839 = vpack.c.b16 %v2807, %v2803
        %2872 = vmatprep.subr.bf16.mxu0 %v2809
        %2873 = vmatpush1.bf16.msra.mxu0 %v2808
        %2874 = vmatprep.subr.bf16.mxu0 %v2813
        %2875 = vmatpush1.bf16.msra.mxu0 %v2812
        %2876 = vmatprep.subr.bf16.mxu0 %v2817
        %2877 = vmatpush1.bf16.msra.mxu0 %v2816
        %2878 = vmatprep.subr.bf16.mxu0 %v2821
        %2879 = vmatpush1.bf16.msra.mxu0 %v2820
        %2880 = vmatprep.subr.bf16.mxu0 %v2825
        %2881 = vmatpush1.bf16.msra.mxu0 %v2824
        %2882 = vmatprep.subr.bf16.mxu0 %v2829
        %2883 = vmatpush1.bf16.msra.mxu0 %v2828
        %2884 = vmatprep.subr.bf16.mxu0 %v2833
        %2885 = vmatpush1.bf16.msra.mxu0 %v2832
        %2886 = vmatprep.subr.bf16.mxu0 %v2837
        %2887 = vmatpush1.bf16.msra.mxu0 %v2836
        %2888 = vmatprep.subr.bf16.mxu0 0
        %2889 = vmatpush1.bf16.msra.mxu0 0
        %2890 = vmatprep.subr.bf16.mxu0 0
        %2891 = vmatpush1.bf16.msra.mxu0 0
        %2892 = vmatprep.subr.bf16.mxu0 0
        %2893 = vmatpush1.bf16.msra.mxu0 0
        %2894 = vmatprep.subr.bf16.mxu0 0
        %2895 = vmatpush1.bf16.msra.mxu0 0
        %2896 = vmatprep.subr.bf16.mxu0 0
        %2897 = vmatpush1.bf16.msra.mxu0 0
        %2898 = vmatprep.subr.bf16.mxu0 0
        %2899 = vmatpush1.bf16.msra.mxu0 0
        %2900 = vmatprep.subr.bf16.mxu0 0
        %2901 = vmatpush1.bf16.msra.mxu0 0
        %2902 = vmatprep.subr.bf16.mxu0 0
        %2903 = vmatpush1.bf16.msra.mxu0 0
        %2904 = vmatprep.mubr.bf16.mxu0 0
        %2905 = vmatmul.mubr.bf16.gmra.mrb[0].mxu0 %v2656
        %v2906 = vpop.f32.mrb[0].mxu0
        %v2907 = vadd.f32 %v2695, %v2906
        %v2908 = vpop.f32.mrb[0].mxu0
        %v2909 = vadd.f32 %v2699, %v2908
        %v2910 = vpop.f32.mrb[0].mxu0
        %v2911 = vadd.f32 %v2695, %v2910
        %v2912 = vpop.f32.mrb[0].mxu0
        %v2913 = vadd.f32 %v2699, %v2912
        %2914 = vmatprep.mubr.bf16.mxu0 0
        %2915 = vmatmul.mubr.bf16.gmra.mrb[0].mxu0 %v2657
        %v2916 = vpop.f32.mrb[0].mxu0
        %v2917 = vadd.f32 %v2695, %v2916
        %v2918 = vpop.f32.mrb[0].mxu0
        %v2919 = vadd.f32 %v2699, %v2918
        %v2920 = vpop.f32.mrb[0].mxu0
        %v2921 = vadd.f32 %v2695, %v2920
        %v2922 = vpop.f32.mrb[0].mxu0
        %v2923 = vadd.f32 %v2699, %v2922
        %2924 = vdwg.mxu0
        %2925 = vmatprep.subr.bf16.mxu0 %v2811
        %2926 = vmatpush1.bf16.msra.mxu0 %v2810
        %2927 = vmatprep.subr.bf16.mxu0 %v2815
        %2928 = vmatpush1.bf16.msra.mxu0 %v2814
        %2929 = vmatprep.subr.bf16.mxu0 %v2819
        %2930 = vmatpush1.bf16.msra.mxu0 %v2818
        %2931 = vmatprep.subr.bf16.mxu0 %v2823
        %2932 = vmatpush1.bf16.msra.mxu0 %v2822
        %2933 = vmatprep.subr.bf16.mxu0 %v2827
        %2934 = vmatpush1.bf16.msra.mxu0 %v2826
        %2935 = vmatprep.subr.bf16.mxu0 %v2831
        %2936 = vmatpush1.bf16.msra.mxu0 %v2830
        %2937 = vmatprep.subr.bf16.mxu0 %v2835
        %2938 = vmatpush1.bf16.msra.mxu0 %v2834
        %2939 = vmatprep.subr.bf16.mxu0 %v2839
        %2940 = vmatpush1.bf16.msra.mxu0 %v2838
        %2941 = vmatprep.subr.bf16.mxu0 0
        %2942 = vmatpush1.bf16.msra.mxu0 0
        %2943 = vmatprep.subr.bf16.mxu0 0
        %2944 = vmatpush1.bf16.msra.mxu0 0
        %2945 = vmatprep.subr.bf16.mxu0 0
        %2946 = vmatpush1.bf16.msra.mxu0 0
        %2947 = vmatprep.subr.bf16.mxu0 0
        %2948 = vmatpush1.bf16.msra.mxu0 0
        %2949 = vmatprep.subr.bf16.mxu0 0
        %2950 = vmatpush1.bf16.msra.mxu0 0
        %2951 = vmatprep.subr.bf16.mxu0 0
        %2952 = vmatpush1.bf16.msra.mxu0 0
        %2953 = vmatprep.subr.bf16.mxu0 0
        %2954 = vmatpush1.bf16.msra.mxu0 0
        %2955 = vmatprep.subr.bf16.mxu0 0
        %2956 = vmatpush1.bf16.msra.mxu0 0
        %2957 = vmatprep.mubr.bf16.mxu0 0
        %2958 = vmatmul.mubr.bf16.gmra.mrb[0].mxu0 %v2656
        %v2959 = vpop.f32.mrb[0].mxu0
        %v2960 = vadd.f32 %v2703, %v2959
        %v2961 = vpop.f32.mrb[0].mxu0
        %v2962 = vadd.f32 %v2707, %v2961
        %v2963 = vpop.f32.mrb[0].mxu0
        %v2964 = vadd.f32 %v2703, %v2963
        %v2965 = vpop.f32.mrb[0].mxu0
        %v2966 = vadd.f32 %v2707, %v2965
        %2967 = vmatprep.mubr.bf16.mxu0 0
        %2968 = vmatmul.mubr.bf16.gmra.mrb[0].mxu0 %v2657
        %v2969 = vpop.f32.mrb[0].mxu0
        %v2970 = vadd.f32 %v2703, %v2969
        %v2971 = vpop.f32.mrb[0].mxu0
        %v2972 = vadd.f32 %v2707, %v2971
        %v2973 = vpop.f32.mrb[0].mxu0
        %v2974 = vadd.f32 %v2703, %v2973
        %v2975 = vpop.f32.mrb[0].mxu0
        %v2976 = vadd.f32 %v2707, %v2975
        %2977 = vdwg.mxu0
        %v2978 = vmul.f32 %v2907, %v2907
        %v2979 = vmul.f32 %v2909, %v2909
        %v2980 = vmul.f32 %v2960, %v2960
        %v2981 = vmul.f32 %v2962, %v2962
        %v2982 = vmul.f32 %v2911, %v2911
        %v2983 = vmul.f32 %v2913, %v2913
        %v2984 = vmul.f32 %v2964, %v2964
        %v2985 = vmul.f32 %v2966, %v2966
        %v2986 = vmul.f32 %v2917, %v2917
        %v2987 = vmul.f32 %v2919, %v2919
        %v2988 = vmul.f32 %v2970, %v2970
        %v2989 = vmul.f32 %v2972, %v2972
        %v2990 = vmul.f32 %v2921, %v2921
        %v2991 = vmul.f32 %v2923, %v2923
        %v2992 = vmul.f32 %v2974, %v2974
        %v2993 = vmul.f32 %v2976, %v2976
        %v2994 = vmul.f32 %v2907, %v2978
        %v2995 = vmul.f32 %v2909, %v2979
        %v2996 = vmul.f32 %v2960, %v2980
        %v2997 = vmul.f32 %v2962, %v2981
        %v2998 = vmul.f32 %v2911, %v2982
        %v2999 = vmul.f32 %v2913, %v2983
        %v3000 = vmul.f32 %v2964, %v2984
        %v3001 = vmul.f32 %v2966, %v2985
        %v3002 = vmul.f32 %v2917, %v2986
        %v3003 = vmul.f32 %v2919, %v2987
        %v3004 = vmul.f32 %v2970, %v2988
        %v3005 = vmul.f32 %v2972, %v2989
        %v3006 = vmul.f32 %v2921, %v2990
        %v3007 = vmul.f32 %v2923, %v2991
        %v3008 = vmul.f32 %v2974, %v2992
        %v3009 = vmul.f32 %v2976, %v2993
        %v3010 = vmul.f32 %v2994, 0.044715
        %v3011 = vmul.f32 %v2995, 0.044715
        %v3012 = vmul.f32 %v2996, 0.044715
        %v3013 = vmul.f32 %v2997, 0.044715
        %v3014 = vmul.f32 %v2998, 0.044715
        %v3015 = vmul.f32 %v2999, 0.044715
        %v3016 = vmul.f32 %v3000, 0.044715
        %v3017 = vmul.f32 %v3001, 0.044715
        %v3018 = vmul.f32 %v3002, 0.044715
        %v3019 = vmul.f32 %v3003, 0.044715
        %v3020 = vmul.f32 %v3004, 0.044715
        %v3021 = vmul.f32 %v3005, 0.044715
        %v3022 = vmul.f32 %v3006, 0.044715
        %v3023 = vmul.f32 %v3007, 0.044715
        %v3024 = vmul.f32 %v3008, 0.044715
        %v3025 = vmul.f32 %v3009, 0.044715
        %v3026 = vadd.f32 %v2907, %v3010
        %v3027 = vadd.f32 %v2909, %v3011
        %v3028 = vadd.f32 %v2960, %v3012
        %v3029 = vadd.f32 %v2962, %v3013
        %v3030 = vadd.f32 %v2911, %v3014
        %v3031 = vadd.f32 %v2913, %v3015
        %v3032 = vadd.f32 %v2964, %v3016
        %v3033 = vadd.f32 %v2966, %v3017
        %v3034 = vadd.f32 %v2917, %v3018
        %v3035 = vadd.f32 %v2919, %v3019
        %v3036 = vadd.f32 %v2970, %v3020
        %v3037 = vadd.f32 %v2972, %v3021
        %v3038 = vadd.f32 %v2921, %v3022
        %v3039 = vadd.f32 %v2923, %v3023
        %v3040 = vadd.f32 %v2974, %v3024
        %v3041 = vadd.f32 %v2976, %v3025
        %v3042 = vmul.f32 %v3026, 0.7978846
        %v3043 = vmul.f32 %v3027, 0.7978846
        %v3044 = vmul.f32 %v3028, 0.7978846
        %v3045 = vmul.f32 %v3029, 0.7978846
        %v3046 = vmul.f32 %v3030, 0.7978846
        %v3047 = vmul.f32 %v3031, 0.7978846
        %v3048 = vmul.f32 %v3032, 0.7978846
        %v3049 = vmul.f32 %v3033, 0.7978846
        %v3050 = vmul.f32 %v3034, 0.7978846
        %v3051 = vmul.f32 %v3035, 0.7978846
        %v3052 = vmul.f32 %v3036, 0.7978846
        %v3053 = vmul.f32 %v3037, 0.7978846
        %v3054 = vmul.f32 %v3038, 0.7978846
        %v3055 = vmul.f32 %v3039, 0.7978846
        %v3056 = vmul.f32 %v3040, 0.7978846
        %v3057 = vmul.f32 %v3041, 0.7978846
        %v3058 = vtanh.pop %v3042
        %v3059 = vtanh.pop %v3043
        %v3060 = vtanh.pop %v3044
        %v3061 = vtanh.pop %v3045
        %v3062 = vtanh.pop %v3046
        %v3063 = vtanh.pop %v3047
        %v3064 = vtanh.pop %v3048
        %v3065 = vtanh.pop %v3049
        %v3066 = vtanh.pop %v3050
        %v3067 = vtanh.pop %v3051
        %v3068 = vtanh.pop %v3052
        %v3069 = vtanh.pop %v3053
        %v3070 = vtanh.pop %v3054
        %v3071 = vtanh.pop %v3055
        %v3072 = vtanh.pop %v3056
        %v3073 = vtanh.pop %v3057
        %v3074 = vadd.f32 %v3058, 1.0
        %v3075 = vadd.f32 %v3059, 1.0
        %v3076 = vadd.f32 %v3060, 1.0
        %v3077 = vadd.f32 %v3061, 1.0
        %v3078 = vadd.f32 %v3062, 1.0
        %v3079 = vadd.f32 %v3063, 1.0
        %v3080 = vadd.f32 %v3064, 1.0
        %v3081 = vadd.f32 %v3065, 1.0
        %v3082 = vadd.f32 %v3066, 1.0
        %v3083 = vadd.f32 %v3067, 1.0
        %v3084 = vadd.f32 %v3068, 1.0
        %v3085 = vadd.f32 %v3069, 1.0
        %v3086 = vadd.f32 %v3070, 1.0
        %v3087 = vadd.f32 %v3071, 1.0
        %v3088 = vadd.f32 %v3072, 1.0
        %v3089 = vadd.f32 %v3073, 1.0
        %v3090 = vmul.f32 %v3074, 0.5
        %v3091 = vmul.f32 %v3075, 0.5
        %v3092 = vmul.f32 %v3076, 0.5
        %v3093 = vmul.f32 %v3077, 0.5
        %v3094 = vmul.f32 %v3078, 0.5
        %v3095 = vmul.f32 %v3079, 0.5
        %v3096 = vmul.f32 %v3080, 0.5
        %v3097 = vmul.f32 %v3081, 0.5
        %v3098 = vmul.f32 %v3082, 0.5
        %v3099 = vmul.f32 %v3083, 0.5
        %v3100 = vmul.f32 %v3084, 0.5
        %v3101 = vmul.f32 %v3085, 0.5
        %v3102 = vmul.f32 %v3086, 0.5
        %v3103 = vmul.f32 %v3087, 0.5
        %v3104 = vmul.f32 %v3088, 0.5
        %v3105 = vmul.f32 %v3089, 0.5
        %v3106 = vmul.f32 %v2907, %v3090
        %v3107 = vmul.f32 %v2909, %v3091
        %v3108 = vmul.f32 %v2960, %v3092
        %v3109 = vmul.f32 %v2962, %v3093
        %v3110 = vmul.f32 %v2911, %v3094
        %v3111 = vmul.f32 %v2913, %v3095
        %v3112 = vmul.f32 %v2964, %v3096
        %v3113 = vmul.f32 %v2966, %v3097
        %v3114 = vmul.f32 %v2917, %v3098
        %v3115 = vmul.f32 %v2919, %v3099
        %v3116 = vmul.f32 %v2970, %v3100
        %v3117 = vmul.f32 %v2972, %v3101
        %v3118 = vmul.f32 %v2921, %v3102
        %v3119 = vmul.f32 %v2923, %v3103
        %v3120 = vmul.f32 %v2974, %v3104
        %v3121 = vmul.f32 %v2976, %v3105
        %v3122 = vpack.c.bf16 %v3110, %v3106
        %v3123 = vpack.c.bf16 %v3111, %v3107
        %v3124 = vpack.c.bf16 %v3112, %v3108
        %v3125 = vpack.c.bf16 %v3113, %v3109
        %v3126 = vpack.c.bf16 %v3118, %v3114
        %v3127 = vpack.c.bf16 %v3119, %v3115
        %v3128 = vpack.c.bf16 %v3120, %v3116
        %v3129 = vpack.c.bf16 %v3121, %v3117
        %v3130 = vld [vmem:[%s621] sm:$0xf]
        %v3131 = vld [vmem:[%s621 + $0x4] sm:$0xf]
        %v3132 = vld [vmem:[%s621 + $0x8] sm:$0xf]
        %v3133 = vld [vmem:[%s621 + $0xc] sm:$0xf]
        %v3134 = vld [vmem:[%s621 + $0x10] sm:$0xf]
        %v3135 = vld [vmem:[%s621 + $0x14] sm:$0xf]
        %v3136 = vld [vmem:[%s621 + $0x18] sm:$0xf]
        %v3137 = vld [vmem:[%s621 + $0x1c] sm:$0xf]
        %v3138 = vld [vmem:[%s621 + $0x20] sm:$0xf]
        %v3139 = vld [vmem:[%s621 + $0x24] sm:$0xf]
        %v3140 = vld [vmem:[%s621 + $0x28] sm:$0xf]
        %v3141 = vld [vmem:[%s621 + $0x2c] sm:$0xf]
        %v3142 = vld [vmem:[%s621 + $0x30] sm:$0xf]
        %v3143 = vld [vmem:[%s621 + $0x34] sm:$0xf]
        %v3144 = vld [vmem:[%s621 + $0x38] sm:$0xf]
        %v3145 = vld [vmem:[%s621 + $0x3c] sm:$0xf]
        %v3146 = vld [vmem:[%s621 + $0x40] sm:$0xf]
        %v3147 = vld [vmem:[%s621 + $0x44] sm:$0xf]
        %v3148 = vld [vmem:[%s621 + $0x48] sm:$0xf]
        %v3149 = vld [vmem:[%s621 + $0x4c] sm:$0xf]
        %v3150 = vld [vmem:[%s621 + $0x50] sm:$0xf]
        %v3151 = vld [vmem:[%s621 + $0x54] sm:$0xf]
        %v3152 = vld [vmem:[%s621 + $0x58] sm:$0xf]
        %v3153 = vld [vmem:[%s621 + $0x5c] sm:$0xf]
        %v3154 = vld [vmem:[%s621 + $0x60] sm:$0xf]
        %v3155 = vld [vmem:[%s621 + $0x64] sm:$0xf]
        %v3156 = vld [vmem:[%s621 + $0x68] sm:$0xf]
        %v3157 = vld [vmem:[%s621 + $0x6c] sm:$0xf]
        %v3158 = vld [vmem:[%s621 + $0x70] sm:$0xf]
        %v3159 = vld [vmem:[%s621 + $0x74] sm:$0xf]
        %v3160 = vld [vmem:[%s621 + $0x78] sm:$0xf]
        %v3161 = vld [vmem:[%s621 + $0x7c] sm:$0xf]
        %v3162 = vld [vmem:[%s621 + $0x80] sm:$0xf]
        %v3163 = vld [vmem:[%s621 + $0x84] sm:$0xf]
        %v3164 = vld [vmem:[%s621 + $0x88] sm:$0xf]
        %v3165 = vld [vmem:[%s621 + $0x8c] sm:$0xf]
        %v3166 = vld [vmem:[%s621 + $0x90] sm:$0xf]
        %v3167 = vld [vmem:[%s621 + $0x94] sm:$0xf]
        %v3168 = vld [vmem:[%s621 + $0x98] sm:$0xf]
        %v3169 = vld [vmem:[%s621 + $0x9c] sm:$0xf]
        %v3170 = vld [vmem:[%s621 + $0xa0] sm:$0xf]
        %v3171 = vld [vmem:[%s621 + $0xa4] sm:$0xf]
        %v3172 = vld [vmem:[%s621 + $0xa8] sm:$0xf]
        %v3173 = vld [vmem:[%s621 + $0xac] sm:$0xf]
        %v3174 = vld [vmem:[%s621 + $0xb0] sm:$0xf]
        %v3175 = vld [vmem:[%s621 + $0xb4] sm:$0xf]
        %v3176 = vld [vmem:[%s621 + $0xb8] sm:$0xf]
        %v3177 = vld [vmem:[%s621 + $0xbc] sm:$0xf]
        %v3178 = vld [vmem:[%s621 + $0xc0] sm:$0xf]
        %v3179 = vld [vmem:[%s621 + $0xc4] sm:$0xf]
        %v3180 = vld [vmem:[%s621 + $0xc8] sm:$0xf]
        %v3181 = vld [vmem:[%s621 + $0xcc] sm:$0xf]
        %v3182 = vld [vmem:[%s621 + $0xd0] sm:$0xf]
        %v3183 = vld [vmem:[%s621 + $0xd4] sm:$0xf]
        %v3184 = vld [vmem:[%s621 + $0xd8] sm:$0xf]
        %v3185 = vld [vmem:[%s621 + $0xdc] sm:$0xf]
        %v3186 = vld [vmem:[%s621 + $0xe0] sm:$0xf]
        %v3187 = vld [vmem:[%s621 + $0xe4] sm:$0xf]
        %v3188 = vld [vmem:[%s621 + $0xe8] sm:$0xf]
        %v3189 = vld [vmem:[%s621 + $0xec] sm:$0xf]
        %v3190 = vld [vmem:[%s621 + $0xf0] sm:$0xf]
        %v3191 = vld [vmem:[%s621 + $0xf4] sm:$0xf]
        %v3192 = vld [vmem:[%s621 + $0xf8] sm:$0xf]
        %v3193 = vld [vmem:[%s621 + $0xfc] sm:$0xf]
        %v3194 = vld [vmem:[%s721] sm:$0x1]
        %v3196 = vlaneseq
        %v3197 = vshrl.u32 %v3196, 7
        %v3198 = vsub.s32 0, %v3197
        %v3199 = vrot.slane %v3194, %v3198
        %v3265 = vunpack.c.l.b16 %v3130
        %v3266 = vunpack.c.l.b16 %v3131
        %v3267 = vunpack.c.l.b16 %v3132
        %v3268 = vunpack.c.l.b16 %v3133
        %v3269 = vunpack.c.l.b16 %v3134
        %v3270 = vunpack.c.l.b16 %v3135
        %v3271 = vunpack.c.l.b16 %v3136
        %v3272 = vunpack.c.l.b16 %v3137
        %v3273 = vunpack.c.l.b16 %v3138
        %v3274 = vunpack.c.l.b16 %v3139
        %v3275 = vunpack.c.l.b16 %v3140
        %v3276 = vunpack.c.l.b16 %v3141
        %v3277 = vunpack.c.l.b16 %v3142
        %v3278 = vunpack.c.l.b16 %v3143
        %v3279 = vunpack.c.l.b16 %v3144
        %v3280 = vunpack.c.l.b16 %v3145
        %v3281 = vunpack.c.l.b16 %v3146
        %v3282 = vunpack.c.l.b16 %v3147
        %v3283 = vunpack.c.l.b16 %v3148
        %v3284 = vunpack.c.l.b16 %v3149
        %v3285 = vunpack.c.l.b16 %v3150
        %v3286 = vunpack.c.l.b16 %v3151
        %v3287 = vunpack.c.l.b16 %v3152
        %v3288 = vunpack.c.l.b16 %v3153
        %v3289 = vunpack.c.l.b16 %v3154
        %v3290 = vunpack.c.l.b16 %v3155
        %v3291 = vunpack.c.l.b16 %v3156
        %v3292 = vunpack.c.l.b16 %v3157
        %v3293 = vunpack.c.l.b16 %v3158
        %v3294 = vunpack.c.l.b16 %v3159
        %v3295 = vunpack.c.l.b16 %v3160
        %v3296 = vunpack.c.l.b16 %v3161
        %v3297 = vunpack.c.l.b16 %v3162
        %v3298 = vunpack.c.l.b16 %v3163
        %v3299 = vunpack.c.l.b16 %v3164
        %v3300 = vunpack.c.l.b16 %v3165
        %v3301 = vunpack.c.l.b16 %v3166
        %v3302 = vunpack.c.l.b16 %v3167
        %v3303 = vunpack.c.l.b16 %v3168
        %v3304 = vunpack.c.l.b16 %v3169
        %v3305 = vunpack.c.l.b16 %v3170
        %v3306 = vunpack.c.l.b16 %v3171
        %v3307 = vunpack.c.l.b16 %v3172
        %v3308 = vunpack.c.l.b16 %v3173
        %v3309 = vunpack.c.l.b16 %v3174
        %v3310 = vunpack.c.l.b16 %v3175
        %v3311 = vunpack.c.l.b16 %v3176
        %v3312 = vunpack.c.l.b16 %v3177
        %v3313 = vunpack.c.l.b16 %v3178
        %v3314 = vunpack.c.l.b16 %v3179
        %v3315 = vunpack.c.l.b16 %v3180
        %v3316 = vunpack.c.l.b16 %v3181
        %v3317 = vunpack.c.l.b16 %v3182
        %v3318 = vunpack.c.l.b16 %v3183
        %v3319 = vunpack.c.l.b16 %v3184
        %v3320 = vunpack.c.l.b16 %v3185
        %v3321 = vunpack.c.l.b16 %v3186
        %v3322 = vunpack.c.l.b16 %v3187
        %v3323 = vunpack.c.l.b16 %v3188
        %v3324 = vunpack.c.l.b16 %v3189
        %v3325 = vunpack.c.l.b16 %v3190
        %v3326 = vunpack.c.l.b16 %v3191
        %v3327 = vunpack.c.l.b16 %v3192
        %v3328 = vunpack.c.l.b16 %v3193
        %v3329 = vpack.c.b16 %v3266, %v3265
        %v3330 = vpack.c.b16 %v3268, %v3267
        %v3331 = vpack.c.b16 %v3270, %v3269
        %v3332 = vpack.c.b16 %v3272, %v3271
        %v3333 = vpack.c.b16 %v3274, %v3273
        %v3334 = vpack.c.b16 %v3276, %v3275
        %v3335 = vpack.c.b16 %v3278, %v3277
        %v3336 = vpack.c.b16 %v3280, %v3279
        %v3337 = vpack.c.b16 %v3282, %v3281
        %v3338 = vpack.c.b16 %v3284, %v3283
        %v3339 = vpack.c.b16 %v3286, %v3285
        %v3340 = vpack.c.b16 %v3288, %v3287
        %v3341 = vpack.c.b16 %v3290, %v3289
        %v3342 = vpack.c.b16 %v3292, %v3291
        %v3343 = vpack.c.b16 %v3294, %v3293
        %v3344 = vpack.c.b16 %v3296, %v3295
        %v3345 = vpack.c.b16 %v3298, %v3297
        %v3346 = vpack.c.b16 %v3300, %v3299
        %v3347 = vpack.c.b16 %v3302, %v3301
        %v3348 = vpack.c.b16 %v3304, %v3303
        %v3349 = vpack.c.b16 %v3306, %v3305
        %v3350 = vpack.c.b16 %v3308, %v3307
        %v3351 = vpack.c.b16 %v3310, %v3309
        %v3352 = vpack.c.b16 %v3312, %v3311
        %v3353 = vpack.c.b16 %v3314, %v3313
        %v3354 = vpack.c.b16 %v3316, %v3315
        %v3355 = vpack.c.b16 %v3318, %v3317
        %v3356 = vpack.c.b16 %v3320, %v3319
        %v3357 = vpack.c.b16 %v3322, %v3321
        %v3358 = vpack.c.b16 %v3324, %v3323
        %v3359 = vpack.c.b16 %v3326, %v3325
        %v3360 = vpack.c.b16 %v3328, %v3327
        %3393 = vmatprep.subr.bf16.mxu0 0
        %3394 = vmatpush1.bf16.msra.mxu0 %v3329
        %3395 = vmatprep.subr.bf16.mxu0 0
        %3396 = vmatpush1.bf16.msra.mxu0 %v3330
        %3397 = vmatprep.subr.bf16.mxu0 0
        %3398 = vmatpush1.bf16.msra.mxu0 %v3331
        %3399 = vmatprep.subr.bf16.mxu0 0
        %3400 = vmatpush1.bf16.msra.mxu0 %v3332
        %3401 = vmatprep.subr.bf16.mxu0 0
        %3402 = vmatpush1.bf16.msra.mxu0 %v3333
        %3403 = vmatprep.subr.bf16.mxu0 0
        %3404 = vmatpush1.bf16.msra.mxu0 %v3334
        %3405 = vmatprep.subr.bf16.mxu0 0
        %3406 = vmatpush1.bf16.msra.mxu0 %v3335
        %3407 = vmatprep.subr.bf16.mxu0 0
        %3408 = vmatpush1.bf16.msra.mxu0 %v3336
        %3409 = vmatprep.subr.bf16.mxu0 0
        %3410 = vmatpush1.bf16.msra.mxu0 %v3337
        %3411 = vmatprep.subr.bf16.mxu0 0
        %3412 = vmatpush1.bf16.msra.mxu0 %v3338
        %3413 = vmatprep.subr.bf16.mxu0 0
        %3414 = vmatpush1.bf16.msra.mxu0 %v3339
        %3415 = vmatprep.subr.bf16.mxu0 0
        %3416 = vmatpush1.bf16.msra.mxu0 %v3340
        %3417 = vmatprep.subr.bf16.mxu0 0
        %3418 = vmatpush1.bf16.msra.mxu0 %v3341
        %3419 = vmatprep.subr.bf16.mxu0 0
        %3420 = vmatpush1.bf16.msra.mxu0 %v3342
        %3421 = vmatprep.subr.bf16.mxu0 0
        %3422 = vmatpush1.bf16.msra.mxu0 %v3343
        %3423 = vmatprep.subr.bf16.mxu0 0
        %3424 = vmatpush1.bf16.msra.mxu0 %v3344
        %3425 = vmatprep.mubr.bf16.mxu0 %v3123
        %3426 = vmatmul.mubr.bf16.gmra.mrb[0].mxu0 %v3122
        %v3427 = vpop.f32.mrb[0].mxu0
        %v3428 = vadd.f32 %v3199, %v3427
        %v3429 = vpop.f32.mrb[0].mxu0
        %v3430 = vpop.f32.mrb[0].mxu0
        %v3431 = vadd.f32 %v3199, %v3430
        %v3432 = vpop.f32.mrb[0].mxu0
        %3433 = vmatprep.mubr.bf16.mxu0 %v3127
        %3434 = vmatmul.mubr.bf16.gmra.mrb[0].mxu0 %v3126
        %v3435 = vpop.f32.mrb[0].mxu0
        %v3436 = vadd.f32 %v3199, %v3435
        %v3437 = vpop.f32.mrb[0].mxu0
        %v3438 = vpop.f32.mrb[0].mxu0
        %v3439 = vadd.f32 %v3199, %v3438
        %v3440 = vpop.f32.mrb[0].mxu0
        %3441 = vdwg.mxu0
        %3442 = vmatprep.subr.bf16.mxu0 0
        %3443 = vmatpush1.bf16.msra.mxu0 %v3345
        %3444 = vmatprep.subr.bf16.mxu0 0
        %3445 = vmatpush1.bf16.msra.mxu0 %v3346
        %3446 = vmatprep.subr.bf16.mxu0 0
        %3447 = vmatpush1.bf16.msra.mxu0 %v3347
        %3448 = vmatprep.subr.bf16.mxu0 0
        %3449 = vmatpush1.bf16.msra.mxu0 %v3348
        %3450 = vmatprep.subr.bf16.mxu0 0
        %3451 = vmatpush1.bf16.msra.mxu0 %v3349
        %3452 = vmatprep.subr.bf16.mxu0 0
        %3453 = vmatpush1.bf16.msra.mxu0 %v3350
        %3454 = vmatprep.subr.bf16.mxu0 0
        %3455 = vmatpush1.bf16.msra.mxu0 %v3351
        %3456 = vmatprep.subr.bf16.mxu0 0
        %3457 = vmatpush1.bf16.msra.mxu0 %v3352
        %3458 = vmatprep.subr.bf16.mxu0 0
        %3459 = vmatpush1.bf16.msra.mxu0 %v3353
        %3460 = vmatprep.subr.bf16.mxu0 0
        %3461 = vmatpush1.bf16.msra.mxu0 %v3354
        %3462 = vmatprep.subr.bf16.mxu0 0
        %3463 = vmatpush1.bf16.msra.mxu0 %v3355
        %3464 = vmatprep.subr.bf16.mxu0 0
        %3465 = vmatpush1.bf16.msra.mxu0 %v3356
        %3466 = vmatprep.subr.bf16.mxu0 0
        %3467 = vmatpush1.bf16.msra.mxu0 %v3357
        %3468 = vmatprep.subr.bf16.mxu0 0
        %3469 = vmatpush1.bf16.msra.mxu0 %v3358
        %3470 = vmatprep.subr.bf16.mxu0 0
        %3471 = vmatpush1.bf16.msra.mxu0 %v3359
        %3472 = vmatprep.subr.bf16.mxu0 0
        %3473 = vmatpush1.bf16.msra.mxu0 %v3360
        %3474 = vmatprep.mubr.bf16.mxu0 %v3125
        %3475 = vmatmul.mubr.bf16.gmra.mrb[0].mxu0 %v3124
        %v3476 = vpop.f32.mrb[0].mxu0
        %v3477 = vadd.f32 %v3428, %v3476
        %v3478 = vpop.f32.mrb[0].mxu0
        %v3479 = vpop.f32.mrb[0].mxu0
        %v3480 = vadd.f32 %v3431, %v3479
        %v3481 = vpop.f32.mrb[0].mxu0
        %3482 = vmatprep.mubr.bf16.mxu0 %v3129
        %3483 = vmatmul.mubr.bf16.gmra.mrb[0].mxu0 %v3128
        %v3484 = vpop.f32.mrb[0].mxu0
        %v3485 = vadd.f32 %v3436, %v3484
        %v3486 = vpop.f32.mrb[0].mxu0
        %v3487 = vpop.f32.mrb[0].mxu0
        %v3488 = vadd.f32 %v3439, %v3487
        %v3489 = vpop.f32.mrb[0].mxu0
        %3490 = vdwg.mxu0
        %v3491 = vadd.f32 %v2652, %v3477
        %v3492 = vadd.f32 %v2653, %v3480
        %v3493 = vadd.f32 %v2654, %v3485
        %v3494 = vadd.f32 %v2655, %v3488
        %v3495 = vld [vmem:[%s724] sm:$0x1]
        %v3496 = vld [vmem:[%s727] sm:$0x1]
        %3497 = vadd.xlane.f32.xlu0 %v3491
        %v3498 = vpop.xlane.xlu0 %3497
        %3499 = vadd.xlane.f32.xlu0 %v3492
        %v3500 = vpop.xlane.xlu0 %3499
        %3501 = vadd.xlane.f32.xlu0 %v3493
        %v3502 = vpop.xlane.xlu0 %3501
        %3503 = vadd.xlane.f32.xlu0 %v3494
        %v3504 = vpop.xlane.xlu0 %3503
        %v3505 = vmul.f32 %v3498, %v2599
        %v3506 = vmul.f32 %v3500, %v2599
        %v3507 = vmul.f32 %v3502, %v2599
        %v3508 = vmul.f32 %v3504, %v2599
        %v3509 = vsub.f32 %v3491, %v3505
        %v3510 = vsub.f32 %v3492, %v3506
        %v3511 = vsub.f32 %v3493, %v3507
        %v3512 = vsub.f32 %v3494, %v3508
        %v3513 = vmul.f32 %v3509, %v3509
        %v3514 = vmul.f32 %v3510, %v3510
        %v3515 = vmul.f32 %v3511, %v3511
        %v3516 = vmul.f32 %v3512, %v3512
        %3517 = vadd.xlane.f32.xlu0 %v3513
        %v3518 = vpop.xlane.xlu0 %3517
        %3519 = vadd.xlane.f32.xlu0 %v3514
        %v3520 = vpop.xlane.xlu0 %3519
        %3521 = vadd.xlane.f32.xlu0 %v3515
        %v3522 = vpop.xlane.xlu0 %3521
        %3523 = vadd.xlane.f32.xlu0 %v3516
        %v3524 = vpop.xlane.xlu0 %3523
        %v3525 = vmul.f32 %v3518, %v2599
        %v3526 = vmul.f32 %v3520, %v2599
        %v3527 = vmul.f32 %v3522, %v2599
        %v3528 = vmul.f32 %v3524, %v2599
        %v3529 = vadd.f32 %v3525, 1e-12
        %v3530 = vadd.f32 %v3526, 1e-12
        %v3531 = vadd.f32 %v3527, 1e-12
        %v3532 = vadd.f32 %v3528, 1e-12
        %v3533 = vrsqrt.pop %v3529
        %v3534 = vrsqrt.pop %v3530
        %v3535 = vrsqrt.pop %v3531
        %v3536 = vrsqrt.pop %v3532
        %v3537 = vmul.f32 %v3509, %v3533
        %v3538 = vmul.f32 %v3510, %v3534
        %v3539 = vmul.f32 %v3511, %v3535
        %v3540 = vmul.f32 %v3512, %v3536
        %v3542 = vlaneseq
        %v3543 = vshrl.u32 %v3542, 7
        %v3544 = vsub.s32 0, %v3543
        %v3545 = vrot.slane %v3495, %v3544
        %v3547 = vmul.f32 %v3537, %v3545
        %v3548 = vmul.f32 %v3538, %v3545
        %v3549 = vmul.f32 %v3539, %v3545
        %v3550 = vmul.f32 %v3540, %v3545
        %v3552 = vlaneseq
        %v3553 = vshrl.u32 %v3552, 7
        %v3554 = vsub.s32 0, %v3553
        %v3555 = vrot.slane %v3496, %v3554
        %v3557 = vadd.f32 %v3547, %v3555
        %v3558 = vadd.f32 %v3548, %v3555
        %v3559 = vadd.f32 %v3549, %v3555
        %v3560 = vadd.f32 %v3550, %v3555
        %3561 = vst [vmem:[#allocation2] sm:$0xff] %v3557
        %3562 = vst [vmem:[#allocation2 + $0x8] sm:$0xff] %v3558
        %3563 = vst [vmem:[#allocation2 + $0x10] sm:$0xff] %v3559
        %3564 = vst [vmem:[#allocation2 + $0x18] sm:$0xff] %v3560
        %p3565 = scmp.eq.s32.totalorder %s28, 1
        // Predicated region
        $region105: #{tpu_custom_call.1} parent=75 // pred_check
          %p3566 = pneg %p3565
        $region106: #{tpu_custom_call.1} parent=75 // pred_check_branch
          %3568 = sbr.rel (%p3566) target = $region108
        $region107: #{tpu_custom_call.1} parent=75 // pred_region
          %v3569 = vlaneseq
          %v3570 = vshrl.u32 %v3569, 7
          %v3571 = vsub.s32 0, %v3570
          %v3572 = vrot.slane %v747, %v3571
          %3574 = vbcast.lane.b32.xlu0 %v3572, 256
          %v3575 = vpop.permute.xlu0 %3574
          %v3576 = vlaneseq
          %v3577 = vshrl.u32 %v3576, 7
          %v3578 = vsub.s32 1, %v3577
          %v3579 = vrot.slane %v747, %v3578
          %3581 = vbcast.lane.b32.xlu0 %v3579, 256
          %v3582 = vpop.permute.xlu0 %3581
          %v3583 = vlaneseq
          %v3584 = vshrl.u32 %v3583, 7
          %v3585 = vsub.s32 2, %v3584
          %v3586 = vrot.slane %v747, %v3585
          %3588 = vbcast.lane.b32.xlu0 %v3586, 256
          %v3589 = vpop.permute.xlu0 %3588
          %v3590 = vlaneseq
          %v3591 = vshrl.u32 %v3590, 7
          %v3592 = vsub.s32 3, %v3591
          %v3593 = vrot.slane %v747, %v3592
          %3595 = vbcast.lane.b32.xlu0 %v3593, 256
          %v3596 = vpop.permute.xlu0 %3595
          %v3597 = vmul.f32 %v3557, %v3575
          %v3598 = vmul.f32 %v3558, %v3582
          %v3599 = vmul.f32 %v3559, %v3589
          %v3600 = vmul.f32 %v3560, %v3596
          %v3601 = vrot.slane %v3597, 4
          %v3602 = vadd.f32 %v3597, %v3601
          %v3603 = vrot.slane %v3602, 2
          %v3604 = vadd.f32 %v3602, %v3603
          %v3605 = vrot.slane %v3604, 1
          %v3606 = vadd.f32 %v3604, %v3605
          %v3607 = vrot.slane %v3598, 4
          %v3608 = vadd.f32 %v3598, %v3607
          %v3609 = vrot.slane %v3608, 2
          %v3610 = vadd.f32 %v3608, %v3609
          %v3611 = vrot.slane %v3610, 1
          %v3612 = vadd.f32 %v3610, %v3611
          %v3613 = vrot.slane %v3599, 4
          %v3614 = vadd.f32 %v3599, %v3613
          %v3615 = vrot.slane %v3614, 2
          %v3616 = vadd.f32 %v3614, %v3615
          %v3617 = vrot.slane %v3616, 1
          %v3618 = vadd.f32 %v3616, %v3617
          %v3619 = vrot.slane %v3600, 4
          %v3620 = vadd.f32 %v3600, %v3619
          %v3621 = vrot.slane %v3620, 2
          %v3622 = vadd.f32 %v3620, %v3621
          %v3623 = vrot.slane %v3622, 1
          %v3624 = vadd.f32 %v3622, %v3623
          %v3625 = vrot.slane %v3575, 4
          %v3626 = vadd.f32 %v3575, %v3625
          %v3627 = vrot.slane %v3626, 2
          %v3628 = vadd.f32 %v3626, %v3627
          %v3629 = vrot.slane %v3628, 1
          %v3630 = vadd.f32 %v3628, %v3629
          %v3631 = vrot.slane %v3582, 4
          %v3632 = vadd.f32 %v3582, %v3631
          %v3633 = vrot.slane %v3632, 2
          %v3634 = vadd.f32 %v3632, %v3633
          %v3635 = vrot.slane %v3634, 1
          %v3636 = vadd.f32 %v3634, %v3635
          %v3637 = vrot.slane %v3589, 4
          %v3638 = vadd.f32 %v3589, %v3637
          %v3639 = vrot.slane %v3638, 2
          %v3640 = vadd.f32 %v3638, %v3639
          %v3641 = vrot.slane %v3640, 1
          %v3642 = vadd.f32 %v3640, %v3641
          %v3643 = vrot.slane %v3596, 4
          %v3644 = vadd.f32 %v3596, %v3643
          %v3645 = vrot.slane %v3644, 2
          %v3646 = vadd.f32 %v3644, %v3645
          %v3647 = vrot.slane %v3646, 1
          %v3648 = vadd.f32 %v3646, %v3647
          %v3649 = vmax.f32 %v3630, 1e-09
          %v3650 = vmax.f32 %v3636, 1e-09
          %v3651 = vmax.f32 %v3642, 1e-09
          %v3652 = vmax.f32 %v3648, 1e-09
          %v3653 = vrcp.pop %v3649
          %v3654 = vrcp.pop %v3650
          %v3655 = vrcp.pop %v3651
          %v3656 = vrcp.pop %v3652
          %v3657 = vmul.f32 %v3606, %v3653
          %v3658 = vmul.f32 %v3612, %v3654
          %v3659 = vmul.f32 %v3618, %v3655
          %v3660 = vmul.f32 %v3624, %v3656
          %v3661 = vmul.f32 %v3657, %v3657
          %v3662 = vmul.f32 %v3658, %v3658
          %v3663 = vmul.f32 %v3659, %v3659
          %v3664 = vmul.f32 %v3660, %v3660
          %vm3669 = vcmask 1041409
          %v3670 = vsel %vm3669, %v3662, %v3661
          %vm3671 = vcmask 1042434
          %v3672 = vsel %vm3671, %v3663, %v3670
          %vm3673 = vcmask 1043459
          %v3674 = vsel %vm3673, %v3664, %v3672
          %vm3676 = vcmask 1043456
          %v3677 = vsel %vm3676, %v3674, 0.0
          %3678 = vadd.xlane.f32.xlu0 %v3677
          %v3679 = vpop.xlane.xlu0 %3678
          %v3680 = vmax.f32 %v3679, 1e-24
          %v3681 = vrsqrt.pop %v3680
          %v3683 = vrot.slane %v3681, 1
          %v3684 = vrot.slane %v3681, 2
          %v3685 = vrot.slane %v3681, 3
          %v3690 = vmul.f32 %v3657, %v3681
          %v3691 = vmul.f32 %v3658, %v3683
          %v3692 = vmul.f32 %v3659, %v3684
          %v3693 = vmul.f32 %v3660, %v3685
          %v3698 = vrot.slane %v3691, 7
          %v3699 = vsel %vm3669, %v3698, %v3690
          %v3700 = vrot.slane %v3692, 6
          %v3701 = vsel %vm3671, %v3700, %v3699
          %v3702 = vrot.slane %v3693, 5
          %v3703 = vsel %vm3673, %v3702, %v3701
          %3705 = vst [vmem:[#allocation12] sm:$0xf] %v3703
        $region108: #{tpu_custom_call.1} parent=75 // pred_fallthru
          _
        // Predicated region
        $region109: #{tpu_custom_call.1} parent=75 // pred_check
          %p3706 = pneg %p395
        $region110: #{tpu_custom_call.1} parent=75 // pred_check_branch
          %3708 = sbr.rel (%p3706) target = $region112
        $region111: #{tpu_custom_call.1} parent=75 // pred_region
          %s3710 = ssub.s32 64, 64
          %3711 = vsyncadd [#allocation5], %s3710
          %s3713 = sshll.u32 [#allocation12], 4
          %s3714 = int_to_ptr.vmem [resolvable:$true] %s3713
          %3716 = dma.vmem_to_hbm [thread:$0]  %s3714, 64, %s14, [#allocation5]
        $region112: #{tpu_custom_call.1} parent=75 // pred_fallthru
          _
        // Predicated region
        $region113: #{tpu_custom_call.1} parent=75 // pred_check
          %p3717 = pneg %p395
        $region114: #{tpu_custom_call.1} parent=75 // pred_check_branch
          %3719 = sbr.rel (%p3717) target = $region116
        $region115: #{tpu_custom_call.1} parent=75 // pred_region
          %3720 = dma.done [#allocation5], 64
        $region116: #{tpu_custom_call.1} parent=75 // pred_fallthru
          _
      $region76: #{tpu_custom_call.1} parent=5 // pred_fallthru
        _
      %p3721 = scmp.le.s32.totalorder 2, %s23
      // Predicated region
      $region117: #{tpu_custom_call.1} parent=5 // pred_check
        %p3722 = pneg %p3721
      $region118: #{tpu_custom_call.1} parent=5 // pred_check_branch
        %3724 = sbr.rel (%p3722) target = $region120
      $region119: #{tpu_custom_call.1} parent=5 // pred_region
        %s3725 = ssub.s32 %s23, 2
      $region120: #{tpu_custom_call.1} parent=5 // pred_fallthru
        _
    $region6: #{tpu_custom_call.1} parent=1 // loop_footer
      %s27 = sadd.s32 1, %s23
    $region7: #{tpu_custom_call.1} parent=1 // loop_footer_branch
      %22 = sbr.rel target = $region3
    $region8: #{tpu_custom_call.1} parent=1 // loop_exit
      _
    %3726 = vsyncpa [#allocation4], 1
    %s3727 = scalar_lea.sflag [#allocation4], 1
    %3728 = vsyncpa %s3727, 1
    %3729 = vsyncpa [#allocation7], 1
    %3730 = vsyncpa [#allocation5], 1
    %s3731 = scalar_lea.sflag [#allocation5], 1
    %3732 = vsyncpa %s3731, 1

</llo_original>
